<compile_context>
chip_gen: v7x
topology: tpu7x:2x2x1
jax: 0.10.0
libtpu: 0.0.40
codegen_flags: <defaults>
</compile_context>

<pallas_src>
import functools

import jax
import jax.numpy as jnp
from jax import lax
from jax.experimental import pallas as pl
from jax.experimental.pallas import tpu as pltpu


def upsample_conv_kernel(x_ref, w_ref, b_ref, o_ref, *, H, W, Cin, Cout, K):
    """One batch item: reflection pad (p=K//2) + KxK conv (stride 1) + bias.

    x_ref: (1, H, W, Cin)    f32, already nearest-upsampled, NOT padded
    w_ref: (K, K*Cin, Cout)  bf16, (dy, dx-major-then-Cin, Cout)
    b_ref: (1, Cout)         f32
    o_ref: (1, Ho, Wo, Cout) f32, Ho = H + 2p - K + 1, Wo = W + 2p - K + 1
    """
    p = K // 2
    Ho = H + 2 * p - K + 1
    Wo = W + 2 * p - K + 1

    x = x_ref[0]                                        # (H, W, Cin) f32

    # ---- reflection pad along H: rows [p..1] on top, [H-2..H-1-p] on bottom ----
    top = [x[i:i + 1] for i in range(p, 0, -1)]
    bot = [x[H - 2 - i:H - 1 - i] for i in range(p)]
    xh = jnp.concatenate(top + [x] + bot, axis=0)       # (H+2p, W, Cin)

    # ---- reflection pad along W ----
    left = [xh[:, i:i + 1] for i in range(p, 0, -1)]
    right = [xh[:, W - 2 - i:W - 1 - i] for i in range(p)]
    xp = jnp.concatenate(left + [xh] + right, axis=1)   # (H+2p, W+2p, Cin)

    # ---- build the dx-shifted slab ONCE: slab[h, j, dx*Cin + c] = xp[h, j+dx, c] ----
    # Re-used for every dy, so the only remaining per-tap slicing is along H
    # (leading dim, cheap & contiguous). Single bf16 cast feeds the MXU.
    slab = jnp.concatenate([xp[:, dx:dx + Wo, :] for dx in range(K)], axis=-1)
    slab = slab.astype(jnp.bfloat16)                    # (H+2p, Wo, K*Cin)

    # ---- K matmuls, contraction = K*Cin, bf16 on the MXU, f32 accumulation ----
    acc = jnp.zeros((Ho * Wo, Cout), jnp.float32)
    w = w_ref[...]                                      # (K, K*Cin, Cout) bf16
    for dy in range(K):
        patch = slab[dy:dy + Ho].reshape(Ho * Wo, K * Cin)
        acc += jnp.dot(patch, w[dy], preferred_element_type=jnp.float32)

    acc += b_ref[...].astype(jnp.float32)               # broadcast (1, Cout)
    o_ref[...] = acc.reshape(1, Ho, Wo, Cout).astype(o_ref.dtype)


def upsample_conv_pallas(x_nchw, w_oihw, bias, *, stride=1, upsample=None):
    """UpsampleConvLayer forward. x_nchw: (B, Cin, H, W) f32. Returns NCHW f32."""
    assert stride == 1, "TODO(synk): stride > 1 not implemented in the Pallas kernel"
    B, Cin, H, W = x_nchw.shape
    Cout, Cin_w, K, K2 = w_oihw.shape
    assert Cin_w == Cin and K == K2
    p = K // 2

    # NCHW -> NHWC; optional nearest upsample (pure index glue, plain JAX).
    x = jnp.transpose(x_nchw, (0, 2, 3, 1))
    if upsample:
        x = jnp.repeat(jnp.repeat(x, upsample, axis=1), upsample, axis=2)
    Hu, Wu = x.shape[1], x.shape[2]
    Ho = Hu + 2 * p - K + 1
    Wo = Wu + 2 * p - K + 1

    # PyTorch OIHW -> HWIO -> (K, K*Cin, Cout) bf16 slab matching the kernel's
    # dx-then-Cin contraction ordering.
    w_hwio = jnp.transpose(w_oihw, (2, 3, 1, 0))
    w_slab = w_hwio.reshape(K, K * Cin, Cout).astype(jnp.bfloat16)
    b2 = bias.reshape(1, Cout).astype(jnp.float32)

    # VMEM budget: double-buffered I/O + in-kernel pad/slab temporaries (+2x slack).
    Hp_, Wp_ = Hu + 2 * p, Wu + 2 * p
    bytes_in = Hu * Wu * Cin * 4
    bytes_out = Ho * Wo * Cout * 4
    bytes_w = K * K * Cin * Cout * 2
    bytes_tmp = (Hp_ * Wp_ * Cin * 4                 # reflection-padded copy (f32)
                 + Hp_ * Wo * K * Cin * (4 + 2)      # dx slab f32 + bf16
                 + Ho * Wo * Cout * 4)               # f32 accumulator
    working = 2 * bytes_in + 2 * bytes_out + bytes_w + bytes_tmp
    vmem_limit = int(min(48 * 1024 * 1024, max(8 * 1024 * 1024, 2 * working)))

    cost = pl.CostEstimate(
        flops=2 * B * Ho * Wo * K * K * Cin * Cout,
        transcendentals=0,
        bytes_accessed=B * (bytes_in + bytes_out) + bytes_w + Cout * 4,
    )

    # NOTE: for real style-transfer configs keep Cout a multiple of 128 so the
    # output stays lane-dense (the tiny demo Cout=8 necessarily uses masked stores).
    out = pl.pallas_call(
        functools.partial(upsample_conv_kernel, H=Hu, W=Wu, Cin=Cin, Cout=Cout, K=K),
        out_shape=jax.ShapeDtypeStruct((B, Ho, Wo, Cout), jnp.float32),
        grid=(B,),
        in_specs=[
            pl.BlockSpec((1, Hu, Wu, Cin), lambda bi: (bi, 0, 0, 0)),   # activations
            pl.BlockSpec((K, K * Cin, Cout), lambda bi: (0, 0, 0)),     # weight slab
            pl.BlockSpec((1, Cout), lambda bi: (0, 0)),                 # bias
        ],
        out_specs=pl.BlockSpec((1, Ho, Wo, Cout), lambda bi: (bi, 0, 0, 0)),
        compiler_params=pltpu.CompilerParams(
            dimension_semantics=("parallel",),
            vmem_limit_bytes=vmem_limit),
        cost_estimate=cost,
    )(x, w_slab, b2)

    return jnp.transpose(out, (0, 3, 1, 2))  # NHWC -> NCHW


def upsample_conv_ref(x_nchw, w_oihw, bias, *, stride=1, upsample=None, match_bf16=False):
    """Pure-JAX reference with PyTorch semantics. match_bf16 mirrors the kernel's
    bf16 MXU operands (f32 accumulation) for a tight tolerance check."""
    Cout, Cin, K, _ = w_oihw.shape
    p = K // 2
    x = jnp.transpose(x_nchw, (0, 2, 3, 1))
    if upsample:
        x = jnp.repeat(jnp.repeat(x, upsample, axis=1), upsample, axis=2)
    xp = jnp.pad(x, ((0, 0), (p, p), (p, p), (0, 0)), mode="reflect")
    w_hwio = jnp.transpose(w_oihw, (2, 3, 1, 0))
    if match_bf16:
        xp = xp.astype(jnp.bfloat16)
        w_hwio = w_hwio.astype(jnp.bfloat16)
    y = lax.conv_general_dilated(
        xp, w_hwio, window_strides=(stride, stride), padding="VALID",
        dimension_numbers=("NHWC", "HWIO", "NHWC"),
        preferred_element_type=jnp.float32)
    y = y + bias[None, None, None, :]
    return jnp.transpose(y, (0, 3, 1, 2)).astype(jnp.float32)


if __name__ == "__main__":
    key = jax.random.PRNGKey(0)
    kx, kw, kb = jax.random.split(key, 3)

    B, Cin, Cout, H, W = 2, 4, 8, 16, 16
    K, stride, upsample = 3, 1, 2

    x = jax.random.normal(kx, (B, Cin, H, W), jnp.float32)
    w = 0.1 * jax.random.normal(kw, (Cout, Cin, K, K), jnp.float32)  # PyTorch OIHW
    b = 0.1 * jax.random.normal(kb, (Cout,), jnp.float32)

    out = jax.block_until_ready(
        upsample_conv_pallas(x, w, b, stride=stride, upsample=upsample))

    ref16 = jax.block_until_ready(
        upsample_conv_ref(x, w, b, stride=stride, upsample=upsample, match_bf16=True))
    ref32 = jax.block_until_ready(
        upsample_conv_ref(x, w, b, stride=stride, upsample=upsample, match_bf16=False))

    assert out.shape == (B, Cout, H * upsample, W * upsample), out.shape
    err16 = float(jnp.max(jnp.abs(out - ref16)))
    err32 = float(jnp.max(jnp.abs(out - ref32)))
    assert err16 < 2e-3, err16   # exact-path check (bf16-matched reference)
    assert err32 < 3e-2, err32   # semantic check vs full-f32 reference
    print("KERNEL_OK")
</pallas_src>

<mosaic_0001>
module attributes {stable_mosaic.version = 11 : i64} {
  func.func @upsample_conv_kernel(%arg0: i32, %arg1: memref<1x32x32x4xf32, #tpu.memory_space<vmem>>, %arg2: memref<3x12x8xbf16, #tpu.memory_space<vmem>>, %arg3: memref<1x8xf32, #tpu.memory_space<vmem>>, %arg4: memref<1x32x32x8xf32, #tpu.memory_space<vmem>>) attributes {dimension_semantics = [#tpu.dimension_semantics<parallel>], iteration_bounds = array<i64: 2>, scalar_prefetch = 0 : i64, scratch_operands = 0 : i64, tpu.core_type = #tpu.core_type<tc>, window_params = [{transform_indices = @transform_0, window_bounds = array<i64: 1, 32, 32, 4>}, {pipeline_mode = #tpu.pipeline_mode<synchronous>, transform_indices = @transform_1, window_bounds = array<i64: 3, 12, 8>}, {pipeline_mode = #tpu.pipeline_mode<synchronous>, transform_indices = @transform_2, window_bounds = array<i64: 1, 8>}, {transform_indices = @transform_3, window_bounds = array<i64: 1, 32, 32, 8>}]} {
    %c0 = arith.constant 0 : index
    %c0_0 = arith.constant 0 : index
    %c0_1 = arith.constant 0 : index
    %c0_2 = arith.constant 0 : index
    %0 = vector.load %arg1[%c0, %c0_0, %c0_1, %c0_2] : memref<1x32x32x4xf32, #tpu.memory_space<vmem>>, vector<1x32x32x4xf32>
    %1 = vector.shape_cast %0 : vector<1x32x32x4xf32> to vector<32x32x4xf32>
    %2 = vector.extract_strided_slice %1 {offsets = [1, 0, 0], sizes = [1, 32, 4], strides = [1, 1, 1]} : vector<32x32x4xf32> to vector<1x32x4xf32>
    %3 = vector.extract_strided_slice %1 {offsets = [30, 0, 0], sizes = [1, 32, 4], strides = [1, 1, 1]} : vector<32x32x4xf32> to vector<1x32x4xf32>
    %4 = tpu.concatenate %2, %1, %3 in 0 : vector<1x32x4xf32>, vector<32x32x4xf32>, vector<1x32x4xf32> -> vector<34x32x4xf32>
    %5 = vector.extract_strided_slice %4 {offsets = [0, 1, 0], sizes = [34, 1, 4], strides = [1, 1, 1]} : vector<34x32x4xf32> to vector<34x1x4xf32>
    %6 = vector.extract_strided_slice %4 {offsets = [0, 30, 0], sizes = [34, 1, 4], strides = [1, 1, 1]} : vector<34x32x4xf32> to vector<34x1x4xf32>
    %7 = tpu.concatenate %5, %4, %6 in 1 : vector<34x1x4xf32>, vector<34x32x4xf32>, vector<34x1x4xf32> -> vector<34x34x4xf32>
    %8 = vector.extract_strided_slice %7 {offsets = [0, 0, 0], sizes = [34, 32, 4], strides = [1, 1, 1]} : vector<34x34x4xf32> to vector<34x32x4xf32>
    %9 = vector.extract_strided_slice %7 {offsets = [0, 1, 0], sizes = [34, 32, 4], strides = [1, 1, 1]} : vector<34x34x4xf32> to vector<34x32x4xf32>
    %10 = vector.extract_strided_slice %7 {offsets = [0, 2, 0], sizes = [34, 32, 4], strides = [1, 1, 1]} : vector<34x34x4xf32> to vector<34x32x4xf32>
    %11 = tpu.concatenate %8, %9, %10 in 2 : vector<34x32x4xf32>, vector<34x32x4xf32>, vector<34x32x4xf32> -> vector<34x32x12xf32>
    %12 = arith.truncf %11 : vector<34x32x12xf32> to vector<34x32x12xbf16>
    %cst = arith.constant 0.000000e+00 : f32
    %13 = vector.broadcast %cst : f32 to vector<1024x8xf32>
    %c0_3 = arith.constant 0 : index
    %c0_4 = arith.constant 0 : index
    %c0_5 = arith.constant 0 : index
    %14 = vector.load %arg2[%c0_3, %c0_4, %c0_5] : memref<3x12x8xbf16, #tpu.memory_space<vmem>>, vector<3x12x8xbf16>
    %15 = vector.extract_strided_slice %12 {offsets = [0, 0, 0], sizes = [32, 32, 12], strides = [1, 1, 1]} : vector<34x32x12xbf16> to vector<32x32x12xbf16>
    %16 = vector.shape_cast %15 : vector<32x32x12xbf16> to vector<1024x12xbf16>
    %17 = vector.extract_strided_slice %14 {offsets = [0, 0, 0], sizes = [1, 12, 8], strides = [1, 1, 1]} : vector<3x12x8xbf16> to vector<1x12x8xbf16>
    %18 = vector.shape_cast %17 : vector<1x12x8xbf16> to vector<12x8xbf16>
    %cst_6 = arith.constant dense<0.000000e+00> : vector<1024x8xf32>
    %19 = tpu.matmul %16, %18, %cst_6 {dimension_numbers = #tpu.dot_dimension_numbers<[1], [0], [0], [1], [0, 0, 1, 1], [], []>} : vector<1024x12xbf16>, vector<12x8xbf16>, vector<1024x8xf32> -> vector<1024x8xf32>
    %20 = arith.addf %13, %19 : vector<1024x8xf32>
    %21 = vector.extract_strided_slice %12 {offsets = [1, 0, 0], sizes = [32, 32, 12], strides = [1, 1, 1]} : vector<34x32x12xbf16> to vector<32x32x12xbf16>
    %22 = vector.shape_cast %21 : vector<32x32x12xbf16> to vector<1024x12xbf16>
    %23 = vector.extract_strided_slice %14 {offsets = [1, 0, 0], sizes = [1, 12, 8], strides = [1, 1, 1]} : vector<3x12x8xbf16> to vector<1x12x8xbf16>
    %24 = vector.shape_cast %23 : vector<1x12x8xbf16> to vector<12x8xbf16>
    %cst_7 = arith.constant dense<0.000000e+00> : vector<1024x8xf32>
    %25 = tpu.matmul %22, %24, %cst_7 {dimension_numbers = #tpu.dot_dimension_numbers<[1], [0], [0], [1], [0, 0, 1, 1], [], []>} : vector<1024x12xbf16>, vector<12x8xbf16>, vector<1024x8xf32> -> vector<1024x8xf32>
    %26 = arith.addf %20, %25 : vector<1024x8xf32>
    %27 = vector.extract_strided_slice %12 {offsets = [2, 0, 0], sizes = [32, 32, 12], strides = [1, 1, 1]} : vector<34x32x12xbf16> to vector<32x32x12xbf16>
    %28 = vector.shape_cast %27 : vector<32x32x12xbf16> to vector<1024x12xbf16>
    %29 = vector.extract_strided_slice %14 {offsets = [2, 0, 0], sizes = [1, 12, 8], strides = [1, 1, 1]} : vector<3x12x8xbf16> to vector<1x12x8xbf16>
    %30 = vector.shape_cast %29 : vector<1x12x8xbf16> to vector<12x8xbf16>
    %cst_8 = arith.constant dense<0.000000e+00> : vector<1024x8xf32>
    %31 = tpu.matmul %28, %30, %cst_8 {dimension_numbers = #tpu.dot_dimension_numbers<[1], [0], [0], [1], [0, 0, 1, 1], [], []>} : vector<1024x12xbf16>, vector<12x8xbf16>, vector<1024x8xf32> -> vector<1024x8xf32>
    %32 = arith.addf %26, %31 : vector<1024x8xf32>
    %c0_9 = arith.constant 0 : index
    %c0_10 = arith.constant 0 : index
    %33 = vector.load %arg3[%c0_9, %c0_10] : memref<1x8xf32, #tpu.memory_space<vmem>>, vector<1x8xf32>
    %34 = vector.broadcast %33 : vector<1x8xf32> to vector<1024x8xf32>
    %35 = arith.addf %32, %34 : vector<1024x8xf32>
    %36 = vector.shape_cast %35 : vector<1024x8xf32> to vector<1x32x32x8xf32>
    %c0_11 = arith.constant 0 : index
    %c0_12 = arith.constant 0 : index
    %c0_13 = arith.constant 0 : index
    %c0_14 = arith.constant 0 : index
    %37 = vector.load %arg4[%c0_11, %c0_12, %c0_13, %c0_14] : memref<1x32x32x8xf32, #tpu.memory_space<vmem>>, vector<1x32x32x8xf32>
    tpu.vector_store %arg4[%c0_11, %c0_12, %c0_13, %c0_14], %36 {strides = array<i32>} : memref<1x32x32x8xf32, #tpu.memory_space<vmem>>, vector<1x32x32x8xf32>,
    return
  }
  func.func @transform_0(%arg0: i32) -> (i32, i32, i32, i32) {
    %c0_i32 = arith.constant 0 : i32
    %c0_i32_0 = arith.constant 0 : i32
    %c0_i32_1 = arith.constant 0 : i32
    %c0_i32_2 = arith.constant 0 : i32
    return %arg0, %c0_i32, %c0_i32_0, %c0_i32_1 : i32, i32, i32, i32
  }
  func.func @transform_1(%arg0: i32) -> (i32, i32, i32) {
    %c0_i32 = arith.constant 0 : i32
    %c0_i32_0 = arith.constant 0 : i32
    %c0_i32_1 = arith.constant 0 : i32
    %c0_i32_2 = arith.constant 0 : i32
    return %c0_i32, %c0_i32_0, %c0_i32_1 : i32, i32, i32
  }
  func.func @transform_2(%arg0: i32) -> (i32, i32) {
    %c0_i32 = arith.constant 0 : i32
    %c0_i32_0 = arith.constant 0 : i32
    %c0_i32_1 = arith.constant 0 : i32
    return %c0_i32, %c0_i32_0 : i32, i32
  }
  func.func @transform_3(%arg0: i32) -> (i32, i32, i32, i32) {
    %c0_i32 = arith.constant 0 : i32
    %c0_i32_0 = arith.constant 0 : i32
    %c0_i32_1 = arith.constant 0 : i32
    %c0_i32_2 = arith.constant 0 : i32
    return %arg0, %c0_i32, %c0_i32_0, %c0_i32_1 : i32, i32, i32, i32
  }
}

</mosaic_0001>

<llo_original>
// kernel: tpu_custom_call.1
$region0: #{tpu_custom_call.1}
  #allocation0 [shape = 'u32[]', space=smem, size = 0x4, offset = 0x4, fixed_abs, tag = 'smem constant byte address 0x4 - core index']
  #allocation1 [shape = 'u32[144,128]{1,0:T(1,128)}', space=vmem, size = 0x12000, scoped, tag = 'internal scratch']
  %s0 = inlined_call_operand.vmem [shape: f32[2,32,32,4], index: 0, kind: input, shape index: {}]
  %s1 = inlined_call_operand.vmem [shape: bf16[3,12,8], index: 1, kind: input, shape index: {}]
  %s2 = inlined_call_operand.vmem [shape: f32[1,8], index: 2, kind: input, shape index: {}]
  %s3 = inlined_call_operand.vmem [shape: f32[2,32,32,8], index: 3, kind: output, shape index: {}]
  %s4 = sld [smem:[#allocation0]]
  $region45: #{tpu_custom_call.1} parent=0
    _
  %s6 = ssub.s32 1, %s4
  %s7 = scalar_select 0, %s6, %s4
  loop: start=0, step=1, limit=4
  $region2: #{tpu_custom_call.1} parent=0 // loop_pre_header
    _
  $region3: #{tpu_custom_call.1} parent=0 // loop_header
    %s9 = sphi 0, %s13
    %p10 = scmp.ge.s32.totalorder %s9, 4
    %s19 = sphi 0, %s21
    %s22 = sphi 0, %s19
    %s23 = sphi 0, %s22
    %s39 = sphi 0, %s23
    %s43 = sphi 0, %s43
    %s45 = sphi 0, %s43
    %s46 = sphi 0, %s45
    %s60 = sphi 0, %s46
    %s64 = sphi 0, %s64
    %s66 = sphi 0, %s64
    %s67 = sphi 0, %s66
    %s81 = sphi 0, %s67
    %s87 = sphi 0, %s89
    %s90 = sphi 0, %s87
    %s91 = sphi 0, %s90
    %s107 = sphi 0, %s91
  $region4: #{tpu_custom_call.1} parent=0 // loop_header_branch
    %12 = sbr.rel (%p10) target = $region8
  $region5: #{tpu_custom_call.1} parent=0 // loop_body
    %s14 = ssub.s32 %s9, 1
    %s15 = ssub.s32 %s9, 2
    %s16 = sadd.s32 %s9, 1
    %s17 = ssub.s32 %s9, %s16
    %p18 = scmp.eq.s32.totalorder %s17, 0
    %s20 = sadd.s32 %s19, 1
    %s21 = scalar_select %p18, %s19, %s20
    %p24 = pneg %p18
    %p25 = scmp.eq.s32.totalorder %s9, 1
    %p26 = por %p24, %p25
    %p27 = scmp.ne.s32.totalorder %s19, %s22
    %p28 = scmp.eq.s32.totalorder %s9, 0
    %p29 = por %p27, %p28
    %p30 = scmp.ne.s32.totalorder %s19, %s22
    %p31 = scmp.eq.s32.totalorder %s14, 1
    %p32 = por %p30, %p31
    %p33 = scmp.ne.s32.totalorder %s22, %s23
    %p34 = scmp.eq.s32.totalorder %s14, 0
    %p35 = por %p33, %p34
    %p36 = scmp.ne.s32.totalorder %s22, %s23
    %p37 = scmp.eq.s32.totalorder %s15, 1
    %p38 = por %p36, %p37
    %p40 = scmp.ne.s32.totalorder %s23, %s39
    %p41 = scmp.eq.s32.totalorder %s15, 0
    %p42 = por %p40, %p41
    %s44 = sadd.s32 %s43, 1
    %p47 = scmp.eq.s32.totalorder %s9, 1
    %p48 = scmp.ne.s32.totalorder %s43, %s45
    %p49 = scmp.eq.s32.totalorder %s9, 0
    %p50 = por %p48, %p49
    %p51 = scmp.ne.s32.totalorder %s43, %s45
    %p52 = scmp.eq.s32.totalorder %s14, 1
    %p53 = por %p51, %p52
    %p54 = scmp.ne.s32.totalorder %s45, %s46
    %p55 = scmp.eq.s32.totalorder %s14, 0
    %p56 = por %p54, %p55
    %p57 = scmp.ne.s32.totalorder %s45, %s46
    %p58 = scmp.eq.s32.totalorder %s15, 1
    %p59 = por %p57, %p58
    %p61 = scmp.ne.s32.totalorder %s46, %s60
    %p62 = scmp.eq.s32.totalorder %s15, 0
    %p63 = por %p61, %p62
    %s65 = sadd.s32 %s64, 1
    %p68 = scmp.eq.s32.totalorder %s9, 1
    %p69 = scmp.ne.s32.totalorder %s64, %s66
    %p70 = scmp.eq.s32.totalorder %s9, 0
    %p71 = por %p69, %p70
    %p72 = scmp.ne.s32.totalorder %s64, %s66
    %p73 = scmp.eq.s32.totalorder %s14, 1
    %p74 = por %p72, %p73
    %p75 = scmp.ne.s32.totalorder %s66, %s67
    %p76 = scmp.eq.s32.totalorder %s14, 0
    %p77 = por %p75, %p76
    %p78 = scmp.ne.s32.totalorder %s66, %s67
    %p79 = scmp.eq.s32.totalorder %s15, 1
    %p80 = por %p78, %p79
    %p82 = scmp.ne.s32.totalorder %s67, %s81
    %p83 = scmp.eq.s32.totalorder %s15, 0
    %p84 = por %p82, %p83
    %s85 = ssub.s32 %s9, %s16
    %p86 = scmp.eq.s32.totalorder %s85, 0
    %s88 = sadd.s32 %s87, 1
    %s89 = scalar_select %p86, %s87, %s88
    %p92 = pneg %p86
    %p93 = scmp.eq.s32.totalorder %s9, 1
    %p94 = por %p92, %p93
    %p95 = scmp.ne.s32.totalorder %s87, %s90
    %p96 = scmp.eq.s32.totalorder %s9, 0
    %p97 = por %p95, %p96
    %p98 = scmp.ne.s32.totalorder %s87, %s90
    %p99 = scmp.eq.s32.totalorder %s14, 1
    %p100 = por %p98, %p99
    %p101 = scmp.ne.s32.totalorder %s90, %s91
    %p102 = scmp.eq.s32.totalorder %s14, 0
    %p103 = por %p101, %p102
    %p104 = scmp.ne.s32.totalorder %s90, %s91
    %p105 = scmp.eq.s32.totalorder %s15, 1
    %p106 = por %p104, %p105
    %p108 = scmp.ne.s32.totalorder %s91, %s107
    %p109 = scmp.eq.s32.totalorder %s15, 0
    %p110 = por %p108, %p109
    %p111 = scmp.le.s32.totalorder 1, %s9
    %p112 = scmp.lt.s32.totalorder %s9, 3
    %p113 = pnand %p111, %p112
    %p114 = pneg %p113
    // Predicated region
    $region9: #{tpu_custom_call.1} parent=5 // pred_check
      _
    $region10: #{tpu_custom_call.1} parent=5 // pred_check_branch
      %116 = sbr.rel (%p113) target = $region12
    $region11: #{tpu_custom_call.1} parent=5 // pred_region
      %s117 = ssub.s32 %s9, 1
      // Predicated region
      $region13: #{tpu_custom_call.1} parent=11 // pred_check
        %p118 = pneg %p56
      $region14: #{tpu_custom_call.1} parent=11 // pred_check_branch
        %120 = sbr.rel (%p118) target = $region16
      $region15: #{tpu_custom_call.1} parent=11 // pred_region
        _
      $region16: #{tpu_custom_call.1} parent=11 // pred_fallthru
        _
      // Predicated region
      $region17: #{tpu_custom_call.1} parent=11 // pred_check
        %p121 = pneg %p77
      $region18: #{tpu_custom_call.1} parent=11 // pred_check_branch
        %123 = sbr.rel (%p121) target = $region20
      $region19: #{tpu_custom_call.1} parent=11 // pred_region
        _
      $region20: #{tpu_custom_call.1} parent=11 // pred_fallthru
        _
    $region12: #{tpu_custom_call.1} parent=5 // pred_fallthru
      _
    %p124 = scmp.lt.s32.totalorder %s9, 2
    // Predicated region
    $region21: #{tpu_custom_call.1} parent=5 // pred_check
      %p125 = pneg %p124
    $region22: #{tpu_custom_call.1} parent=5 // pred_check_branch
      %127 = sbr.rel (%p125) target = $region24
    $region23: #{tpu_custom_call.1} parent=5 // pred_region
      // Predicated region
      $region25: #{tpu_custom_call.1} parent=23 // pred_check
        %p128 = pneg %p29
      $region26: #{tpu_custom_call.1} parent=23 // pred_check_branch
        %130 = sbr.rel (%p128) target = $region28
      $region27: #{tpu_custom_call.1} parent=23 // pred_region
        %p131 = scmp.lt.s32.totalorder %s9, 1
        %s132 = scalar_select %p131, %s9, 1
        %s133 = smul.addr %s132, 128
        %s134 = smul.addr %s133, 8
        %s135 = scalar_lea.vmem %s0, %s134
      $region28: #{tpu_custom_call.1} parent=23 // pred_fallthru
        _
    $region24: #{tpu_custom_call.1} parent=5 // pred_fallthru
      _
    %p136 = scmp.le.s32.totalorder 1, %s9
    %p137 = scmp.lt.s32.totalorder %s9, 3
    %p138 = pnand %p136, %p137
    %p139 = pneg %p138
    // Predicated region
    $region29: #{tpu_custom_call.1} parent=5 // pred_check
      _
    $region30: #{tpu_custom_call.1} parent=5 // pred_check_branch
      %141 = sbr.rel (%p138) target = $region32
    $region31: #{tpu_custom_call.1} parent=5 // pred_region
      %s142 = ssub.s32 %s9, 1
      %p143 = scmp.lt.s32.totalorder %s14, 1
      %s144 = scalar_select %p143, %s14, 1
      %s145 = smul.addr %s144, 128
      %s146 = smul.addr %s145, 8
      %s147 = scalar_lea.vmem %s0, %s146
      %p148 = pneg %p35
      %p149 = pneg %p32
      %p150 = pneg %p56
      %p151 = pneg %p53
      %p152 = pneg %p77
      %p153 = pneg %p74
      %p154 = pneg %p103
      %p155 = pneg %p100
      %p156 = scmp.lt.s32.totalorder %s14, 1
      %s157 = scalar_select %p156, %s14, 1
      %s158 = smul.addr %s157, 128
      %s159 = smul.addr %s158, 8
      %s160 = scalar_lea.vmem %s3, %s159
      %p161 = scmp.lt.s32.totalorder %s14, 1
      %s162 = scalar_select %p161, %s14, 1
      %s163 = smul.addr %s162, 128
      %s164 = smul.addr %s163, 8
      %s165 = scalar_lea.vmem %s0, %s164
      %p166 = scmp.lt.s32.totalorder %s14, 1
      %s167 = scalar_select %p166, %s14, 1
      %s168 = smul.addr %s167, 128
      %s169 = smul.addr %s168, 8
      %s170 = scalar_lea.vmem %s3, %s169
      %v172 = vld [vmem:[%s165] sm:$0xff]
      %v173 = vld [vmem:[%s165 + $0x8] sm:$0xff]
      %v174 = vld [vmem:[%s165 + $0x10] sm:$0xff]
      %v175 = vld [vmem:[%s165 + $0x18] sm:$0xff]
      %v176 = vld [vmem:[%s165 + $0x20] sm:$0xff]
      %v177 = vld [vmem:[%s165 + $0x28] sm:$0xff]
      %v178 = vld [vmem:[%s165 + $0x30] sm:$0xff]
      %v179 = vld [vmem:[%s165 + $0x38] sm:$0xff]
      %v180 = vld [vmem:[%s165 + $0x40] sm:$0xff]
      %v181 = vld [vmem:[%s165 + $0x48] sm:$0xff]
      %v182 = vld [vmem:[%s165 + $0x50] sm:$0xff]
      %v183 = vld [vmem:[%s165 + $0x58] sm:$0xff]
      %v184 = vld [vmem:[%s165 + $0x60] sm:$0xff]
      %v185 = vld [vmem:[%s165 + $0x68] sm:$0xff]
      %v186 = vld [vmem:[%s165 + $0x70] sm:$0xff]
      %v187 = vld [vmem:[%s165 + $0x78] sm:$0xff]
      %v188 = vld [vmem:[%s165 + $0x80] sm:$0xff]
      %v189 = vld [vmem:[%s165 + $0x88] sm:$0xff]
      %v190 = vld [vmem:[%s165 + $0x90] sm:$0xff]
      %v191 = vld [vmem:[%s165 + $0x98] sm:$0xff]
      %v192 = vld [vmem:[%s165 + $0xa0] sm:$0xff]
      %v193 = vld [vmem:[%s165 + $0xa8] sm:$0xff]
      %v194 = vld [vmem:[%s165 + $0xb0] sm:$0xff]
      %v195 = vld [vmem:[%s165 + $0xb8] sm:$0xff]
      %v196 = vld [vmem:[%s165 + $0xc0] sm:$0xff]
      %v197 = vld [vmem:[%s165 + $0xc8] sm:$0xff]
      %v198 = vld [vmem:[%s165 + $0xd0] sm:$0xff]
      %v199 = vld [vmem:[%s165 + $0xd8] sm:$0xff]
      %v200 = vld [vmem:[%s165 + $0xe0] sm:$0xff]
      %v201 = vld [vmem:[%s165 + $0xe8] sm:$0xff]
      %v202 = vld [vmem:[%s165 + $0xf0] sm:$0xff]
      %v203 = vld [vmem:[%s165 + $0xf8] sm:$0xff]
      %v204 = vld [vmem:[%s165 + $0x100] sm:$0xff]
      %v205 = vld [vmem:[%s165 + $0x108] sm:$0xff]
      %v206 = vld [vmem:[%s165 + $0x110] sm:$0xff]
      %v207 = vld [vmem:[%s165 + $0x118] sm:$0xff]
      %v208 = vld [vmem:[%s165 + $0x120] sm:$0xff]
      %v209 = vld [vmem:[%s165 + $0x128] sm:$0xff]
      %v210 = vld [vmem:[%s165 + $0x130] sm:$0xff]
      %v211 = vld [vmem:[%s165 + $0x138] sm:$0xff]
      %v212 = vld [vmem:[%s165 + $0x140] sm:$0xff]
      %v213 = vld [vmem:[%s165 + $0x148] sm:$0xff]
      %v214 = vld [vmem:[%s165 + $0x150] sm:$0xff]
      %v215 = vld [vmem:[%s165 + $0x158] sm:$0xff]
      %v216 = vld [vmem:[%s165 + $0x160] sm:$0xff]
      %v217 = vld [vmem:[%s165 + $0x168] sm:$0xff]
      %v218 = vld [vmem:[%s165 + $0x170] sm:$0xff]
      %v219 = vld [vmem:[%s165 + $0x178] sm:$0xff]
      %v220 = vld [vmem:[%s165 + $0x180] sm:$0xff]
      %v221 = vld [vmem:[%s165 + $0x188] sm:$0xff]
      %v222 = vld [vmem:[%s165 + $0x190] sm:$0xff]
      %v223 = vld [vmem:[%s165 + $0x198] sm:$0xff]
      %v224 = vld [vmem:[%s165 + $0x1a0] sm:$0xff]
      %v225 = vld [vmem:[%s165 + $0x1a8] sm:$0xff]
      %v226 = vld [vmem:[%s165 + $0x1b0] sm:$0xff]
      %v227 = vld [vmem:[%s165 + $0x1b8] sm:$0xff]
      %v228 = vld [vmem:[%s165 + $0x1c0] sm:$0xff]
      %v229 = vld [vmem:[%s165 + $0x1c8] sm:$0xff]
      %v230 = vld [vmem:[%s165 + $0x1d0] sm:$0xff]
      %v231 = vld [vmem:[%s165 + $0x1d8] sm:$0xff]
      %v232 = vld [vmem:[%s165 + $0x1e0] sm:$0xff]
      %v233 = vld [vmem:[%s165 + $0x1e8] sm:$0xff]
      %v234 = vld [vmem:[%s165 + $0x1f0] sm:$0xff]
      %v235 = vld [vmem:[%s165 + $0x1f8] sm:$0xff]
      %v236 = vld [vmem:[%s165 + $0x200] sm:$0xff]
      %v237 = vld [vmem:[%s165 + $0x208] sm:$0xff]
      %v238 = vld [vmem:[%s165 + $0x210] sm:$0xff]
      %v239 = vld [vmem:[%s165 + $0x218] sm:$0xff]
      %v240 = vld [vmem:[%s165 + $0x220] sm:$0xff]
      %v241 = vld [vmem:[%s165 + $0x228] sm:$0xff]
      %v242 = vld [vmem:[%s165 + $0x230] sm:$0xff]
      %v243 = vld [vmem:[%s165 + $0x238] sm:$0xff]
      %v244 = vld [vmem:[%s165 + $0x240] sm:$0xff]
      %v245 = vld [vmem:[%s165 + $0x248] sm:$0xff]
      %v246 = vld [vmem:[%s165 + $0x250] sm:$0xff]
      %v247 = vld [vmem:[%s165 + $0x258] sm:$0xff]
      %v248 = vld [vmem:[%s165 + $0x260] sm:$0xff]
      %v249 = vld [vmem:[%s165 + $0x268] sm:$0xff]
      %v250 = vld [vmem:[%s165 + $0x270] sm:$0xff]
      %v251 = vld [vmem:[%s165 + $0x278] sm:$0xff]
      %v252 = vld [vmem:[%s165 + $0x280] sm:$0xff]
      %v253 = vld [vmem:[%s165 + $0x288] sm:$0xff]
      %v254 = vld [vmem:[%s165 + $0x290] sm:$0xff]
      %v255 = vld [vmem:[%s165 + $0x298] sm:$0xff]
      %v256 = vld [vmem:[%s165 + $0x2a0] sm:$0xff]
      %v257 = vld [vmem:[%s165 + $0x2a8] sm:$0xff]
      %v258 = vld [vmem:[%s165 + $0x2b0] sm:$0xff]
      %v259 = vld [vmem:[%s165 + $0x2b8] sm:$0xff]
      %v260 = vld [vmem:[%s165 + $0x2c0] sm:$0xff]
      %v261 = vld [vmem:[%s165 + $0x2c8] sm:$0xff]
      %v262 = vld [vmem:[%s165 + $0x2d0] sm:$0xff]
      %v263 = vld [vmem:[%s165 + $0x2d8] sm:$0xff]
      %v264 = vld [vmem:[%s165 + $0x2e0] sm:$0xff]
      %v265 = vld [vmem:[%s165 + $0x2e8] sm:$0xff]
      %v266 = vld [vmem:[%s165 + $0x2f0] sm:$0xff]
      %v267 = vld [vmem:[%s165 + $0x2f8] sm:$0xff]
      %v268 = vld [vmem:[%s165 + $0x300] sm:$0xff]
      %v269 = vld [vmem:[%s165 + $0x308] sm:$0xff]
      %v270 = vld [vmem:[%s165 + $0x310] sm:$0xff]
      %v271 = vld [vmem:[%s165 + $0x318] sm:$0xff]
      %v272 = vld [vmem:[%s165 + $0x320] sm:$0xff]
      %v273 = vld [vmem:[%s165 + $0x328] sm:$0xff]
      %v274 = vld [vmem:[%s165 + $0x330] sm:$0xff]
      %v275 = vld [vmem:[%s165 + $0x338] sm:$0xff]
      %v276 = vld [vmem:[%s165 + $0x340] sm:$0xff]
      %v277 = vld [vmem:[%s165 + $0x348] sm:$0xff]
      %v278 = vld [vmem:[%s165 + $0x350] sm:$0xff]
      %v279 = vld [vmem:[%s165 + $0x358] sm:$0xff]
      %v280 = vld [vmem:[%s165 + $0x360] sm:$0xff]
      %v281 = vld [vmem:[%s165 + $0x368] sm:$0xff]
      %v282 = vld [vmem:[%s165 + $0x370] sm:$0xff]
      %v283 = vld [vmem:[%s165 + $0x378] sm:$0xff]
      %v284 = vld [vmem:[%s165 + $0x380] sm:$0xff]
      %v285 = vld [vmem:[%s165 + $0x388] sm:$0xff]
      %v286 = vld [vmem:[%s165 + $0x390] sm:$0xff]
      %v287 = vld [vmem:[%s165 + $0x398] sm:$0xff]
      %v288 = vld [vmem:[%s165 + $0x3a0] sm:$0xff]
      %v289 = vld [vmem:[%s165 + $0x3a8] sm:$0xff]
      %v290 = vld [vmem:[%s165 + $0x3b0] sm:$0xff]
      %v291 = vld [vmem:[%s165 + $0x3b8] sm:$0xff]
      %v292 = vld [vmem:[%s165 + $0x3c0] sm:$0xff]
      %v293 = vld [vmem:[%s165 + $0x3c8] sm:$0xff]
      %v294 = vld [vmem:[%s165 + $0x3d0] sm:$0xff]
      %v295 = vld [vmem:[%s165 + $0x3d8] sm:$0xff]
      %v296 = vld [vmem:[%s165 + $0x3e0] sm:$0xff]
      %v297 = vld [vmem:[%s165 + $0x3e8] sm:$0xff]
      %v298 = vld [vmem:[%s165 + $0x3f0] sm:$0xff]
      %v299 = vld [vmem:[%s165 + $0x3f8] sm:$0xff]
      %v332 = vrot.slane %v176, 1
      %v333 = vrot.slane %v172, 1
      %v334 = vrot.slane %v180, 1
      %v335 = vrot.slane %v184, 1
      %v336 = vrot.slane %v188, 1
      %v337 = vrot.slane %v192, 1
      %v338 = vrot.slane %v196, 1
      %v339 = vrot.slane %v200, 1
      %v340 = vrot.slane %v204, 1
      %v341 = vrot.slane %v208, 1
      %v342 = vrot.slane %v212, 1
      %v343 = vrot.slane %v216, 1
      %v344 = vrot.slane %v220, 1
      %v345 = vrot.slane %v224, 1
      %v346 = vrot.slane %v228, 1
      %v347 = vrot.slane %v232, 1
      %v348 = vrot.slane %v236, 1
      %v349 = vrot.slane %v240, 1
      %v350 = vrot.slane %v244, 1
      %v351 = vrot.slane %v248, 1
      %v352 = vrot.slane %v252, 1
      %v353 = vrot.slane %v256, 1
      %v354 = vrot.slane %v260, 1
      %v355 = vrot.slane %v264, 1
      %v356 = vrot.slane %v268, 1
      %v357 = vrot.slane %v272, 1
      %v358 = vrot.slane %v276, 1
      %v359 = vrot.slane %v280, 1
      %v360 = vrot.slane %v284, 1
      %v361 = vrot.slane %v288, 1
      %v362 = vrot.slane %v292, 1
      %v363 = vrot.slane %v296, 1
      %vm492 = vcmask 1040384
      %v493 = vrot.slane %v176, 7
      %v494 = vrot.slane %v177, 7
      %v495 = vsel %vm492, %v493, %v494
      %v496 = vrot.slane %v178, 7
      %v497 = vsel %vm492, %v494, %v496
      %v498 = vrot.slane %v179, 7
      %v499 = vsel %vm492, %v496, %v498
      %v500 = vrot.slane %v172, 7
      %v501 = vrot.slane %v173, 7
      %v502 = vsel %vm492, %v500, %v501
      %v503 = vrot.slane %v174, 7
      %v504 = vsel %vm492, %v501, %v503
      %v505 = vrot.slane %v175, 7
      %v506 = vsel %vm492, %v503, %v505
      %v507 = vrot.slane %v180, 7
      %v508 = vrot.slane %v181, 7
      %v509 = vsel %vm492, %v507, %v508
      %v510 = vrot.slane %v182, 7
      %v511 = vsel %vm492, %v508, %v510
      %v512 = vrot.slane %v183, 7
      %v513 = vsel %vm492, %v510, %v512
      %v514 = vrot.slane %v184, 7
      %v515 = vrot.slane %v185, 7
      %v516 = vsel %vm492, %v514, %v515
      %v517 = vrot.slane %v186, 7
      %v518 = vsel %vm492, %v515, %v517
      %v519 = vrot.slane %v187, 7
      %v520 = vsel %vm492, %v517, %v519
      %v521 = vrot.slane %v188, 7
      %v522 = vrot.slane %v189, 7
      %v523 = vsel %vm492, %v521, %v522
      %v524 = vrot.slane %v190, 7
      %v525 = vsel %vm492, %v522, %v524
      %v526 = vrot.slane %v191, 7
      %v527 = vsel %vm492, %v524, %v526
      %v528 = vrot.slane %v192, 7
      %v529 = vrot.slane %v193, 7
      %v530 = vsel %vm492, %v528, %v529
      %v531 = vrot.slane %v194, 7
      %v532 = vsel %vm492, %v529, %v531
      %v533 = vrot.slane %v195, 7
      %v534 = vsel %vm492, %v531, %v533
      %v535 = vrot.slane %v196, 7
      %v536 = vrot.slane %v197, 7
      %v537 = vsel %vm492, %v535, %v536
      %v538 = vrot.slane %v198, 7
      %v539 = vsel %vm492, %v536, %v538
      %v540 = vrot.slane %v199, 7
      %v541 = vsel %vm492, %v538, %v540
      %v542 = vrot.slane %v200, 7
      %v543 = vrot.slane %v201, 7
      %v544 = vsel %vm492, %v542, %v543
      %v545 = vrot.slane %v202, 7
      %v546 = vsel %vm492, %v543, %v545
      %v547 = vrot.slane %v203, 7
      %v548 = vsel %vm492, %v545, %v547
      %v549 = vrot.slane %v204, 7
      %v550 = vrot.slane %v205, 7
      %v551 = vsel %vm492, %v549, %v550
      %v552 = vrot.slane %v206, 7
      %v553 = vsel %vm492, %v550, %v552
      %v554 = vrot.slane %v207, 7
      %v555 = vsel %vm492, %v552, %v554
      %v556 = vrot.slane %v208, 7
      %v557 = vrot.slane %v209, 7
      %v558 = vsel %vm492, %v556, %v557
      %v559 = vrot.slane %v210, 7
      %v560 = vsel %vm492, %v557, %v559
      %v561 = vrot.slane %v211, 7
      %v562 = vsel %vm492, %v559, %v561
      %v563 = vrot.slane %v212, 7
      %v564 = vrot.slane %v213, 7
      %v565 = vsel %vm492, %v563, %v564
      %v566 = vrot.slane %v214, 7
      %v567 = vsel %vm492, %v564, %v566
      %v568 = vrot.slane %v215, 7
      %v569 = vsel %vm492, %v566, %v568
      %v570 = vrot.slane %v216, 7
      %v571 = vrot.slane %v217, 7
      %v572 = vsel %vm492, %v570, %v571
      %v573 = vrot.slane %v218, 7
      %v574 = vsel %vm492, %v571, %v573
      %v575 = vrot.slane %v219, 7
      %v576 = vsel %vm492, %v573, %v575
      %v577 = vrot.slane %v220, 7
      %v578 = vrot.slane %v221, 7
      %v579 = vsel %vm492, %v577, %v578
      %v580 = vrot.slane %v222, 7
      %v581 = vsel %vm492, %v578, %v580
      %v582 = vrot.slane %v223, 7
      %v583 = vsel %vm492, %v580, %v582
      %v584 = vrot.slane %v224, 7
      %v585 = vrot.slane %v225, 7
      %v586 = vsel %vm492, %v584, %v585
      %v587 = vrot.slane %v226, 7
      %v588 = vsel %vm492, %v585, %v587
      %v589 = vrot.slane %v227, 7
      %v590 = vsel %vm492, %v587, %v589
      %v591 = vrot.slane %v228, 7
      %v592 = vrot.slane %v229, 7
      %v593 = vsel %vm492, %v591, %v592
      %v594 = vrot.slane %v230, 7
      %v595 = vsel %vm492, %v592, %v594
      %v596 = vrot.slane %v231, 7
      %v597 = vsel %vm492, %v594, %v596
      %v598 = vrot.slane %v232, 7
      %v599 = vrot.slane %v233, 7
      %v600 = vsel %vm492, %v598, %v599
      %v601 = vrot.slane %v234, 7
      %v602 = vsel %vm492, %v599, %v601
      %v603 = vrot.slane %v235, 7
      %v604 = vsel %vm492, %v601, %v603
      %v605 = vrot.slane %v236, 7
      %v606 = vrot.slane %v237, 7
      %v607 = vsel %vm492, %v605, %v606
      %v608 = vrot.slane %v238, 7
      %v609 = vsel %vm492, %v606, %v608
      %v610 = vrot.slane %v239, 7
      %v611 = vsel %vm492, %v608, %v610
      %v612 = vrot.slane %v240, 7
      %v613 = vrot.slane %v241, 7
      %v614 = vsel %vm492, %v612, %v613
      %v615 = vrot.slane %v242, 7
      %v616 = vsel %vm492, %v613, %v615
      %v617 = vrot.slane %v243, 7
      %v618 = vsel %vm492, %v615, %v617
      %v619 = vrot.slane %v244, 7
      %v620 = vrot.slane %v245, 7
      %v621 = vsel %vm492, %v619, %v620
      %v622 = vrot.slane %v246, 7
      %v623 = vsel %vm492, %v620, %v622
      %v624 = vrot.slane %v247, 7
      %v625 = vsel %vm492, %v622, %v624
      %v626 = vrot.slane %v248, 7
      %v627 = vrot.slane %v249, 7
      %v628 = vsel %vm492, %v626, %v627
      %v629 = vrot.slane %v250, 7
      %v630 = vsel %vm492, %v627, %v629
      %v631 = vrot.slane %v251, 7
      %v632 = vsel %vm492, %v629, %v631
      %v633 = vrot.slane %v252, 7
      %v634 = vrot.slane %v253, 7
      %v635 = vsel %vm492, %v633, %v634
      %v636 = vrot.slane %v254, 7
      %v637 = vsel %vm492, %v634, %v636
      %v638 = vrot.slane %v255, 7
      %v639 = vsel %vm492, %v636, %v638
      %v640 = vrot.slane %v256, 7
      %v641 = vrot.slane %v257, 7
      %v642 = vsel %vm492, %v640, %v641
      %v643 = vrot.slane %v258, 7
      %v644 = vsel %vm492, %v641, %v643
      %v645 = vrot.slane %v259, 7
      %v646 = vsel %vm492, %v643, %v645
      %v647 = vrot.slane %v260, 7
      %v648 = vrot.slane %v261, 7
      %v649 = vsel %vm492, %v647, %v648
      %v650 = vrot.slane %v262, 7
      %v651 = vsel %vm492, %v648, %v650
      %v652 = vrot.slane %v263, 7
      %v653 = vsel %vm492, %v650, %v652
      %v654 = vrot.slane %v264, 7
      %v655 = vrot.slane %v265, 7
      %v656 = vsel %vm492, %v654, %v655
      %v657 = vrot.slane %v266, 7
      %v658 = vsel %vm492, %v655, %v657
      %v659 = vrot.slane %v267, 7
      %v660 = vsel %vm492, %v657, %v659
      %v661 = vrot.slane %v268, 7
      %v662 = vrot.slane %v269, 7
      %v663 = vsel %vm492, %v661, %v662
      %v664 = vrot.slane %v270, 7
      %v665 = vsel %vm492, %v662, %v664
      %v666 = vrot.slane %v271, 7
      %v667 = vsel %vm492, %v664, %v666
      %v668 = vrot.slane %v272, 7
      %v669 = vrot.slane %v273, 7
      %v670 = vsel %vm492, %v668, %v669
      %v671 = vrot.slane %v274, 7
      %v672 = vsel %vm492, %v669, %v671
      %v673 = vrot.slane %v275, 7
      %v674 = vsel %vm492, %v671, %v673
      %v675 = vrot.slane %v276, 7
      %v676 = vrot.slane %v277, 7
      %v677 = vsel %vm492, %v675, %v676
      %v678 = vrot.slane %v278, 7
      %v679 = vsel %vm492, %v676, %v678
      %v680 = vrot.slane %v279, 7
      %v681 = vsel %vm492, %v678, %v680
      %v682 = vrot.slane %v280, 7
      %v683 = vrot.slane %v281, 7
      %v684 = vsel %vm492, %v682, %v683
      %v685 = vrot.slane %v282, 7
      %v686 = vsel %vm492, %v683, %v685
      %v687 = vrot.slane %v283, 7
      %v688 = vsel %vm492, %v685, %v687
      %v689 = vrot.slane %v284, 7
      %v690 = vrot.slane %v285, 7
      %v691 = vsel %vm492, %v689, %v690
      %v692 = vrot.slane %v286, 7
      %v693 = vsel %vm492, %v690, %v692
      %v694 = vrot.slane %v287, 7
      %v695 = vsel %vm492, %v692, %v694
      %v696 = vrot.slane %v288, 7
      %v697 = vrot.slane %v289, 7
      %v698 = vsel %vm492, %v696, %v697
      %v699 = vrot.slane %v290, 7
      %v700 = vsel %vm492, %v697, %v699
      %v701 = vrot.slane %v291, 7
      %v702 = vsel %vm492, %v699, %v701
      %v703 = vrot.slane %v292, 7
      %v704 = vrot.slane %v293, 7
      %v705 = vsel %vm492, %v703, %v704
      %v706 = vrot.slane %v294, 7
      %v707 = vsel %vm492, %v704, %v706
      %v708 = vrot.slane %v295, 7
      %v709 = vsel %vm492, %v706, %v708
      %v710 = vrot.slane %v296, 7
      %v711 = vrot.slane %v297, 7
      %v712 = vsel %vm492, %v710, %v711
      %v713 = vrot.slane %v298, 7
      %v714 = vsel %vm492, %v711, %v713
      %v715 = vrot.slane %v299, 7
      %v716 = vsel %vm492, %v713, %v715
      %v877 = vrot.slane %v179, 5
      %v878 = vrot.slane %v175, 5
      %v879 = vrot.slane %v183, 5
      %v880 = vrot.slane %v187, 5
      %v881 = vrot.slane %v191, 5
      %v882 = vrot.slane %v195, 5
      %v883 = vrot.slane %v199, 5
      %v884 = vrot.slane %v203, 5
      %v885 = vrot.slane %v207, 5
      %v886 = vrot.slane %v211, 5
      %v887 = vrot.slane %v215, 5
      %v888 = vrot.slane %v219, 5
      %v889 = vrot.slane %v223, 5
      %v890 = vrot.slane %v227, 5
      %v891 = vrot.slane %v231, 5
      %v892 = vrot.slane %v235, 5
      %v893 = vrot.slane %v239, 5
      %v894 = vrot.slane %v243, 5
      %v895 = vrot.slane %v247, 5
      %v896 = vrot.slane %v251, 5
      %v897 = vrot.slane %v255, 5
      %v898 = vrot.slane %v259, 5
      %v899 = vrot.slane %v263, 5
      %v900 = vrot.slane %v267, 5
      %v901 = vrot.slane %v271, 5
      %v902 = vrot.slane %v275, 5
      %v903 = vrot.slane %v279, 5
      %v904 = vrot.slane %v283, 5
      %v905 = vrot.slane %v287, 5
      %v906 = vrot.slane %v291, 5
      %v907 = vrot.slane %v295, 5
      %v908 = vrot.slane %v299, 5
      %v941 = vsel %vm492, %v332, %v493
      %v942 = vsel %vm492, %v333, %v500
      %v943 = vsel %vm492, %v334, %v507
      %v944 = vsel %vm492, %v335, %v514
      %v945 = vsel %vm492, %v336, %v521
      %v946 = vsel %vm492, %v337, %v528
      %v947 = vsel %vm492, %v338, %v535
      %v948 = vsel %vm492, %v339, %v542
      %v949 = vsel %vm492, %v340, %v549
      %v950 = vsel %vm492, %v341, %v556
      %v951 = vsel %vm492, %v342, %v563
      %v952 = vsel %vm492, %v343, %v570
      %v953 = vsel %vm492, %v344, %v577
      %v954 = vsel %vm492, %v345, %v584
      %v955 = vsel %vm492, %v346, %v591
      %v956 = vsel %vm492, %v347, %v598
      %v957 = vsel %vm492, %v348, %v605
      %v958 = vsel %vm492, %v349, %v612
      %v959 = vsel %vm492, %v350, %v619
      %v960 = vsel %vm492, %v351, %v626
      %v961 = vsel %vm492, %v352, %v633
      %v962 = vsel %vm492, %v353, %v640
      %v963 = vsel %vm492, %v354, %v647
      %v964 = vsel %vm492, %v355, %v654
      %v965 = vsel %vm492, %v356, %v661
      %v966 = vsel %vm492, %v357, %v668
      %v967 = vsel %vm492, %v358, %v675
      %v968 = vsel %vm492, %v359, %v682
      %v969 = vsel %vm492, %v360, %v689
      %v970 = vsel %vm492, %v361, %v696
      %v971 = vsel %vm492, %v362, %v703
      %v972 = vsel %vm492, %v363, %v710
      %v973 = vsel %vm492, %v498, %v877
      %v974 = vsel %vm492, %v505, %v878
      %v975 = vsel %vm492, %v512, %v879
      %v976 = vsel %vm492, %v519, %v880
      %v977 = vsel %vm492, %v526, %v881
      %v978 = vsel %vm492, %v533, %v882
      %v979 = vsel %vm492, %v540, %v883
      %v980 = vsel %vm492, %v547, %v884
      %v981 = vsel %vm492, %v554, %v885
      %v982 = vsel %vm492, %v561, %v886
      %v983 = vsel %vm492, %v568, %v887
      %v984 = vsel %vm492, %v575, %v888
      %v985 = vsel %vm492, %v582, %v889
      %v986 = vsel %vm492, %v589, %v890
      %v987 = vsel %vm492, %v596, %v891
      %v988 = vsel %vm492, %v603, %v892
      %v989 = vsel %vm492, %v610, %v893
      %v990 = vsel %vm492, %v617, %v894
      %v991 = vsel %vm492, %v624, %v895
      %v992 = vsel %vm492, %v631, %v896
      %v993 = vsel %vm492, %v638, %v897
      %v994 = vsel %vm492, %v645, %v898
      %v995 = vsel %vm492, %v652, %v899
      %v996 = vsel %vm492, %v659, %v900
      %v997 = vsel %vm492, %v666, %v901
      %v998 = vsel %vm492, %v673, %v902
      %v999 = vsel %vm492, %v680, %v903
      %v1000 = vsel %vm492, %v687, %v904
      %v1001 = vsel %vm492, %v694, %v905
      %v1002 = vsel %vm492, %v701, %v906
      %v1003 = vsel %vm492, %v708, %v907
      %v1004 = vsel %vm492, %v715, %v908
      %vm1069 = vcmask 1046528
      %v1070 = vrot.slane %v941, 1
      %v1071 = vrot.slane %v495, 1
      %v1072 = vsel %vm1069, %v1070, %v1071
      %v1073 = vrot.slane %v497, 1
      %v1074 = vsel %vm1069, %v1071, %v1073
      %v1075 = vrot.slane %v499, 1
      %v1076 = vsel %vm1069, %v1073, %v1075
      %v1077 = vrot.slane %v973, 1
      %v1078 = vsel %vm1069, %v1075, %v1077
      %v1079 = vrot.slane %v942, 1
      %v1080 = vrot.slane %v502, 1
      %v1081 = vsel %vm1069, %v1079, %v1080
      %v1082 = vrot.slane %v504, 1
      %v1083 = vsel %vm1069, %v1080, %v1082
      %v1084 = vrot.slane %v506, 1
      %v1085 = vsel %vm1069, %v1082, %v1084
      %v1086 = vrot.slane %v974, 1
      %v1087 = vsel %vm1069, %v1084, %v1086
      %v1088 = vrot.slane %v943, 1
      %v1089 = vrot.slane %v509, 1
      %v1090 = vsel %vm1069, %v1088, %v1089
      %v1091 = vrot.slane %v511, 1
      %v1092 = vsel %vm1069, %v1089, %v1091
      %v1093 = vrot.slane %v513, 1
      %v1094 = vsel %vm1069, %v1091, %v1093
      %v1095 = vrot.slane %v975, 1
      %v1096 = vsel %vm1069, %v1093, %v1095
      %v1097 = vrot.slane %v944, 1
      %v1098 = vrot.slane %v516, 1
      %v1099 = vsel %vm1069, %v1097, %v1098
      %v1100 = vrot.slane %v518, 1
      %v1101 = vsel %vm1069, %v1098, %v1100
      %v1102 = vrot.slane %v520, 1
      %v1103 = vsel %vm1069, %v1100, %v1102
      %v1104 = vrot.slane %v976, 1
      %v1105 = vsel %vm1069, %v1102, %v1104
      %v1106 = vrot.slane %v945, 1
      %v1107 = vrot.slane %v523, 1
      %v1108 = vsel %vm1069, %v1106, %v1107
      %v1109 = vrot.slane %v525, 1
      %v1110 = vsel %vm1069, %v1107, %v1109
      %v1111 = vrot.slane %v527, 1
      %v1112 = vsel %vm1069, %v1109, %v1111
      %v1113 = vrot.slane %v977, 1
      %v1114 = vsel %vm1069, %v1111, %v1113
      %v1115 = vrot.slane %v946, 1
      %v1116 = vrot.slane %v530, 1
      %v1117 = vsel %vm1069, %v1115, %v1116
      %v1118 = vrot.slane %v532, 1
      %v1119 = vsel %vm1069, %v1116, %v1118
      %v1120 = vrot.slane %v534, 1
      %v1121 = vsel %vm1069, %v1118, %v1120
      %v1122 = vrot.slane %v978, 1
      %v1123 = vsel %vm1069, %v1120, %v1122
      %v1124 = vrot.slane %v947, 1
      %v1125 = vrot.slane %v537, 1
      %v1126 = vsel %vm1069, %v1124, %v1125
      %v1127 = vrot.slane %v539, 1
      %v1128 = vsel %vm1069, %v1125, %v1127
      %v1129 = vrot.slane %v541, 1
      %v1130 = vsel %vm1069, %v1127, %v1129
      %v1131 = vrot.slane %v979, 1
      %v1132 = vsel %vm1069, %v1129, %v1131
      %v1133 = vrot.slane %v948, 1
      %v1134 = vrot.slane %v544, 1
      %v1135 = vsel %vm1069, %v1133, %v1134
      %v1136 = vrot.slane %v546, 1
      %v1137 = vsel %vm1069, %v1134, %v1136
      %v1138 = vrot.slane %v548, 1
      %v1139 = vsel %vm1069, %v1136, %v1138
      %v1140 = vrot.slane %v980, 1
      %v1141 = vsel %vm1069, %v1138, %v1140
      %v1142 = vrot.slane %v949, 1
      %v1143 = vrot.slane %v551, 1
      %v1144 = vsel %vm1069, %v1142, %v1143
      %v1145 = vrot.slane %v553, 1
      %v1146 = vsel %vm1069, %v1143, %v1145
      %v1147 = vrot.slane %v555, 1
      %v1148 = vsel %vm1069, %v1145, %v1147
      %v1149 = vrot.slane %v981, 1
      %v1150 = vsel %vm1069, %v1147, %v1149
      %v1151 = vrot.slane %v950, 1
      %v1152 = vrot.slane %v558, 1
      %v1153 = vsel %vm1069, %v1151, %v1152
      %v1154 = vrot.slane %v560, 1
      %v1155 = vsel %vm1069, %v1152, %v1154
      %v1156 = vrot.slane %v562, 1
      %v1157 = vsel %vm1069, %v1154, %v1156
      %v1158 = vrot.slane %v982, 1
      %v1159 = vsel %vm1069, %v1156, %v1158
      %v1160 = vrot.slane %v951, 1
      %v1161 = vrot.slane %v565, 1
      %v1162 = vsel %vm1069, %v1160, %v1161
      %v1163 = vrot.slane %v567, 1
      %v1164 = vsel %vm1069, %v1161, %v1163
      %v1165 = vrot.slane %v569, 1
      %v1166 = vsel %vm1069, %v1163, %v1165
      %v1167 = vrot.slane %v983, 1
      %v1168 = vsel %vm1069, %v1165, %v1167
      %v1169 = vrot.slane %v952, 1
      %v1170 = vrot.slane %v572, 1
      %v1171 = vsel %vm1069, %v1169, %v1170
      %v1172 = vrot.slane %v574, 1
      %v1173 = vsel %vm1069, %v1170, %v1172
      %v1174 = vrot.slane %v576, 1
      %v1175 = vsel %vm1069, %v1172, %v1174
      %v1176 = vrot.slane %v984, 1
      %v1177 = vsel %vm1069, %v1174, %v1176
      %v1178 = vrot.slane %v953, 1
      %v1179 = vrot.slane %v579, 1
      %v1180 = vsel %vm1069, %v1178, %v1179
      %v1181 = vrot.slane %v581, 1
      %v1182 = vsel %vm1069, %v1179, %v1181
      %v1183 = vrot.slane %v583, 1
      %v1184 = vsel %vm1069, %v1181, %v1183
      %v1185 = vrot.slane %v985, 1
      %v1186 = vsel %vm1069, %v1183, %v1185
      %v1187 = vrot.slane %v954, 1
      %v1188 = vrot.slane %v586, 1
      %v1189 = vsel %vm1069, %v1187, %v1188
      %v1190 = vrot.slane %v588, 1
      %v1191 = vsel %vm1069, %v1188, %v1190
      %v1192 = vrot.slane %v590, 1
      %v1193 = vsel %vm1069, %v1190, %v1192
      %v1194 = vrot.slane %v986, 1
      %v1195 = vsel %vm1069, %v1192, %v1194
      %v1196 = vrot.slane %v955, 1
      %v1197 = vrot.slane %v593, 1
      %v1198 = vsel %vm1069, %v1196, %v1197
      %v1199 = vrot.slane %v595, 1
      %v1200 = vsel %vm1069, %v1197, %v1199
      %v1201 = vrot.slane %v597, 1
      %v1202 = vsel %vm1069, %v1199, %v1201
      %v1203 = vrot.slane %v987, 1
      %v1204 = vsel %vm1069, %v1201, %v1203
      %v1205 = vrot.slane %v956, 1
      %v1206 = vrot.slane %v600, 1
      %v1207 = vsel %vm1069, %v1205, %v1206
      %v1208 = vrot.slane %v602, 1
      %v1209 = vsel %vm1069, %v1206, %v1208
      %v1210 = vrot.slane %v604, 1
      %v1211 = vsel %vm1069, %v1208, %v1210
      %v1212 = vrot.slane %v988, 1
      %v1213 = vsel %vm1069, %v1210, %v1212
      %v1214 = vrot.slane %v957, 1
      %v1215 = vrot.slane %v607, 1
      %v1216 = vsel %vm1069, %v1214, %v1215
      %v1217 = vrot.slane %v609, 1
      %v1218 = vsel %vm1069, %v1215, %v1217
      %v1219 = vrot.slane %v611, 1
      %v1220 = vsel %vm1069, %v1217, %v1219
      %v1221 = vrot.slane %v989, 1
      %v1222 = vsel %vm1069, %v1219, %v1221
      %v1223 = vrot.slane %v958, 1
      %v1224 = vrot.slane %v614, 1
      %v1225 = vsel %vm1069, %v1223, %v1224
      %v1226 = vrot.slane %v616, 1
      %v1227 = vsel %vm1069, %v1224, %v1226
      %v1228 = vrot.slane %v618, 1
      %v1229 = vsel %vm1069, %v1226, %v1228
      %v1230 = vrot.slane %v990, 1
      %v1231 = vsel %vm1069, %v1228, %v1230
      %v1232 = vrot.slane %v959, 1
      %v1233 = vrot.slane %v621, 1
      %v1234 = vsel %vm1069, %v1232, %v1233
      %v1235 = vrot.slane %v623, 1
      %v1236 = vsel %vm1069, %v1233, %v1235
      %v1237 = vrot.slane %v625, 1
      %v1238 = vsel %vm1069, %v1235, %v1237
      %v1239 = vrot.slane %v991, 1
      %v1240 = vsel %vm1069, %v1237, %v1239
      %v1241 = vrot.slane %v960, 1
      %v1242 = vrot.slane %v628, 1
      %v1243 = vsel %vm1069, %v1241, %v1242
      %v1244 = vrot.slane %v630, 1
      %v1245 = vsel %vm1069, %v1242, %v1244
      %v1246 = vrot.slane %v632, 1
      %v1247 = vsel %vm1069, %v1244, %v1246
      %v1248 = vrot.slane %v992, 1
      %v1249 = vsel %vm1069, %v1246, %v1248
      %v1250 = vrot.slane %v961, 1
      %v1251 = vrot.slane %v635, 1
      %v1252 = vsel %vm1069, %v1250, %v1251
      %v1253 = vrot.slane %v637, 1
      %v1254 = vsel %vm1069, %v1251, %v1253
      %v1255 = vrot.slane %v639, 1
      %v1256 = vsel %vm1069, %v1253, %v1255
      %v1257 = vrot.slane %v993, 1
      %v1258 = vsel %vm1069, %v1255, %v1257
      %v1259 = vrot.slane %v962, 1
      %v1260 = vrot.slane %v642, 1
      %v1261 = vsel %vm1069, %v1259, %v1260
      %v1262 = vrot.slane %v644, 1
      %v1263 = vsel %vm1069, %v1260, %v1262
      %v1264 = vrot.slane %v646, 1
      %v1265 = vsel %vm1069, %v1262, %v1264
      %v1266 = vrot.slane %v994, 1
      %v1267 = vsel %vm1069, %v1264, %v1266
      %v1268 = vrot.slane %v963, 1
      %v1269 = vrot.slane %v649, 1
      %v1270 = vsel %vm1069, %v1268, %v1269
      %v1271 = vrot.slane %v651, 1
      %v1272 = vsel %vm1069, %v1269, %v1271
      %v1273 = vrot.slane %v653, 1
      %v1274 = vsel %vm1069, %v1271, %v1273
      %v1275 = vrot.slane %v995, 1
      %v1276 = vsel %vm1069, %v1273, %v1275
      %v1277 = vrot.slane %v964, 1
      %v1278 = vrot.slane %v656, 1
      %v1279 = vsel %vm1069, %v1277, %v1278
      %v1280 = vrot.slane %v658, 1
      %v1281 = vsel %vm1069, %v1278, %v1280
      %v1282 = vrot.slane %v660, 1
      %v1283 = vsel %vm1069, %v1280, %v1282
      %v1284 = vrot.slane %v996, 1
      %v1285 = vsel %vm1069, %v1282, %v1284
      %v1286 = vrot.slane %v965, 1
      %v1287 = vrot.slane %v663, 1
      %v1288 = vsel %vm1069, %v1286, %v1287
      %v1289 = vrot.slane %v665, 1
      %v1290 = vsel %vm1069, %v1287, %v1289
      %v1291 = vrot.slane %v667, 1
      %v1292 = vsel %vm1069, %v1289, %v1291
      %v1293 = vrot.slane %v997, 1
      %v1294 = vsel %vm1069, %v1291, %v1293
      %v1295 = vrot.slane %v966, 1
      %v1296 = vrot.slane %v670, 1
      %v1297 = vsel %vm1069, %v1295, %v1296
      %v1298 = vrot.slane %v672, 1
      %v1299 = vsel %vm1069, %v1296, %v1298
      %v1300 = vrot.slane %v674, 1
      %v1301 = vsel %vm1069, %v1298, %v1300
      %v1302 = vrot.slane %v998, 1
      %v1303 = vsel %vm1069, %v1300, %v1302
      %v1304 = vrot.slane %v967, 1
      %v1305 = vrot.slane %v677, 1
      %v1306 = vsel %vm1069, %v1304, %v1305
      %v1307 = vrot.slane %v679, 1
      %v1308 = vsel %vm1069, %v1305, %v1307
      %v1309 = vrot.slane %v681, 1
      %v1310 = vsel %vm1069, %v1307, %v1309
      %v1311 = vrot.slane %v999, 1
      %v1312 = vsel %vm1069, %v1309, %v1311
      %v1313 = vrot.slane %v968, 1
      %v1314 = vrot.slane %v684, 1
      %v1315 = vsel %vm1069, %v1313, %v1314
      %v1316 = vrot.slane %v686, 1
      %v1317 = vsel %vm1069, %v1314, %v1316
      %v1318 = vrot.slane %v688, 1
      %v1319 = vsel %vm1069, %v1316, %v1318
      %v1320 = vrot.slane %v1000, 1
      %v1321 = vsel %vm1069, %v1318, %v1320
      %v1322 = vrot.slane %v969, 1
      %v1323 = vrot.slane %v691, 1
      %v1324 = vsel %vm1069, %v1322, %v1323
      %v1325 = vrot.slane %v693, 1
      %v1326 = vsel %vm1069, %v1323, %v1325
      %v1327 = vrot.slane %v695, 1
      %v1328 = vsel %vm1069, %v1325, %v1327
      %v1329 = vrot.slane %v1001, 1
      %v1330 = vsel %vm1069, %v1327, %v1329
      %v1331 = vrot.slane %v970, 1
      %v1332 = vrot.slane %v698, 1
      %v1333 = vsel %vm1069, %v1331, %v1332
      %v1334 = vrot.slane %v700, 1
      %v1335 = vsel %vm1069, %v1332, %v1334
      %v1336 = vrot.slane %v702, 1
      %v1337 = vsel %vm1069, %v1334, %v1336
      %v1338 = vrot.slane %v1002, 1
      %v1339 = vsel %vm1069, %v1336, %v1338
      %v1340 = vrot.slane %v971, 1
      %v1341 = vrot.slane %v705, 1
      %v1342 = vsel %vm1069, %v1340, %v1341
      %v1343 = vrot.slane %v707, 1
      %v1344 = vsel %vm1069, %v1341, %v1343
      %v1345 = vrot.slane %v709, 1
      %v1346 = vsel %vm1069, %v1343, %v1345
      %v1347 = vrot.slane %v1003, 1
      %v1348 = vsel %vm1069, %v1345, %v1347
      %v1349 = vrot.slane %v972, 1
      %v1350 = vrot.slane %v712, 1
      %v1351 = vsel %vm1069, %v1349, %v1350
      %v1352 = vrot.slane %v714, 1
      %v1353 = vsel %vm1069, %v1350, %v1352
      %v1354 = vrot.slane %v716, 1
      %v1355 = vsel %vm1069, %v1352, %v1354
      %v1356 = vrot.slane %v1004, 1
      %v1357 = vsel %vm1069, %v1354, %v1356
      %1358 = vrot.lane.b32.xlu0 %v1072, 4
      %v1359 = vpop.permute.xlu0 %1358
      %1360 = vrot.lane.b32.xlu0 %v1074, 4
      %v1361 = vpop.permute.xlu0 %1360
      %1362 = vrot.lane.b32.xlu0 %v1076, 4
      %v1363 = vpop.permute.xlu0 %1362
      %1364 = vrot.lane.b32.xlu0 %v1078, 4
      %v1365 = vpop.permute.xlu0 %1364
      %1366 = vrot.lane.b32.xlu0 %v1081, 4
      %v1367 = vpop.permute.xlu0 %1366
      %1368 = vrot.lane.b32.xlu0 %v1083, 4
      %v1369 = vpop.permute.xlu0 %1368
      %1370 = vrot.lane.b32.xlu0 %v1085, 4
      %v1371 = vpop.permute.xlu0 %1370
      %1372 = vrot.lane.b32.xlu0 %v1087, 4
      %v1373 = vpop.permute.xlu0 %1372
      %1374 = vrot.lane.b32.xlu0 %v1090, 4
      %v1375 = vpop.permute.xlu0 %1374
      %1376 = vrot.lane.b32.xlu0 %v1092, 4
      %v1377 = vpop.permute.xlu0 %1376
      %1378 = vrot.lane.b32.xlu0 %v1094, 4
      %v1379 = vpop.permute.xlu0 %1378
      %1380 = vrot.lane.b32.xlu0 %v1096, 4
      %v1381 = vpop.permute.xlu0 %1380
      %1382 = vrot.lane.b32.xlu0 %v1099, 4
      %v1383 = vpop.permute.xlu0 %1382
      %1384 = vrot.lane.b32.xlu0 %v1101, 4
      %v1385 = vpop.permute.xlu0 %1384
      %1386 = vrot.lane.b32.xlu0 %v1103, 4
      %v1387 = vpop.permute.xlu0 %1386
      %1388 = vrot.lane.b32.xlu0 %v1105, 4
      %v1389 = vpop.permute.xlu0 %1388
      %1390 = vrot.lane.b32.xlu0 %v1108, 4
      %v1391 = vpop.permute.xlu0 %1390
      %1392 = vrot.lane.b32.xlu0 %v1110, 4
      %v1393 = vpop.permute.xlu0 %1392
      %1394 = vrot.lane.b32.xlu0 %v1112, 4
      %v1395 = vpop.permute.xlu0 %1394
      %1396 = vrot.lane.b32.xlu0 %v1114, 4
      %v1397 = vpop.permute.xlu0 %1396
      %1398 = vrot.lane.b32.xlu0 %v1117, 4
      %v1399 = vpop.permute.xlu0 %1398
      %1400 = vrot.lane.b32.xlu0 %v1119, 4
      %v1401 = vpop.permute.xlu0 %1400
      %1402 = vrot.lane.b32.xlu0 %v1121, 4
      %v1403 = vpop.permute.xlu0 %1402
      %1404 = vrot.lane.b32.xlu0 %v1123, 4
      %v1405 = vpop.permute.xlu0 %1404
      %1406 = vrot.lane.b32.xlu0 %v1126, 4
      %v1407 = vpop.permute.xlu0 %1406
      %1408 = vrot.lane.b32.xlu0 %v1128, 4
      %v1409 = vpop.permute.xlu0 %1408
      %1410 = vrot.lane.b32.xlu0 %v1130, 4
      %v1411 = vpop.permute.xlu0 %1410
      %1412 = vrot.lane.b32.xlu0 %v1132, 4
      %v1413 = vpop.permute.xlu0 %1412
      %1414 = vrot.lane.b32.xlu0 %v1135, 4
      %v1415 = vpop.permute.xlu0 %1414
      %1416 = vrot.lane.b32.xlu0 %v1137, 4
      %v1417 = vpop.permute.xlu0 %1416
      %1418 = vrot.lane.b32.xlu0 %v1139, 4
      %v1419 = vpop.permute.xlu0 %1418
      %1420 = vrot.lane.b32.xlu0 %v1141, 4
      %v1421 = vpop.permute.xlu0 %1420
      %1422 = vrot.lane.b32.xlu0 %v1144, 4
      %v1423 = vpop.permute.xlu0 %1422
      %1424 = vrot.lane.b32.xlu0 %v1146, 4
      %v1425 = vpop.permute.xlu0 %1424
      %1426 = vrot.lane.b32.xlu0 %v1148, 4
      %v1427 = vpop.permute.xlu0 %1426
      %1428 = vrot.lane.b32.xlu0 %v1150, 4
      %v1429 = vpop.permute.xlu0 %1428
      %1430 = vrot.lane.b32.xlu0 %v1153, 4
      %v1431 = vpop.permute.xlu0 %1430
      %1432 = vrot.lane.b32.xlu0 %v1155, 4
      %v1433 = vpop.permute.xlu0 %1432
      %1434 = vrot.lane.b32.xlu0 %v1157, 4
      %v1435 = vpop.permute.xlu0 %1434
      %1436 = vrot.lane.b32.xlu0 %v1159, 4
      %v1437 = vpop.permute.xlu0 %1436
      %1438 = vrot.lane.b32.xlu0 %v1162, 4
      %v1439 = vpop.permute.xlu0 %1438
      %1440 = vrot.lane.b32.xlu0 %v1164, 4
      %v1441 = vpop.permute.xlu0 %1440
      %1442 = vrot.lane.b32.xlu0 %v1166, 4
      %v1443 = vpop.permute.xlu0 %1442
      %1444 = vrot.lane.b32.xlu0 %v1168, 4
      %v1445 = vpop.permute.xlu0 %1444
      %1446 = vrot.lane.b32.xlu0 %v1171, 4
      %v1447 = vpop.permute.xlu0 %1446
      %1448 = vrot.lane.b32.xlu0 %v1173, 4
      %v1449 = vpop.permute.xlu0 %1448
      %1450 = vrot.lane.b32.xlu0 %v1175, 4
      %v1451 = vpop.permute.xlu0 %1450
      %1452 = vrot.lane.b32.xlu0 %v1177, 4
      %v1453 = vpop.permute.xlu0 %1452
      %1454 = vrot.lane.b32.xlu0 %v1180, 4
      %v1455 = vpop.permute.xlu0 %1454
      %1456 = vrot.lane.b32.xlu0 %v1182, 4
      %v1457 = vpop.permute.xlu0 %1456
      %1458 = vrot.lane.b32.xlu0 %v1184, 4
      %v1459 = vpop.permute.xlu0 %1458
      %1460 = vrot.lane.b32.xlu0 %v1186, 4
      %v1461 = vpop.permute.xlu0 %1460
      %1462 = vrot.lane.b32.xlu0 %v1189, 4
      %v1463 = vpop.permute.xlu0 %1462
      %1464 = vrot.lane.b32.xlu0 %v1191, 4
      %v1465 = vpop.permute.xlu0 %1464
      %1466 = vrot.lane.b32.xlu0 %v1193, 4
      %v1467 = vpop.permute.xlu0 %1466
      %1468 = vrot.lane.b32.xlu0 %v1195, 4
      %v1469 = vpop.permute.xlu0 %1468
      %1470 = vrot.lane.b32.xlu0 %v1198, 4
      %v1471 = vpop.permute.xlu0 %1470
      %1472 = vrot.lane.b32.xlu0 %v1200, 4
      %v1473 = vpop.permute.xlu0 %1472
      %1474 = vrot.lane.b32.xlu0 %v1202, 4
      %v1475 = vpop.permute.xlu0 %1474
      %1476 = vrot.lane.b32.xlu0 %v1204, 4
      %v1477 = vpop.permute.xlu0 %1476
      %1478 = vrot.lane.b32.xlu0 %v1207, 4
      %v1479 = vpop.permute.xlu0 %1478
      %1480 = vrot.lane.b32.xlu0 %v1209, 4
      %v1481 = vpop.permute.xlu0 %1480
      %1482 = vrot.lane.b32.xlu0 %v1211, 4
      %v1483 = vpop.permute.xlu0 %1482
      %1484 = vrot.lane.b32.xlu0 %v1213, 4
      %v1485 = vpop.permute.xlu0 %1484
      %1486 = vrot.lane.b32.xlu0 %v1216, 4
      %v1487 = vpop.permute.xlu0 %1486
      %1488 = vrot.lane.b32.xlu0 %v1218, 4
      %v1489 = vpop.permute.xlu0 %1488
      %1490 = vrot.lane.b32.xlu0 %v1220, 4
      %v1491 = vpop.permute.xlu0 %1490
      %1492 = vrot.lane.b32.xlu0 %v1222, 4
      %v1493 = vpop.permute.xlu0 %1492
      %1494 = vrot.lane.b32.xlu0 %v1225, 4
      %v1495 = vpop.permute.xlu0 %1494
      %1496 = vrot.lane.b32.xlu0 %v1227, 4
      %v1497 = vpop.permute.xlu0 %1496
      %1498 = vrot.lane.b32.xlu0 %v1229, 4
      %v1499 = vpop.permute.xlu0 %1498
      %1500 = vrot.lane.b32.xlu0 %v1231, 4
      %v1501 = vpop.permute.xlu0 %1500
      %1502 = vrot.lane.b32.xlu0 %v1234, 4
      %v1503 = vpop.permute.xlu0 %1502
      %1504 = vrot.lane.b32.xlu0 %v1236, 4
      %v1505 = vpop.permute.xlu0 %1504
      %1506 = vrot.lane.b32.xlu0 %v1238, 4
      %v1507 = vpop.permute.xlu0 %1506
      %1508 = vrot.lane.b32.xlu0 %v1240, 4
      %v1509 = vpop.permute.xlu0 %1508
      %1510 = vrot.lane.b32.xlu0 %v1243, 4
      %v1511 = vpop.permute.xlu0 %1510
      %1512 = vrot.lane.b32.xlu0 %v1245, 4
      %v1513 = vpop.permute.xlu0 %1512
      %1514 = vrot.lane.b32.xlu0 %v1247, 4
      %v1515 = vpop.permute.xlu0 %1514
      %1516 = vrot.lane.b32.xlu0 %v1249, 4
      %v1517 = vpop.permute.xlu0 %1516
      %1518 = vrot.lane.b32.xlu0 %v1252, 4
      %v1519 = vpop.permute.xlu0 %1518
      %1520 = vrot.lane.b32.xlu0 %v1254, 4
      %v1521 = vpop.permute.xlu0 %1520
      %1522 = vrot.lane.b32.xlu0 %v1256, 4
      %v1523 = vpop.permute.xlu0 %1522
      %1524 = vrot.lane.b32.xlu0 %v1258, 4
      %v1525 = vpop.permute.xlu0 %1524
      %1526 = vrot.lane.b32.xlu0 %v1261, 4
      %v1527 = vpop.permute.xlu0 %1526
      %1528 = vrot.lane.b32.xlu0 %v1263, 4
      %v1529 = vpop.permute.xlu0 %1528
      %1530 = vrot.lane.b32.xlu0 %v1265, 4
      %v1531 = vpop.permute.xlu0 %1530
      %1532 = vrot.lane.b32.xlu0 %v1267, 4
      %v1533 = vpop.permute.xlu0 %1532
      %1534 = vrot.lane.b32.xlu0 %v1270, 4
      %v1535 = vpop.permute.xlu0 %1534
      %1536 = vrot.lane.b32.xlu0 %v1272, 4
      %v1537 = vpop.permute.xlu0 %1536
      %1538 = vrot.lane.b32.xlu0 %v1274, 4
      %v1539 = vpop.permute.xlu0 %1538
      %1540 = vrot.lane.b32.xlu0 %v1276, 4
      %v1541 = vpop.permute.xlu0 %1540
      %1542 = vrot.lane.b32.xlu0 %v1279, 4
      %v1543 = vpop.permute.xlu0 %1542
      %1544 = vrot.lane.b32.xlu0 %v1281, 4
      %v1545 = vpop.permute.xlu0 %1544
      %1546 = vrot.lane.b32.xlu0 %v1283, 4
      %v1547 = vpop.permute.xlu0 %1546
      %1548 = vrot.lane.b32.xlu0 %v1285, 4
      %v1549 = vpop.permute.xlu0 %1548
      %1550 = vrot.lane.b32.xlu0 %v1288, 4
      %v1551 = vpop.permute.xlu0 %1550
      %1552 = vrot.lane.b32.xlu0 %v1290, 4
      %v1553 = vpop.permute.xlu0 %1552
      %1554 = vrot.lane.b32.xlu0 %v1292, 4
      %v1555 = vpop.permute.xlu0 %1554
      %1556 = vrot.lane.b32.xlu0 %v1294, 4
      %v1557 = vpop.permute.xlu0 %1556
      %1558 = vrot.lane.b32.xlu0 %v1297, 4
      %v1559 = vpop.permute.xlu0 %1558
      %1560 = vrot.lane.b32.xlu0 %v1299, 4
      %v1561 = vpop.permute.xlu0 %1560
      %1562 = vrot.lane.b32.xlu0 %v1301, 4
      %v1563 = vpop.permute.xlu0 %1562
      %1564 = vrot.lane.b32.xlu0 %v1303, 4
      %v1565 = vpop.permute.xlu0 %1564
      %1566 = vrot.lane.b32.xlu0 %v1306, 4
      %v1567 = vpop.permute.xlu0 %1566
      %1568 = vrot.lane.b32.xlu0 %v1308, 4
      %v1569 = vpop.permute.xlu0 %1568
      %1570 = vrot.lane.b32.xlu0 %v1310, 4
      %v1571 = vpop.permute.xlu0 %1570
      %1572 = vrot.lane.b32.xlu0 %v1312, 4
      %v1573 = vpop.permute.xlu0 %1572
      %1574 = vrot.lane.b32.xlu0 %v1315, 4
      %v1575 = vpop.permute.xlu0 %1574
      %1576 = vrot.lane.b32.xlu0 %v1317, 4
      %v1577 = vpop.permute.xlu0 %1576
      %1578 = vrot.lane.b32.xlu0 %v1319, 4
      %v1579 = vpop.permute.xlu0 %1578
      %1580 = vrot.lane.b32.xlu0 %v1321, 4
      %v1581 = vpop.permute.xlu0 %1580
      %1582 = vrot.lane.b32.xlu0 %v1324, 4
      %v1583 = vpop.permute.xlu0 %1582
      %1584 = vrot.lane.b32.xlu0 %v1326, 4
      %v1585 = vpop.permute.xlu0 %1584
      %1586 = vrot.lane.b32.xlu0 %v1328, 4
      %v1587 = vpop.permute.xlu0 %1586
      %1588 = vrot.lane.b32.xlu0 %v1330, 4
      %v1589 = vpop.permute.xlu0 %1588
      %1590 = vrot.lane.b32.xlu0 %v1333, 4
      %v1591 = vpop.permute.xlu0 %1590
      %1592 = vrot.lane.b32.xlu0 %v1335, 4
      %v1593 = vpop.permute.xlu0 %1592
      %1594 = vrot.lane.b32.xlu0 %v1337, 4
      %v1595 = vpop.permute.xlu0 %1594
      %1596 = vrot.lane.b32.xlu0 %v1339, 4
      %v1597 = vpop.permute.xlu0 %1596
      %1598 = vrot.lane.b32.xlu0 %v1342, 4
      %v1599 = vpop.permute.xlu0 %1598
      %1600 = vrot.lane.b32.xlu0 %v1344, 4
      %v1601 = vpop.permute.xlu0 %1600
      %1602 = vrot.lane.b32.xlu0 %v1346, 4
      %v1603 = vpop.permute.xlu0 %1602
      %1604 = vrot.lane.b32.xlu0 %v1348, 4
      %v1605 = vpop.permute.xlu0 %1604
      %1606 = vrot.lane.b32.xlu0 %v1351, 4
      %v1607 = vpop.permute.xlu0 %1606
      %1608 = vrot.lane.b32.xlu0 %v1353, 4
      %v1609 = vpop.permute.xlu0 %1608
      %1610 = vrot.lane.b32.xlu0 %v1355, 4
      %v1611 = vpop.permute.xlu0 %1610
      %1612 = vrot.lane.b32.xlu0 %v1357, 4
      %v1613 = vpop.permute.xlu0 %1612
      %vm1742 = vcmask 1045504
      %v1743 = vrot.slane %v941, 2
      %v1744 = vrot.slane %v495, 2
      %v1745 = vsel %vm1742, %v1743, %v1744
      %v1746 = vrot.slane %v497, 2
      %v1747 = vsel %vm1742, %v1744, %v1746
      %v1748 = vrot.slane %v499, 2
      %v1749 = vsel %vm1742, %v1746, %v1748
      %v1750 = vrot.slane %v973, 2
      %v1751 = vsel %vm1742, %v1748, %v1750
      %v1752 = vrot.slane %v942, 2
      %v1753 = vrot.slane %v502, 2
      %v1754 = vsel %vm1742, %v1752, %v1753
      %v1755 = vrot.slane %v504, 2
      %v1756 = vsel %vm1742, %v1753, %v1755
      %v1757 = vrot.slane %v506, 2
      %v1758 = vsel %vm1742, %v1755, %v1757
      %v1759 = vrot.slane %v974, 2
      %v1760 = vsel %vm1742, %v1757, %v1759
      %v1761 = vrot.slane %v943, 2
      %v1762 = vrot.slane %v509, 2
      %v1763 = vsel %vm1742, %v1761, %v1762
      %v1764 = vrot.slane %v511, 2
      %v1765 = vsel %vm1742, %v1762, %v1764
      %v1766 = vrot.slane %v513, 2
      %v1767 = vsel %vm1742, %v1764, %v1766
      %v1768 = vrot.slane %v975, 2
      %v1769 = vsel %vm1742, %v1766, %v1768
      %v1770 = vrot.slane %v944, 2
      %v1771 = vrot.slane %v516, 2
      %v1772 = vsel %vm1742, %v1770, %v1771
      %v1773 = vrot.slane %v518, 2
      %v1774 = vsel %vm1742, %v1771, %v1773
      %v1775 = vrot.slane %v520, 2
      %v1776 = vsel %vm1742, %v1773, %v1775
      %v1777 = vrot.slane %v976, 2
      %v1778 = vsel %vm1742, %v1775, %v1777
      %v1779 = vrot.slane %v945, 2
      %v1780 = vrot.slane %v523, 2
      %v1781 = vsel %vm1742, %v1779, %v1780
      %v1782 = vrot.slane %v525, 2
      %v1783 = vsel %vm1742, %v1780, %v1782
      %v1784 = vrot.slane %v527, 2
      %v1785 = vsel %vm1742, %v1782, %v1784
      %v1786 = vrot.slane %v977, 2
      %v1787 = vsel %vm1742, %v1784, %v1786
      %v1788 = vrot.slane %v946, 2
      %v1789 = vrot.slane %v530, 2
      %v1790 = vsel %vm1742, %v1788, %v1789
      %v1791 = vrot.slane %v532, 2
      %v1792 = vsel %vm1742, %v1789, %v1791
      %v1793 = vrot.slane %v534, 2
      %v1794 = vsel %vm1742, %v1791, %v1793
      %v1795 = vrot.slane %v978, 2
      %v1796 = vsel %vm1742, %v1793, %v1795
      %v1797 = vrot.slane %v947, 2
      %v1798 = vrot.slane %v537, 2
      %v1799 = vsel %vm1742, %v1797, %v1798
      %v1800 = vrot.slane %v539, 2
      %v1801 = vsel %vm1742, %v1798, %v1800
      %v1802 = vrot.slane %v541, 2
      %v1803 = vsel %vm1742, %v1800, %v1802
      %v1804 = vrot.slane %v979, 2
      %v1805 = vsel %vm1742, %v1802, %v1804
      %v1806 = vrot.slane %v948, 2
      %v1807 = vrot.slane %v544, 2
      %v1808 = vsel %vm1742, %v1806, %v1807
      %v1809 = vrot.slane %v546, 2
      %v1810 = vsel %vm1742, %v1807, %v1809
      %v1811 = vrot.slane %v548, 2
      %v1812 = vsel %vm1742, %v1809, %v1811
      %v1813 = vrot.slane %v980, 2
      %v1814 = vsel %vm1742, %v1811, %v1813
      %v1815 = vrot.slane %v949, 2
      %v1816 = vrot.slane %v551, 2
      %v1817 = vsel %vm1742, %v1815, %v1816
      %v1818 = vrot.slane %v553, 2
      %v1819 = vsel %vm1742, %v1816, %v1818
      %v1820 = vrot.slane %v555, 2
      %v1821 = vsel %vm1742, %v1818, %v1820
      %v1822 = vrot.slane %v981, 2
      %v1823 = vsel %vm1742, %v1820, %v1822
      %v1824 = vrot.slane %v950, 2
      %v1825 = vrot.slane %v558, 2
      %v1826 = vsel %vm1742, %v1824, %v1825
      %v1827 = vrot.slane %v560, 2
      %v1828 = vsel %vm1742, %v1825, %v1827
      %v1829 = vrot.slane %v562, 2
      %v1830 = vsel %vm1742, %v1827, %v1829
      %v1831 = vrot.slane %v982, 2
      %v1832 = vsel %vm1742, %v1829, %v1831
      %v1833 = vrot.slane %v951, 2
      %v1834 = vrot.slane %v565, 2
      %v1835 = vsel %vm1742, %v1833, %v1834
      %v1836 = vrot.slane %v567, 2
      %v1837 = vsel %vm1742, %v1834, %v1836
      %v1838 = vrot.slane %v569, 2
      %v1839 = vsel %vm1742, %v1836, %v1838
      %v1840 = vrot.slane %v983, 2
      %v1841 = vsel %vm1742, %v1838, %v1840
      %v1842 = vrot.slane %v952, 2
      %v1843 = vrot.slane %v572, 2
      %v1844 = vsel %vm1742, %v1842, %v1843
      %v1845 = vrot.slane %v574, 2
      %v1846 = vsel %vm1742, %v1843, %v1845
      %v1847 = vrot.slane %v576, 2
      %v1848 = vsel %vm1742, %v1845, %v1847
      %v1849 = vrot.slane %v984, 2
      %v1850 = vsel %vm1742, %v1847, %v1849
      %v1851 = vrot.slane %v953, 2
      %v1852 = vrot.slane %v579, 2
      %v1853 = vsel %vm1742, %v1851, %v1852
      %v1854 = vrot.slane %v581, 2
      %v1855 = vsel %vm1742, %v1852, %v1854
      %v1856 = vrot.slane %v583, 2
      %v1857 = vsel %vm1742, %v1854, %v1856
      %v1858 = vrot.slane %v985, 2
      %v1859 = vsel %vm1742, %v1856, %v1858
      %v1860 = vrot.slane %v954, 2
      %v1861 = vrot.slane %v586, 2
      %v1862 = vsel %vm1742, %v1860, %v1861
      %v1863 = vrot.slane %v588, 2
      %v1864 = vsel %vm1742, %v1861, %v1863
      %v1865 = vrot.slane %v590, 2
      %v1866 = vsel %vm1742, %v1863, %v1865
      %v1867 = vrot.slane %v986, 2
      %v1868 = vsel %vm1742, %v1865, %v1867
      %v1869 = vrot.slane %v955, 2
      %v1870 = vrot.slane %v593, 2
      %v1871 = vsel %vm1742, %v1869, %v1870
      %v1872 = vrot.slane %v595, 2
      %v1873 = vsel %vm1742, %v1870, %v1872
      %v1874 = vrot.slane %v597, 2
      %v1875 = vsel %vm1742, %v1872, %v1874
      %v1876 = vrot.slane %v987, 2
      %v1877 = vsel %vm1742, %v1874, %v1876
      %v1878 = vrot.slane %v956, 2
      %v1879 = vrot.slane %v600, 2
      %v1880 = vsel %vm1742, %v1878, %v1879
      %v1881 = vrot.slane %v602, 2
      %v1882 = vsel %vm1742, %v1879, %v1881
      %v1883 = vrot.slane %v604, 2
      %v1884 = vsel %vm1742, %v1881, %v1883
      %v1885 = vrot.slane %v988, 2
      %v1886 = vsel %vm1742, %v1883, %v1885
      %v1887 = vrot.slane %v957, 2
      %v1888 = vrot.slane %v607, 2
      %v1889 = vsel %vm1742, %v1887, %v1888
      %v1890 = vrot.slane %v609, 2
      %v1891 = vsel %vm1742, %v1888, %v1890
      %v1892 = vrot.slane %v611, 2
      %v1893 = vsel %vm1742, %v1890, %v1892
      %v1894 = vrot.slane %v989, 2
      %v1895 = vsel %vm1742, %v1892, %v1894
      %v1896 = vrot.slane %v958, 2
      %v1897 = vrot.slane %v614, 2
      %v1898 = vsel %vm1742, %v1896, %v1897
      %v1899 = vrot.slane %v616, 2
      %v1900 = vsel %vm1742, %v1897, %v1899
      %v1901 = vrot.slane %v618, 2
      %v1902 = vsel %vm1742, %v1899, %v1901
      %v1903 = vrot.slane %v990, 2
      %v1904 = vsel %vm1742, %v1901, %v1903
      %v1905 = vrot.slane %v959, 2
      %v1906 = vrot.slane %v621, 2
      %v1907 = vsel %vm1742, %v1905, %v1906
      %v1908 = vrot.slane %v623, 2
      %v1909 = vsel %vm1742, %v1906, %v1908
      %v1910 = vrot.slane %v625, 2
      %v1911 = vsel %vm1742, %v1908, %v1910
      %v1912 = vrot.slane %v991, 2
      %v1913 = vsel %vm1742, %v1910, %v1912
      %v1914 = vrot.slane %v960, 2
      %v1915 = vrot.slane %v628, 2
      %v1916 = vsel %vm1742, %v1914, %v1915
      %v1917 = vrot.slane %v630, 2
      %v1918 = vsel %vm1742, %v1915, %v1917
      %v1919 = vrot.slane %v632, 2
      %v1920 = vsel %vm1742, %v1917, %v1919
      %v1921 = vrot.slane %v992, 2
      %v1922 = vsel %vm1742, %v1919, %v1921
      %v1923 = vrot.slane %v961, 2
      %v1924 = vrot.slane %v635, 2
      %v1925 = vsel %vm1742, %v1923, %v1924
      %v1926 = vrot.slane %v637, 2
      %v1927 = vsel %vm1742, %v1924, %v1926
      %v1928 = vrot.slane %v639, 2
      %v1929 = vsel %vm1742, %v1926, %v1928
      %v1930 = vrot.slane %v993, 2
      %v1931 = vsel %vm1742, %v1928, %v1930
      %v1932 = vrot.slane %v962, 2
      %v1933 = vrot.slane %v642, 2
      %v1934 = vsel %vm1742, %v1932, %v1933
      %v1935 = vrot.slane %v644, 2
      %v1936 = vsel %vm1742, %v1933, %v1935
      %v1937 = vrot.slane %v646, 2
      %v1938 = vsel %vm1742, %v1935, %v1937
      %v1939 = vrot.slane %v994, 2
      %v1940 = vsel %vm1742, %v1937, %v1939
      %v1941 = vrot.slane %v963, 2
      %v1942 = vrot.slane %v649, 2
      %v1943 = vsel %vm1742, %v1941, %v1942
      %v1944 = vrot.slane %v651, 2
      %v1945 = vsel %vm1742, %v1942, %v1944
      %v1946 = vrot.slane %v653, 2
      %v1947 = vsel %vm1742, %v1944, %v1946
      %v1948 = vrot.slane %v995, 2
      %v1949 = vsel %vm1742, %v1946, %v1948
      %v1950 = vrot.slane %v964, 2
      %v1951 = vrot.slane %v656, 2
      %v1952 = vsel %vm1742, %v1950, %v1951
      %v1953 = vrot.slane %v658, 2
      %v1954 = vsel %vm1742, %v1951, %v1953
      %v1955 = vrot.slane %v660, 2
      %v1956 = vsel %vm1742, %v1953, %v1955
      %v1957 = vrot.slane %v996, 2
      %v1958 = vsel %vm1742, %v1955, %v1957
      %v1959 = vrot.slane %v965, 2
      %v1960 = vrot.slane %v663, 2
      %v1961 = vsel %vm1742, %v1959, %v1960
      %v1962 = vrot.slane %v665, 2
      %v1963 = vsel %vm1742, %v1960, %v1962
      %v1964 = vrot.slane %v667, 2
      %v1965 = vsel %vm1742, %v1962, %v1964
      %v1966 = vrot.slane %v997, 2
      %v1967 = vsel %vm1742, %v1964, %v1966
      %v1968 = vrot.slane %v966, 2
      %v1969 = vrot.slane %v670, 2
      %v1970 = vsel %vm1742, %v1968, %v1969
      %v1971 = vrot.slane %v672, 2
      %v1972 = vsel %vm1742, %v1969, %v1971
      %v1973 = vrot.slane %v674, 2
      %v1974 = vsel %vm1742, %v1971, %v1973
      %v1975 = vrot.slane %v998, 2
      %v1976 = vsel %vm1742, %v1973, %v1975
      %v1977 = vrot.slane %v967, 2
      %v1978 = vrot.slane %v677, 2
      %v1979 = vsel %vm1742, %v1977, %v1978
      %v1980 = vrot.slane %v679, 2
      %v1981 = vsel %vm1742, %v1978, %v1980
      %v1982 = vrot.slane %v681, 2
      %v1983 = vsel %vm1742, %v1980, %v1982
      %v1984 = vrot.slane %v999, 2
      %v1985 = vsel %vm1742, %v1982, %v1984
      %v1986 = vrot.slane %v968, 2
      %v1987 = vrot.slane %v684, 2
      %v1988 = vsel %vm1742, %v1986, %v1987
      %v1989 = vrot.slane %v686, 2
      %v1990 = vsel %vm1742, %v1987, %v1989
      %v1991 = vrot.slane %v688, 2
      %v1992 = vsel %vm1742, %v1989, %v1991
      %v1993 = vrot.slane %v1000, 2
      %v1994 = vsel %vm1742, %v1991, %v1993
      %v1995 = vrot.slane %v969, 2
      %v1996 = vrot.slane %v691, 2
      %v1997 = vsel %vm1742, %v1995, %v1996
      %v1998 = vrot.slane %v693, 2
      %v1999 = vsel %vm1742, %v1996, %v1998
      %v2000 = vrot.slane %v695, 2
      %v2001 = vsel %vm1742, %v1998, %v2000
      %v2002 = vrot.slane %v1001, 2
      %v2003 = vsel %vm1742, %v2000, %v2002
      %v2004 = vrot.slane %v970, 2
      %v2005 = vrot.slane %v698, 2
      %v2006 = vsel %vm1742, %v2004, %v2005
      %v2007 = vrot.slane %v700, 2
      %v2008 = vsel %vm1742, %v2005, %v2007
      %v2009 = vrot.slane %v702, 2
      %v2010 = vsel %vm1742, %v2007, %v2009
      %v2011 = vrot.slane %v1002, 2
      %v2012 = vsel %vm1742, %v2009, %v2011
      %v2013 = vrot.slane %v971, 2
      %v2014 = vrot.slane %v705, 2
      %v2015 = vsel %vm1742, %v2013, %v2014
      %v2016 = vrot.slane %v707, 2
      %v2017 = vsel %vm1742, %v2014, %v2016
      %v2018 = vrot.slane %v709, 2
      %v2019 = vsel %vm1742, %v2016, %v2018
      %v2020 = vrot.slane %v1003, 2
      %v2021 = vsel %vm1742, %v2018, %v2020
      %v2022 = vrot.slane %v972, 2
      %v2023 = vrot.slane %v712, 2
      %v2024 = vsel %vm1742, %v2022, %v2023
      %v2025 = vrot.slane %v714, 2
      %v2026 = vsel %vm1742, %v2023, %v2025
      %v2027 = vrot.slane %v716, 2
      %v2028 = vsel %vm1742, %v2025, %v2027
      %v2029 = vrot.slane %v1004, 2
      %v2030 = vsel %vm1742, %v2027, %v2029
      %2031 = vrot.lane.b32.xlu0 %v1745, 8
      %v2032 = vpop.permute.xlu0 %2031
      %2033 = vrot.lane.b32.xlu0 %v1747, 8
      %v2034 = vpop.permute.xlu0 %2033
      %2035 = vrot.lane.b32.xlu0 %v1749, 8
      %v2036 = vpop.permute.xlu0 %2035
      %2037 = vrot.lane.b32.xlu0 %v1751, 8
      %v2038 = vpop.permute.xlu0 %2037
      %2039 = vrot.lane.b32.xlu0 %v1754, 8
      %v2040 = vpop.permute.xlu0 %2039
      %2041 = vrot.lane.b32.xlu0 %v1756, 8
      %v2042 = vpop.permute.xlu0 %2041
      %2043 = vrot.lane.b32.xlu0 %v1758, 8
      %v2044 = vpop.permute.xlu0 %2043
      %2045 = vrot.lane.b32.xlu0 %v1760, 8
      %v2046 = vpop.permute.xlu0 %2045
      %2047 = vrot.lane.b32.xlu0 %v1763, 8
      %v2048 = vpop.permute.xlu0 %2047
      %2049 = vrot.lane.b32.xlu0 %v1765, 8
      %v2050 = vpop.permute.xlu0 %2049
      %2051 = vrot.lane.b32.xlu0 %v1767, 8
      %v2052 = vpop.permute.xlu0 %2051
      %2053 = vrot.lane.b32.xlu0 %v1769, 8
      %v2054 = vpop.permute.xlu0 %2053
      %2055 = vrot.lane.b32.xlu0 %v1772, 8
      %v2056 = vpop.permute.xlu0 %2055
      %2057 = vrot.lane.b32.xlu0 %v1774, 8
      %v2058 = vpop.permute.xlu0 %2057
      %2059 = vrot.lane.b32.xlu0 %v1776, 8
      %v2060 = vpop.permute.xlu0 %2059
      %2061 = vrot.lane.b32.xlu0 %v1778, 8
      %v2062 = vpop.permute.xlu0 %2061
      %2063 = vrot.lane.b32.xlu0 %v1781, 8
      %v2064 = vpop.permute.xlu0 %2063
      %2065 = vrot.lane.b32.xlu0 %v1783, 8
      %v2066 = vpop.permute.xlu0 %2065
      %2067 = vrot.lane.b32.xlu0 %v1785, 8
      %v2068 = vpop.permute.xlu0 %2067
      %2069 = vrot.lane.b32.xlu0 %v1787, 8
      %v2070 = vpop.permute.xlu0 %2069
      %2071 = vrot.lane.b32.xlu0 %v1790, 8
      %v2072 = vpop.permute.xlu0 %2071
      %2073 = vrot.lane.b32.xlu0 %v1792, 8
      %v2074 = vpop.permute.xlu0 %2073
      %2075 = vrot.lane.b32.xlu0 %v1794, 8
      %v2076 = vpop.permute.xlu0 %2075
      %2077 = vrot.lane.b32.xlu0 %v1796, 8
      %v2078 = vpop.permute.xlu0 %2077
      %2079 = vrot.lane.b32.xlu0 %v1799, 8
      %v2080 = vpop.permute.xlu0 %2079
      %2081 = vrot.lane.b32.xlu0 %v1801, 8
      %v2082 = vpop.permute.xlu0 %2081
      %2083 = vrot.lane.b32.xlu0 %v1803, 8
      %v2084 = vpop.permute.xlu0 %2083
      %2085 = vrot.lane.b32.xlu0 %v1805, 8
      %v2086 = vpop.permute.xlu0 %2085
      %2087 = vrot.lane.b32.xlu0 %v1808, 8
      %v2088 = vpop.permute.xlu0 %2087
      %2089 = vrot.lane.b32.xlu0 %v1810, 8
      %v2090 = vpop.permute.xlu0 %2089
      %2091 = vrot.lane.b32.xlu0 %v1812, 8
      %v2092 = vpop.permute.xlu0 %2091
      %2093 = vrot.lane.b32.xlu0 %v1814, 8
      %v2094 = vpop.permute.xlu0 %2093
      %2095 = vrot.lane.b32.xlu0 %v1817, 8
      %v2096 = vpop.permute.xlu0 %2095
      %2097 = vrot.lane.b32.xlu0 %v1819, 8
      %v2098 = vpop.permute.xlu0 %2097
      %2099 = vrot.lane.b32.xlu0 %v1821, 8
      %v2100 = vpop.permute.xlu0 %2099
      %2101 = vrot.lane.b32.xlu0 %v1823, 8
      %v2102 = vpop.permute.xlu0 %2101
      %2103 = vrot.lane.b32.xlu0 %v1826, 8
      %v2104 = vpop.permute.xlu0 %2103
      %2105 = vrot.lane.b32.xlu0 %v1828, 8
      %v2106 = vpop.permute.xlu0 %2105
      %2107 = vrot.lane.b32.xlu0 %v1830, 8
      %v2108 = vpop.permute.xlu0 %2107
      %2109 = vrot.lane.b32.xlu0 %v1832, 8
      %v2110 = vpop.permute.xlu0 %2109
      %2111 = vrot.lane.b32.xlu0 %v1835, 8
      %v2112 = vpop.permute.xlu0 %2111
      %2113 = vrot.lane.b32.xlu0 %v1837, 8
      %v2114 = vpop.permute.xlu0 %2113
      %2115 = vrot.lane.b32.xlu0 %v1839, 8
      %v2116 = vpop.permute.xlu0 %2115
      %2117 = vrot.lane.b32.xlu0 %v1841, 8
      %v2118 = vpop.permute.xlu0 %2117
      %2119 = vrot.lane.b32.xlu0 %v1844, 8
      %v2120 = vpop.permute.xlu0 %2119
      %2121 = vrot.lane.b32.xlu0 %v1846, 8
      %v2122 = vpop.permute.xlu0 %2121
      %2123 = vrot.lane.b32.xlu0 %v1848, 8
      %v2124 = vpop.permute.xlu0 %2123
      %2125 = vrot.lane.b32.xlu0 %v1850, 8
      %v2126 = vpop.permute.xlu0 %2125
      %2127 = vrot.lane.b32.xlu0 %v1853, 8
      %v2128 = vpop.permute.xlu0 %2127
      %2129 = vrot.lane.b32.xlu0 %v1855, 8
      %v2130 = vpop.permute.xlu0 %2129
      %2131 = vrot.lane.b32.xlu0 %v1857, 8
      %v2132 = vpop.permute.xlu0 %2131
      %2133 = vrot.lane.b32.xlu0 %v1859, 8
      %v2134 = vpop.permute.xlu0 %2133
      %2135 = vrot.lane.b32.xlu0 %v1862, 8
      %v2136 = vpop.permute.xlu0 %2135
      %2137 = vrot.lane.b32.xlu0 %v1864, 8
      %v2138 = vpop.permute.xlu0 %2137
      %2139 = vrot.lane.b32.xlu0 %v1866, 8
      %v2140 = vpop.permute.xlu0 %2139
      %2141 = vrot.lane.b32.xlu0 %v1868, 8
      %v2142 = vpop.permute.xlu0 %2141
      %2143 = vrot.lane.b32.xlu0 %v1871, 8
      %v2144 = vpop.permute.xlu0 %2143
      %2145 = vrot.lane.b32.xlu0 %v1873, 8
      %v2146 = vpop.permute.xlu0 %2145
      %2147 = vrot.lane.b32.xlu0 %v1875, 8
      %v2148 = vpop.permute.xlu0 %2147
      %2149 = vrot.lane.b32.xlu0 %v1877, 8
      %v2150 = vpop.permute.xlu0 %2149
      %2151 = vrot.lane.b32.xlu0 %v1880, 8
      %v2152 = vpop.permute.xlu0 %2151
      %2153 = vrot.lane.b32.xlu0 %v1882, 8
      %v2154 = vpop.permute.xlu0 %2153
      %2155 = vrot.lane.b32.xlu0 %v1884, 8
      %v2156 = vpop.permute.xlu0 %2155
      %2157 = vrot.lane.b32.xlu0 %v1886, 8
      %v2158 = vpop.permute.xlu0 %2157
      %2159 = vrot.lane.b32.xlu0 %v1889, 8
      %v2160 = vpop.permute.xlu0 %2159
      %2161 = vrot.lane.b32.xlu0 %v1891, 8
      %v2162 = vpop.permute.xlu0 %2161
      %2163 = vrot.lane.b32.xlu0 %v1893, 8
      %v2164 = vpop.permute.xlu0 %2163
      %2165 = vrot.lane.b32.xlu0 %v1895, 8
      %v2166 = vpop.permute.xlu0 %2165
      %2167 = vrot.lane.b32.xlu0 %v1898, 8
      %v2168 = vpop.permute.xlu0 %2167
      %2169 = vrot.lane.b32.xlu0 %v1900, 8
      %v2170 = vpop.permute.xlu0 %2169
      %2171 = vrot.lane.b32.xlu0 %v1902, 8
      %v2172 = vpop.permute.xlu0 %2171
      %2173 = vrot.lane.b32.xlu0 %v1904, 8
      %v2174 = vpop.permute.xlu0 %2173
      %2175 = vrot.lane.b32.xlu0 %v1907, 8
      %v2176 = vpop.permute.xlu0 %2175
      %2177 = vrot.lane.b32.xlu0 %v1909, 8
      %v2178 = vpop.permute.xlu0 %2177
      %2179 = vrot.lane.b32.xlu0 %v1911, 8
      %v2180 = vpop.permute.xlu0 %2179
      %2181 = vrot.lane.b32.xlu0 %v1913, 8
      %v2182 = vpop.permute.xlu0 %2181
      %2183 = vrot.lane.b32.xlu0 %v1916, 8
      %v2184 = vpop.permute.xlu0 %2183
      %2185 = vrot.lane.b32.xlu0 %v1918, 8
      %v2186 = vpop.permute.xlu0 %2185
      %2187 = vrot.lane.b32.xlu0 %v1920, 8
      %v2188 = vpop.permute.xlu0 %2187
      %2189 = vrot.lane.b32.xlu0 %v1922, 8
      %v2190 = vpop.permute.xlu0 %2189
      %2191 = vrot.lane.b32.xlu0 %v1925, 8
      %v2192 = vpop.permute.xlu0 %2191
      %2193 = vrot.lane.b32.xlu0 %v1927, 8
      %v2194 = vpop.permute.xlu0 %2193
      %2195 = vrot.lane.b32.xlu0 %v1929, 8
      %v2196 = vpop.permute.xlu0 %2195
      %2197 = vrot.lane.b32.xlu0 %v1931, 8
      %v2198 = vpop.permute.xlu0 %2197
      %2199 = vrot.lane.b32.xlu0 %v1934, 8
      %v2200 = vpop.permute.xlu0 %2199
      %2201 = vrot.lane.b32.xlu0 %v1936, 8
      %v2202 = vpop.permute.xlu0 %2201
      %2203 = vrot.lane.b32.xlu0 %v1938, 8
      %v2204 = vpop.permute.xlu0 %2203
      %2205 = vrot.lane.b32.xlu0 %v1940, 8
      %v2206 = vpop.permute.xlu0 %2205
      %2207 = vrot.lane.b32.xlu0 %v1943, 8
      %v2208 = vpop.permute.xlu0 %2207
      %2209 = vrot.lane.b32.xlu0 %v1945, 8
      %v2210 = vpop.permute.xlu0 %2209
      %2211 = vrot.lane.b32.xlu0 %v1947, 8
      %v2212 = vpop.permute.xlu0 %2211
      %2213 = vrot.lane.b32.xlu0 %v1949, 8
      %v2214 = vpop.permute.xlu0 %2213
      %2215 = vrot.lane.b32.xlu0 %v1952, 8
      %v2216 = vpop.permute.xlu0 %2215
      %2217 = vrot.lane.b32.xlu0 %v1954, 8
      %v2218 = vpop.permute.xlu0 %2217
      %2219 = vrot.lane.b32.xlu0 %v1956, 8
      %v2220 = vpop.permute.xlu0 %2219
      %2221 = vrot.lane.b32.xlu0 %v1958, 8
      %v2222 = vpop.permute.xlu0 %2221
      %2223 = vrot.lane.b32.xlu0 %v1961, 8
      %v2224 = vpop.permute.xlu0 %2223
      %2225 = vrot.lane.b32.xlu0 %v1963, 8
      %v2226 = vpop.permute.xlu0 %2225
      %2227 = vrot.lane.b32.xlu0 %v1965, 8
      %v2228 = vpop.permute.xlu0 %2227
      %2229 = vrot.lane.b32.xlu0 %v1967, 8
      %v2230 = vpop.permute.xlu0 %2229
      %2231 = vrot.lane.b32.xlu0 %v1970, 8
      %v2232 = vpop.permute.xlu0 %2231
      %2233 = vrot.lane.b32.xlu0 %v1972, 8
      %v2234 = vpop.permute.xlu0 %2233
      %2235 = vrot.lane.b32.xlu0 %v1974, 8
      %v2236 = vpop.permute.xlu0 %2235
      %2237 = vrot.lane.b32.xlu0 %v1976, 8
      %v2238 = vpop.permute.xlu0 %2237
      %2239 = vrot.lane.b32.xlu0 %v1979, 8
      %v2240 = vpop.permute.xlu0 %2239
      %2241 = vrot.lane.b32.xlu0 %v1981, 8
      %v2242 = vpop.permute.xlu0 %2241
      %2243 = vrot.lane.b32.xlu0 %v1983, 8
      %v2244 = vpop.permute.xlu0 %2243
      %2245 = vrot.lane.b32.xlu0 %v1985, 8
      %v2246 = vpop.permute.xlu0 %2245
      %2247 = vrot.lane.b32.xlu0 %v1988, 8
      %v2248 = vpop.permute.xlu0 %2247
      %2249 = vrot.lane.b32.xlu0 %v1990, 8
      %v2250 = vpop.permute.xlu0 %2249
      %2251 = vrot.lane.b32.xlu0 %v1992, 8
      %v2252 = vpop.permute.xlu0 %2251
      %2253 = vrot.lane.b32.xlu0 %v1994, 8
      %v2254 = vpop.permute.xlu0 %2253
      %2255 = vrot.lane.b32.xlu0 %v1997, 8
      %v2256 = vpop.permute.xlu0 %2255
      %2257 = vrot.lane.b32.xlu0 %v1999, 8
      %v2258 = vpop.permute.xlu0 %2257
      %2259 = vrot.lane.b32.xlu0 %v2001, 8
      %v2260 = vpop.permute.xlu0 %2259
      %2261 = vrot.lane.b32.xlu0 %v2003, 8
      %v2262 = vpop.permute.xlu0 %2261
      %2263 = vrot.lane.b32.xlu0 %v2006, 8
      %v2264 = vpop.permute.xlu0 %2263
      %2265 = vrot.lane.b32.xlu0 %v2008, 8
      %v2266 = vpop.permute.xlu0 %2265
      %2267 = vrot.lane.b32.xlu0 %v2010, 8
      %v2268 = vpop.permute.xlu0 %2267
      %2269 = vrot.lane.b32.xlu0 %v2012, 8
      %v2270 = vpop.permute.xlu0 %2269
      %2271 = vrot.lane.b32.xlu0 %v2015, 8
      %v2272 = vpop.permute.xlu0 %2271
      %2273 = vrot.lane.b32.xlu0 %v2017, 8
      %v2274 = vpop.permute.xlu0 %2273
      %2275 = vrot.lane.b32.xlu0 %v2019, 8
      %v2276 = vpop.permute.xlu0 %2275
      %2277 = vrot.lane.b32.xlu0 %v2021, 8
      %v2278 = vpop.permute.xlu0 %2277
      %2279 = vrot.lane.b32.xlu0 %v2024, 8
      %v2280 = vpop.permute.xlu0 %2279
      %2281 = vrot.lane.b32.xlu0 %v2026, 8
      %v2282 = vpop.permute.xlu0 %2281
      %2283 = vrot.lane.b32.xlu0 %v2028, 8
      %v2284 = vpop.permute.xlu0 %2283
      %2285 = vrot.lane.b32.xlu0 %v2030, 8
      %v2286 = vpop.permute.xlu0 %2285
      %vm2415 = vcmask 31744
      %v2416 = vsel %vm2415, %v941, %v1359
      %v2417 = vsel %vm2415, %v495, %v1361
      %v2418 = vsel %vm2415, %v497, %v1363
      %v2419 = vsel %vm2415, %v499, %v1365
      %v2420 = vsel %vm2415, %v942, %v1367
      %v2421 = vsel %vm2415, %v502, %v1369
      %v2422 = vsel %vm2415, %v504, %v1371
      %v2423 = vsel %vm2415, %v506, %v1373
      %v2424 = vsel %vm2415, %v943, %v1375
      %v2425 = vsel %vm2415, %v509, %v1377
      %v2426 = vsel %vm2415, %v511, %v1379
      %v2427 = vsel %vm2415, %v513, %v1381
      %v2428 = vsel %vm2415, %v944, %v1383
      %v2429 = vsel %vm2415, %v516, %v1385
      %v2430 = vsel %vm2415, %v518, %v1387
      %v2431 = vsel %vm2415, %v520, %v1389
      %v2432 = vsel %vm2415, %v945, %v1391
      %v2433 = vsel %vm2415, %v523, %v1393
      %v2434 = vsel %vm2415, %v525, %v1395
      %v2435 = vsel %vm2415, %v527, %v1397
      %v2436 = vsel %vm2415, %v946, %v1399
      %v2437 = vsel %vm2415, %v530, %v1401
      %v2438 = vsel %vm2415, %v532, %v1403
      %v2439 = vsel %vm2415, %v534, %v1405
      %v2440 = vsel %vm2415, %v947, %v1407
      %v2441 = vsel %vm2415, %v537, %v1409
      %v2442 = vsel %vm2415, %v539, %v1411
      %v2443 = vsel %vm2415, %v541, %v1413
      %v2444 = vsel %vm2415, %v948, %v1415
      %v2445 = vsel %vm2415, %v544, %v1417
      %v2446 = vsel %vm2415, %v546, %v1419
      %v2447 = vsel %vm2415, %v548, %v1421
      %v2448 = vsel %vm2415, %v949, %v1423
      %v2449 = vsel %vm2415, %v551, %v1425
      %v2450 = vsel %vm2415, %v553, %v1427
      %v2451 = vsel %vm2415, %v555, %v1429
      %v2452 = vsel %vm2415, %v950, %v1431
      %v2453 = vsel %vm2415, %v558, %v1433
      %v2454 = vsel %vm2415, %v560, %v1435
      %v2455 = vsel %vm2415, %v562, %v1437
      %v2456 = vsel %vm2415, %v951, %v1439
      %v2457 = vsel %vm2415, %v565, %v1441
      %v2458 = vsel %vm2415, %v567, %v1443
      %v2459 = vsel %vm2415, %v569, %v1445
      %v2460 = vsel %vm2415, %v952, %v1447
      %v2461 = vsel %vm2415, %v572, %v1449
      %v2462 = vsel %vm2415, %v574, %v1451
      %v2463 = vsel %vm2415, %v576, %v1453
      %v2464 = vsel %vm2415, %v953, %v1455
      %v2465 = vsel %vm2415, %v579, %v1457
      %v2466 = vsel %vm2415, %v581, %v1459
      %v2467 = vsel %vm2415, %v583, %v1461
      %v2468 = vsel %vm2415, %v954, %v1463
      %v2469 = vsel %vm2415, %v586, %v1465
      %v2470 = vsel %vm2415, %v588, %v1467
      %v2471 = vsel %vm2415, %v590, %v1469
      %v2472 = vsel %vm2415, %v955, %v1471
      %v2473 = vsel %vm2415, %v593, %v1473
      %v2474 = vsel %vm2415, %v595, %v1475
      %v2475 = vsel %vm2415, %v597, %v1477
      %v2476 = vsel %vm2415, %v956, %v1479
      %v2477 = vsel %vm2415, %v600, %v1481
      %v2478 = vsel %vm2415, %v602, %v1483
      %v2479 = vsel %vm2415, %v604, %v1485
      %v2480 = vsel %vm2415, %v957, %v1487
      %v2481 = vsel %vm2415, %v607, %v1489
      %v2482 = vsel %vm2415, %v609, %v1491
      %v2483 = vsel %vm2415, %v611, %v1493
      %v2484 = vsel %vm2415, %v958, %v1495
      %v2485 = vsel %vm2415, %v614, %v1497
      %v2486 = vsel %vm2415, %v616, %v1499
      %v2487 = vsel %vm2415, %v618, %v1501
      %v2488 = vsel %vm2415, %v959, %v1503
      %v2489 = vsel %vm2415, %v621, %v1505
      %v2490 = vsel %vm2415, %v623, %v1507
      %v2491 = vsel %vm2415, %v625, %v1509
      %v2492 = vsel %vm2415, %v960, %v1511
      %v2493 = vsel %vm2415, %v628, %v1513
      %v2494 = vsel %vm2415, %v630, %v1515
      %v2495 = vsel %vm2415, %v632, %v1517
      %v2496 = vsel %vm2415, %v961, %v1519
      %v2497 = vsel %vm2415, %v635, %v1521
      %v2498 = vsel %vm2415, %v637, %v1523
      %v2499 = vsel %vm2415, %v639, %v1525
      %v2500 = vsel %vm2415, %v962, %v1527
      %v2501 = vsel %vm2415, %v642, %v1529
      %v2502 = vsel %vm2415, %v644, %v1531
      %v2503 = vsel %vm2415, %v646, %v1533
      %v2504 = vsel %vm2415, %v963, %v1535
      %v2505 = vsel %vm2415, %v649, %v1537
      %v2506 = vsel %vm2415, %v651, %v1539
      %v2507 = vsel %vm2415, %v653, %v1541
      %v2508 = vsel %vm2415, %v964, %v1543
      %v2509 = vsel %vm2415, %v656, %v1545
      %v2510 = vsel %vm2415, %v658, %v1547
      %v2511 = vsel %vm2415, %v660, %v1549
      %v2512 = vsel %vm2415, %v965, %v1551
      %v2513 = vsel %vm2415, %v663, %v1553
      %v2514 = vsel %vm2415, %v665, %v1555
      %v2515 = vsel %vm2415, %v667, %v1557
      %v2516 = vsel %vm2415, %v966, %v1559
      %v2517 = vsel %vm2415, %v670, %v1561
      %v2518 = vsel %vm2415, %v672, %v1563
      %v2519 = vsel %vm2415, %v674, %v1565
      %v2520 = vsel %vm2415, %v967, %v1567
      %v2521 = vsel %vm2415, %v677, %v1569
      %v2522 = vsel %vm2415, %v679, %v1571
      %v2523 = vsel %vm2415, %v681, %v1573
      %v2524 = vsel %vm2415, %v968, %v1575
      %v2525 = vsel %vm2415, %v684, %v1577
      %v2526 = vsel %vm2415, %v686, %v1579
      %v2527 = vsel %vm2415, %v688, %v1581
      %v2528 = vsel %vm2415, %v969, %v1583
      %v2529 = vsel %vm2415, %v691, %v1585
      %v2530 = vsel %vm2415, %v693, %v1587
      %v2531 = vsel %vm2415, %v695, %v1589
      %v2532 = vsel %vm2415, %v970, %v1591
      %v2533 = vsel %vm2415, %v698, %v1593
      %v2534 = vsel %vm2415, %v700, %v1595
      %v2535 = vsel %vm2415, %v702, %v1597
      %v2536 = vsel %vm2415, %v971, %v1599
      %v2537 = vsel %vm2415, %v705, %v1601
      %v2538 = vsel %vm2415, %v707, %v1603
      %v2539 = vsel %vm2415, %v709, %v1605
      %v2540 = vsel %vm2415, %v972, %v1607
      %v2541 = vsel %vm2415, %v712, %v1609
      %v2542 = vsel %vm2415, %v714, %v1611
      %v2543 = vsel %vm2415, %v716, %v1613
      %vm2544 = vcmask 64512
      %v2545 = vsel %vm2544, %v2416, %v2032
      %v2546 = vsel %vm2544, %v2417, %v2034
      %v2547 = vsel %vm2544, %v2418, %v2036
      %v2548 = vsel %vm2544, %v2419, %v2038
      %v2549 = vsel %vm2544, %v2420, %v2040
      %v2550 = vsel %vm2544, %v2421, %v2042
      %v2551 = vsel %vm2544, %v2422, %v2044
      %v2552 = vsel %vm2544, %v2423, %v2046
      %v2553 = vsel %vm2544, %v2424, %v2048
      %v2554 = vsel %vm2544, %v2425, %v2050
      %v2555 = vsel %vm2544, %v2426, %v2052
      %v2556 = vsel %vm2544, %v2427, %v2054
      %v2557 = vsel %vm2544, %v2428, %v2056
      %v2558 = vsel %vm2544, %v2429, %v2058
      %v2559 = vsel %vm2544, %v2430, %v2060
      %v2560 = vsel %vm2544, %v2431, %v2062
      %v2561 = vsel %vm2544, %v2432, %v2064
      %v2562 = vsel %vm2544, %v2433, %v2066
      %v2563 = vsel %vm2544, %v2434, %v2068
      %v2564 = vsel %vm2544, %v2435, %v2070
      %v2565 = vsel %vm2544, %v2436, %v2072
      %v2566 = vsel %vm2544, %v2437, %v2074
      %v2567 = vsel %vm2544, %v2438, %v2076
      %v2568 = vsel %vm2544, %v2439, %v2078
      %v2569 = vsel %vm2544, %v2440, %v2080
      %v2570 = vsel %vm2544, %v2441, %v2082
      %v2571 = vsel %vm2544, %v2442, %v2084
      %v2572 = vsel %vm2544, %v2443, %v2086
      %v2573 = vsel %vm2544, %v2444, %v2088
      %v2574 = vsel %vm2544, %v2445, %v2090
      %v2575 = vsel %vm2544, %v2446, %v2092
      %v2576 = vsel %vm2544, %v2447, %v2094
      %v2577 = vsel %vm2544, %v2448, %v2096
      %v2578 = vsel %vm2544, %v2449, %v2098
      %v2579 = vsel %vm2544, %v2450, %v2100
      %v2580 = vsel %vm2544, %v2451, %v2102
      %v2581 = vsel %vm2544, %v2452, %v2104
      %v2582 = vsel %vm2544, %v2453, %v2106
      %v2583 = vsel %vm2544, %v2454, %v2108
      %v2584 = vsel %vm2544, %v2455, %v2110
      %v2585 = vsel %vm2544, %v2456, %v2112
      %v2586 = vsel %vm2544, %v2457, %v2114
      %v2587 = vsel %vm2544, %v2458, %v2116
      %v2588 = vsel %vm2544, %v2459, %v2118
      %v2589 = vsel %vm2544, %v2460, %v2120
      %v2590 = vsel %vm2544, %v2461, %v2122
      %v2591 = vsel %vm2544, %v2462, %v2124
      %v2592 = vsel %vm2544, %v2463, %v2126
      %v2593 = vsel %vm2544, %v2464, %v2128
      %v2594 = vsel %vm2544, %v2465, %v2130
      %v2595 = vsel %vm2544, %v2466, %v2132
      %v2596 = vsel %vm2544, %v2467, %v2134
      %v2597 = vsel %vm2544, %v2468, %v2136
      %v2598 = vsel %vm2544, %v2469, %v2138
      %v2599 = vsel %vm2544, %v2470, %v2140
      %v2600 = vsel %vm2544, %v2471, %v2142
      %v2601 = vsel %vm2544, %v2472, %v2144
      %v2602 = vsel %vm2544, %v2473, %v2146
      %v2603 = vsel %vm2544, %v2474, %v2148
      %v2604 = vsel %vm2544, %v2475, %v2150
      %v2605 = vsel %vm2544, %v2476, %v2152
      %v2606 = vsel %vm2544, %v2477, %v2154
      %v2607 = vsel %vm2544, %v2478, %v2156
      %v2608 = vsel %vm2544, %v2479, %v2158
      %v2609 = vsel %vm2544, %v2480, %v2160
      %v2610 = vsel %vm2544, %v2481, %v2162
      %v2611 = vsel %vm2544, %v2482, %v2164
      %v2612 = vsel %vm2544, %v2483, %v2166
      %v2613 = vsel %vm2544, %v2484, %v2168
      %v2614 = vsel %vm2544, %v2485, %v2170
      %v2615 = vsel %vm2544, %v2486, %v2172
      %v2616 = vsel %vm2544, %v2487, %v2174
      %v2617 = vsel %vm2544, %v2488, %v2176
      %v2618 = vsel %vm2544, %v2489, %v2178
      %v2619 = vsel %vm2544, %v2490, %v2180
      %v2620 = vsel %vm2544, %v2491, %v2182
      %v2621 = vsel %vm2544, %v2492, %v2184
      %v2622 = vsel %vm2544, %v2493, %v2186
      %v2623 = vsel %vm2544, %v2494, %v2188
      %v2624 = vsel %vm2544, %v2495, %v2190
      %v2625 = vsel %vm2544, %v2496, %v2192
      %v2626 = vsel %vm2544, %v2497, %v2194
      %v2627 = vsel %vm2544, %v2498, %v2196
      %v2628 = vsel %vm2544, %v2499, %v2198
      %v2629 = vsel %vm2544, %v2500, %v2200
      %v2630 = vsel %vm2544, %v2501, %v2202
      %v2631 = vsel %vm2544, %v2502, %v2204
      %v2632 = vsel %vm2544, %v2503, %v2206
      %v2633 = vsel %vm2544, %v2504, %v2208
      %v2634 = vsel %vm2544, %v2505, %v2210
      %v2635 = vsel %vm2544, %v2506, %v2212
      %v2636 = vsel %vm2544, %v2507, %v2214
      %v2637 = vsel %vm2544, %v2508, %v2216
      %v2638 = vsel %vm2544, %v2509, %v2218
      %v2639 = vsel %vm2544, %v2510, %v2220
      %v2640 = vsel %vm2544, %v2511, %v2222
      %v2641 = vsel %vm2544, %v2512, %v2224
      %v2642 = vsel %vm2544, %v2513, %v2226
      %v2643 = vsel %vm2544, %v2514, %v2228
      %v2644 = vsel %vm2544, %v2515, %v2230
      %v2645 = vsel %vm2544, %v2516, %v2232
      %v2646 = vsel %vm2544, %v2517, %v2234
      %v2647 = vsel %vm2544, %v2518, %v2236
      %v2648 = vsel %vm2544, %v2519, %v2238
      %v2649 = vsel %vm2544, %v2520, %v2240
      %v2650 = vsel %vm2544, %v2521, %v2242
      %v2651 = vsel %vm2544, %v2522, %v2244
      %v2652 = vsel %vm2544, %v2523, %v2246
      %v2653 = vsel %vm2544, %v2524, %v2248
      %v2654 = vsel %vm2544, %v2525, %v2250
      %v2655 = vsel %vm2544, %v2526, %v2252
      %v2656 = vsel %vm2544, %v2527, %v2254
      %v2657 = vsel %vm2544, %v2528, %v2256
      %v2658 = vsel %vm2544, %v2529, %v2258
      %v2659 = vsel %vm2544, %v2530, %v2260
      %v2660 = vsel %vm2544, %v2531, %v2262
      %v2661 = vsel %vm2544, %v2532, %v2264
      %v2662 = vsel %vm2544, %v2533, %v2266
      %v2663 = vsel %vm2544, %v2534, %v2268
      %v2664 = vsel %vm2544, %v2535, %v2270
      %v2665 = vsel %vm2544, %v2536, %v2272
      %v2666 = vsel %vm2544, %v2537, %v2274
      %v2667 = vsel %vm2544, %v2538, %v2276
      %v2668 = vsel %vm2544, %v2539, %v2278
      %v2669 = vsel %vm2544, %v2540, %v2280
      %v2670 = vsel %vm2544, %v2541, %v2282
      %v2671 = vsel %vm2544, %v2542, %v2284
      %v2672 = vsel %vm2544, %v2543, %v2286
      %v2673 = vpack.c.bf16 %v2546, %v2545
      %v2674 = vpack.c.bf16 %v2548, %v2547
      %v2675 = vpack.c.bf16 %v2550, %v2549
      %v2676 = vpack.c.bf16 %v2552, %v2551
      %v2677 = vpack.c.bf16 %v2554, %v2553
      %v2678 = vpack.c.bf16 %v2556, %v2555
      %v2679 = vpack.c.bf16 %v2558, %v2557
      %v2680 = vpack.c.bf16 %v2560, %v2559
      %v2681 = vpack.c.bf16 %v2562, %v2561
      %v2682 = vpack.c.bf16 %v2564, %v2563
      %v2683 = vpack.c.bf16 %v2566, %v2565
      %v2684 = vpack.c.bf16 %v2568, %v2567
      %v2685 = vpack.c.bf16 %v2570, %v2569
      %v2686 = vpack.c.bf16 %v2572, %v2571
      %v2687 = vpack.c.bf16 %v2574, %v2573
      %v2688 = vpack.c.bf16 %v2576, %v2575
      %v2689 = vpack.c.bf16 %v2578, %v2577
      %v2690 = vpack.c.bf16 %v2580, %v2579
      %v2691 = vpack.c.bf16 %v2582, %v2581
      %v2692 = vpack.c.bf16 %v2584, %v2583
      %v2693 = vpack.c.bf16 %v2586, %v2585
      %v2694 = vpack.c.bf16 %v2588, %v2587
      %v2695 = vpack.c.bf16 %v2590, %v2589
      %v2696 = vpack.c.bf16 %v2592, %v2591
      %v2697 = vpack.c.bf16 %v2594, %v2593
      %v2698 = vpack.c.bf16 %v2596, %v2595
      %v2699 = vpack.c.bf16 %v2598, %v2597
      %v2700 = vpack.c.bf16 %v2600, %v2599
      %v2701 = vpack.c.bf16 %v2602, %v2601
      %v2702 = vpack.c.bf16 %v2604, %v2603
      %v2703 = vpack.c.bf16 %v2606, %v2605
      %v2704 = vpack.c.bf16 %v2608, %v2607
      %v2705 = vpack.c.bf16 %v2610, %v2609
      %v2706 = vpack.c.bf16 %v2612, %v2611
      %v2707 = vpack.c.bf16 %v2614, %v2613
      %v2708 = vpack.c.bf16 %v2616, %v2615
      %v2709 = vpack.c.bf16 %v2618, %v2617
      %v2710 = vpack.c.bf16 %v2620, %v2619
      %v2711 = vpack.c.bf16 %v2622, %v2621
      %v2712 = vpack.c.bf16 %v2624, %v2623
      %v2713 = vpack.c.bf16 %v2626, %v2625
      %v2714 = vpack.c.bf16 %v2628, %v2627
      %v2715 = vpack.c.bf16 %v2630, %v2629
      %v2716 = vpack.c.bf16 %v2632, %v2631
      %v2717 = vpack.c.bf16 %v2634, %v2633
      %v2718 = vpack.c.bf16 %v2636, %v2635
      %v2719 = vpack.c.bf16 %v2638, %v2637
      %v2720 = vpack.c.bf16 %v2640, %v2639
      %v2721 = vpack.c.bf16 %v2642, %v2641
      %v2722 = vpack.c.bf16 %v2644, %v2643
      %v2723 = vpack.c.bf16 %v2646, %v2645
      %v2724 = vpack.c.bf16 %v2648, %v2647
      %v2725 = vpack.c.bf16 %v2650, %v2649
      %v2726 = vpack.c.bf16 %v2652, %v2651
      %v2727 = vpack.c.bf16 %v2654, %v2653
      %v2728 = vpack.c.bf16 %v2656, %v2655
      %v2729 = vpack.c.bf16 %v2658, %v2657
      %v2730 = vpack.c.bf16 %v2660, %v2659
      %v2731 = vpack.c.bf16 %v2662, %v2661
      %v2732 = vpack.c.bf16 %v2664, %v2663
      %v2733 = vpack.c.bf16 %v2666, %v2665
      %v2734 = vpack.c.bf16 %v2668, %v2667
      %v2735 = vpack.c.bf16 %v2670, %v2669
      %v2736 = vpack.c.bf16 %v2672, %v2671
      %v2737 = vld [vmem:[%s1] sm:$0xf]
      %v2738 = vld [vmem:[%s1 + $0x4] sm:$0x3]
      %v2739 = vld [vmem:[%s1 + $0x8] sm:$0xf]
      %v2740 = vld [vmem:[%s1 + $0xc] sm:$0x3]
      %v2741 = vld [vmem:[%s1 + $0x10] sm:$0xf]
      %v2742 = vld [vmem:[%s1 + $0x14] sm:$0x3]
      %v2745 = vunpack.c.l.b16 %v2739
      %v2746 = vunpack.c.l.b16 %v2740
      %v2747 = vpack.c.b16 %v2746, %v2745
      %vm2748 = vcmask 97280
      %v2750 = vsel %vm2748, %v2675, 0
      %v2753 = vsel %vm2748, %v2676, 0
      %v2756 = vsel %vm2748, %v2673, 0
      %v2759 = vsel %vm2748, %v2674, 0
      %v2762 = vsel %vm2748, %v2677, 0
      %v2765 = vsel %vm2748, %v2678, 0
      %v2768 = vsel %vm2748, %v2679, 0
      %v2771 = vsel %vm2748, %v2680, 0
      %v2774 = vsel %vm2748, %v2681, 0
      %v2777 = vsel %vm2748, %v2682, 0
      %v2780 = vsel %vm2748, %v2683, 0
      %v2783 = vsel %vm2748, %v2684, 0
      %v2786 = vsel %vm2748, %v2685, 0
      %v2789 = vsel %vm2748, %v2686, 0
      %v2792 = vsel %vm2748, %v2687, 0
      %v2795 = vsel %vm2748, %v2688, 0
      %v2798 = vsel %vm2748, %v2689, 0
      %v2801 = vsel %vm2748, %v2690, 0
      %v2804 = vsel %vm2748, %v2691, 0
      %v2807 = vsel %vm2748, %v2692, 0
      %v2810 = vsel %vm2748, %v2693, 0
      %v2813 = vsel %vm2748, %v2694, 0
      %v2816 = vsel %vm2748, %v2695, 0
      %v2819 = vsel %vm2748, %v2696, 0
      %v2822 = vsel %vm2748, %v2697, 0
      %v2825 = vsel %vm2748, %v2698, 0
      %v2828 = vsel %vm2748, %v2699, 0
      %v2831 = vsel %vm2748, %v2700, 0
      %v2834 = vsel %vm2748, %v2701, 0
      %v2837 = vsel %vm2748, %v2702, 0
      %v2840 = vsel %vm2748, %v2703, 0
      %v2843 = vsel %vm2748, %v2704, 0
      %v2846 = vsel %vm2748, %v2705, 0
      %v2849 = vsel %vm2748, %v2706, 0
      %v2852 = vsel %vm2748, %v2707, 0
      %v2855 = vsel %vm2748, %v2708, 0
      %v2858 = vsel %vm2748, %v2709, 0
      %v2861 = vsel %vm2748, %v2710, 0
      %v2864 = vsel %vm2748, %v2711, 0
      %v2867 = vsel %vm2748, %v2712, 0
      %v2870 = vsel %vm2748, %v2713, 0
      %v2873 = vsel %vm2748, %v2714, 0
      %v2876 = vsel %vm2748, %v2715, 0
      %v2879 = vsel %vm2748, %v2716, 0
      %v2882 = vsel %vm2748, %v2717, 0
      %v2885 = vsel %vm2748, %v2718, 0
      %v2888 = vsel %vm2748, %v2719, 0
      %v2891 = vsel %vm2748, %v2720, 0
      %v2894 = vsel %vm2748, %v2721, 0
      %v2897 = vsel %vm2748, %v2722, 0
      %v2900 = vsel %vm2748, %v2723, 0
      %v2903 = vsel %vm2748, %v2724, 0
      %v2906 = vsel %vm2748, %v2725, 0
      %v2909 = vsel %vm2748, %v2726, 0
      %v2912 = vsel %vm2748, %v2727, 0
      %v2915 = vsel %vm2748, %v2728, 0
      %v2918 = vsel %vm2748, %v2729, 0
      %v2921 = vsel %vm2748, %v2730, 0
      %v2924 = vsel %vm2748, %v2731, 0
      %v2927 = vsel %vm2748, %v2732, 0
      %v2930 = vsel %vm2748, %v2733, 0
      %v2933 = vsel %vm2748, %v2734, 0
      %v2936 = vsel %vm2748, %v2735, 0
      %v2939 = vsel %vm2748, %v2736, 0
      %v2942 = vsel %vm1742, %v2747, 0
      %2944 = vmatprep.subr.bf16.mxu0 0
      %2945 = vmatpush1.bf16.msra.mxu0 %v2942
      %2946 = vmatprep.subr.bf16.mxu0 0
      %2947 = vmatpush1.bf16.msra.mxu0 0
      %2948 = vmatprep.subr.bf16.mxu0 0
      %2949 = vmatpush1.bf16.msra.mxu0 0
      %2950 = vmatprep.subr.bf16.mxu0 0
      %2951 = vmatpush1.bf16.msra.mxu0 0
      %2952 = vmatprep.subr.bf16.mxu0 0
      %2953 = vmatpush1.bf16.msra.mxu0 0
      %2954 = vmatprep.subr.bf16.mxu0 0
      %2955 = vmatpush1.bf16.msra.mxu0 0
      %2956 = vmatprep.subr.bf16.mxu0 0
      %2957 = vmatpush1.bf16.msra.mxu0 0
      %2958 = vmatprep.subr.bf16.mxu0 0
      %2959 = vmatpush1.bf16.msra.mxu0 0
      %2960 = vmatprep.subr.bf16.mxu0 0
      %2961 = vmatpush1.bf16.msra.mxu0 0
      %2962 = vmatprep.subr.bf16.mxu0 0
      %2963 = vmatpush1.bf16.msra.mxu0 0
      %2964 = vmatprep.subr.bf16.mxu0 0
      %2965 = vmatpush1.bf16.msra.mxu0 0
      %2966 = vmatprep.subr.bf16.mxu0 0
      %2967 = vmatpush1.bf16.msra.mxu0 0
      %2968 = vmatprep.subr.bf16.mxu0 0
      %2969 = vmatpush1.bf16.msra.mxu0 0
      %2970 = vmatprep.subr.bf16.mxu0 0
      %2971 = vmatpush1.bf16.msra.mxu0 0
      %2972 = vmatprep.subr.bf16.mxu0 0
      %2973 = vmatpush1.bf16.msra.mxu0 0
      %2974 = vmatprep.subr.bf16.mxu0 0
      %2975 = vmatpush1.bf16.msra.mxu0 0
      %2976 = vmatprep.mubr.bf16.mxu0 0
      %2977 = vmatmul.mubr.bf16.gmra.mrb[0].mxu0 %v2750
      %v2978 = vpop.f32.mrb[0].mxu0
      %v2979 = vadd.f32 0.0, %v2978
      %v2980 = vpop.f32.mrb[0].mxu0
      %v2981 = vpop.f32.mrb[0].mxu0
      %v2982 = vadd.f32 0.0, %v2981
      %v2983 = vpop.f32.mrb[0].mxu0
      %2984 = vmatprep.mubr.bf16.mxu0 0
      %2985 = vmatmul.mubr.bf16.gmra.mrb[0].mxu0 %v2753
      %v2986 = vpop.f32.mrb[0].mxu0
      %v2987 = vadd.f32 0.0, %v2986
      %v2988 = vpop.f32.mrb[0].mxu0
      %v2989 = vpop.f32.mrb[0].mxu0
      %v2990 = vadd.f32 0.0, %v2989
      %v2991 = vpop.f32.mrb[0].mxu0
      %2992 = vmatprep.mubr.bf16.mxu0 0
      %2993 = vmatmul.mubr.bf16.gmra.mrb[0].mxu0 %v2756
      %v2994 = vpop.f32.mrb[0].mxu0
      %v2995 = vadd.f32 0.0, %v2994
      %v2996 = vpop.f32.mrb[0].mxu0
      %v2997 = vpop.f32.mrb[0].mxu0
      %v2998 = vadd.f32 0.0, %v2997
      %v2999 = vpop.f32.mrb[0].mxu0
      %3000 = vmatprep.mubr.bf16.mxu0 0
      %3001 = vmatmul.mubr.bf16.gmra.mrb[0].mxu0 %v2759
      %v3002 = vpop.f32.mrb[0].mxu0
      %v3003 = vadd.f32 0.0, %v3002
      %v3004 = vpop.f32.mrb[0].mxu0
      %v3005 = vpop.f32.mrb[0].mxu0
      %v3006 = vadd.f32 0.0, %v3005
      %v3007 = vpop.f32.mrb[0].mxu0
      %3008 = vmatprep.mubr.bf16.mxu0 0
      %3009 = vmatmul.mubr.bf16.gmra.mrb[0].mxu0 %v2762
      %v3010 = vpop.f32.mrb[0].mxu0
      %v3011 = vadd.f32 0.0, %v3010
      %v3012 = vpop.f32.mrb[0].mxu0
      %v3013 = vpop.f32.mrb[0].mxu0
      %v3014 = vadd.f32 0.0, %v3013
      %v3015 = vpop.f32.mrb[0].mxu0
      %3016 = vmatprep.mubr.bf16.mxu0 0
      %3017 = vmatmul.mubr.bf16.gmra.mrb[0].mxu0 %v2765
      %v3018 = vpop.f32.mrb[0].mxu0
      %v3019 = vadd.f32 0.0, %v3018
      %v3020 = vpop.f32.mrb[0].mxu0
      %v3021 = vpop.f32.mrb[0].mxu0
      %v3022 = vadd.f32 0.0, %v3021
      %v3023 = vpop.f32.mrb[0].mxu0
      %3024 = vmatprep.mubr.bf16.mxu0 0
      %3025 = vmatmul.mubr.bf16.gmra.mrb[0].mxu0 %v2768
      %v3026 = vpop.f32.mrb[0].mxu0
      %v3027 = vadd.f32 0.0, %v3026
      %v3028 = vpop.f32.mrb[0].mxu0
      %v3029 = vpop.f32.mrb[0].mxu0
      %v3030 = vadd.f32 0.0, %v3029
      %v3031 = vpop.f32.mrb[0].mxu0
      %3032 = vmatprep.mubr.bf16.mxu0 0
      %3033 = vmatmul.mubr.bf16.gmra.mrb[0].mxu0 %v2771
      %v3034 = vpop.f32.mrb[0].mxu0
      %v3035 = vadd.f32 0.0, %v3034
      %v3036 = vpop.f32.mrb[0].mxu0
      %v3037 = vpop.f32.mrb[0].mxu0
      %v3038 = vadd.f32 0.0, %v3037
      %v3039 = vpop.f32.mrb[0].mxu0
      %3040 = vmatprep.mubr.bf16.mxu0 0
      %3041 = vmatmul.mubr.bf16.gmra.mrb[0].mxu0 %v2774
      %v3042 = vpop.f32.mrb[0].mxu0
      %v3043 = vadd.f32 0.0, %v3042
      %v3044 = vpop.f32.mrb[0].mxu0
      %v3045 = vpop.f32.mrb[0].mxu0
      %v3046 = vadd.f32 0.0, %v3045
      %v3047 = vpop.f32.mrb[0].mxu0
      %3048 = vmatprep.mubr.bf16.mxu0 0
      %3049 = vmatmul.mubr.bf16.gmra.mrb[0].mxu0 %v2777
      %v3050 = vpop.f32.mrb[0].mxu0
      %v3051 = vadd.f32 0.0, %v3050
      %v3052 = vpop.f32.mrb[0].mxu0
      %v3053 = vpop.f32.mrb[0].mxu0
      %v3054 = vadd.f32 0.0, %v3053
      %v3055 = vpop.f32.mrb[0].mxu0
      %3056 = vmatprep.mubr.bf16.mxu0 0
      %3057 = vmatmul.mubr.bf16.gmra.mrb[0].mxu0 %v2780
      %v3058 = vpop.f32.mrb[0].mxu0
      %v3059 = vadd.f32 0.0, %v3058
      %v3060 = vpop.f32.mrb[0].mxu0
      %v3061 = vpop.f32.mrb[0].mxu0
      %v3062 = vadd.f32 0.0, %v3061
      %v3063 = vpop.f32.mrb[0].mxu0
      %3064 = vmatprep.mubr.bf16.mxu0 0
      %3065 = vmatmul.mubr.bf16.gmra.mrb[0].mxu0 %v2783
      %v3066 = vpop.f32.mrb[0].mxu0
      %v3067 = vadd.f32 0.0, %v3066
      %v3068 = vpop.f32.mrb[0].mxu0
      %v3069 = vpop.f32.mrb[0].mxu0
      %v3070 = vadd.f32 0.0, %v3069
      %v3071 = vpop.f32.mrb[0].mxu0
      %3072 = vmatprep.mubr.bf16.mxu0 0
      %3073 = vmatmul.mubr.bf16.gmra.mrb[0].mxu0 %v2786
      %v3074 = vpop.f32.mrb[0].mxu0
      %v3075 = vadd.f32 0.0, %v3074
      %v3076 = vpop.f32.mrb[0].mxu0
      %v3077 = vpop.f32.mrb[0].mxu0
      %v3078 = vadd.f32 0.0, %v3077
      %v3079 = vpop.f32.mrb[0].mxu0
      %3080 = vmatprep.mubr.bf16.mxu0 0
      %3081 = vmatmul.mubr.bf16.gmra.mrb[0].mxu0 %v2789
      %v3082 = vpop.f32.mrb[0].mxu0
      %v3083 = vadd.f32 0.0, %v3082
      %v3084 = vpop.f32.mrb[0].mxu0
      %v3085 = vpop.f32.mrb[0].mxu0
      %v3086 = vadd.f32 0.0, %v3085
      %v3087 = vpop.f32.mrb[0].mxu0
      %3088 = vmatprep.mubr.bf16.mxu0 0
      %3089 = vmatmul.mubr.bf16.gmra.mrb[0].mxu0 %v2792
      %v3090 = vpop.f32.mrb[0].mxu0
      %v3091 = vadd.f32 0.0, %v3090
      %v3092 = vpop.f32.mrb[0].mxu0
      %v3093 = vpop.f32.mrb[0].mxu0
      %v3094 = vadd.f32 0.0, %v3093
      %v3095 = vpop.f32.mrb[0].mxu0
      %3096 = vmatprep.mubr.bf16.mxu0 0
      %3097 = vmatmul.mubr.bf16.gmra.mrb[0].mxu0 %v2795
      %v3098 = vpop.f32.mrb[0].mxu0
      %v3099 = vadd.f32 0.0, %v3098
      %v3100 = vpop.f32.mrb[0].mxu0
      %v3101 = vpop.f32.mrb[0].mxu0
      %v3102 = vadd.f32 0.0, %v3101
      %v3103 = vpop.f32.mrb[0].mxu0
      %3104 = vmatprep.mubr.bf16.mxu0 0
      %3105 = vmatmul.mubr.bf16.gmra.mrb[0].mxu0 %v2798
      %v3106 = vpop.f32.mrb[0].mxu0
      %v3107 = vadd.f32 0.0, %v3106
      %v3108 = vpop.f32.mrb[0].mxu0
      %v3109 = vpop.f32.mrb[0].mxu0
      %v3110 = vadd.f32 0.0, %v3109
      %v3111 = vpop.f32.mrb[0].mxu0
      %3112 = vmatprep.mubr.bf16.mxu0 0
      %3113 = vmatmul.mubr.bf16.gmra.mrb[0].mxu0 %v2801
      %v3114 = vpop.f32.mrb[0].mxu0
      %v3115 = vadd.f32 0.0, %v3114
      %v3116 = vpop.f32.mrb[0].mxu0
      %v3117 = vpop.f32.mrb[0].mxu0
      %v3118 = vadd.f32 0.0, %v3117
      %v3119 = vpop.f32.mrb[0].mxu0
      %3120 = vmatprep.mubr.bf16.mxu0 0
      %3121 = vmatmul.mubr.bf16.gmra.mrb[0].mxu0 %v2804
      %v3122 = vpop.f32.mrb[0].mxu0
      %v3123 = vadd.f32 0.0, %v3122
      %v3124 = vpop.f32.mrb[0].mxu0
      %v3125 = vpop.f32.mrb[0].mxu0
      %v3126 = vadd.f32 0.0, %v3125
      %v3127 = vpop.f32.mrb[0].mxu0
      %3128 = vmatprep.mubr.bf16.mxu0 0
      %3129 = vmatmul.mubr.bf16.gmra.mrb[0].mxu0 %v2807
      %v3130 = vpop.f32.mrb[0].mxu0
      %v3131 = vadd.f32 0.0, %v3130
      %v3132 = vpop.f32.mrb[0].mxu0
      %v3133 = vpop.f32.mrb[0].mxu0
      %v3134 = vadd.f32 0.0, %v3133
      %v3135 = vpop.f32.mrb[0].mxu0
      %3136 = vmatprep.mubr.bf16.mxu0 0
      %3137 = vmatmul.mubr.bf16.gmra.mrb[0].mxu0 %v2810
      %v3138 = vpop.f32.mrb[0].mxu0
      %v3139 = vadd.f32 0.0, %v3138
      %v3140 = vpop.f32.mrb[0].mxu0
      %v3141 = vpop.f32.mrb[0].mxu0
      %v3142 = vadd.f32 0.0, %v3141
      %v3143 = vpop.f32.mrb[0].mxu0
      %3144 = vmatprep.mubr.bf16.mxu0 0
      %3145 = vmatmul.mubr.bf16.gmra.mrb[0].mxu0 %v2813
      %v3146 = vpop.f32.mrb[0].mxu0
      %v3147 = vadd.f32 0.0, %v3146
      %v3148 = vpop.f32.mrb[0].mxu0
      %v3149 = vpop.f32.mrb[0].mxu0
      %v3150 = vadd.f32 0.0, %v3149
      %v3151 = vpop.f32.mrb[0].mxu0
      %3152 = vmatprep.mubr.bf16.mxu0 0
      %3153 = vmatmul.mubr.bf16.gmra.mrb[0].mxu0 %v2816
      %v3154 = vpop.f32.mrb[0].mxu0
      %v3155 = vadd.f32 0.0, %v3154
      %v3156 = vpop.f32.mrb[0].mxu0
      %v3157 = vpop.f32.mrb[0].mxu0
      %v3158 = vadd.f32 0.0, %v3157
      %v3159 = vpop.f32.mrb[0].mxu0
      %3160 = vmatprep.mubr.bf16.mxu0 0
      %3161 = vmatmul.mubr.bf16.gmra.mrb[0].mxu0 %v2819
      %v3162 = vpop.f32.mrb[0].mxu0
      %v3163 = vadd.f32 0.0, %v3162
      %v3164 = vpop.f32.mrb[0].mxu0
      %v3165 = vpop.f32.mrb[0].mxu0
      %v3166 = vadd.f32 0.0, %v3165
      %v3167 = vpop.f32.mrb[0].mxu0
      %3168 = vmatprep.mubr.bf16.mxu0 0
      %3169 = vmatmul.mubr.bf16.gmra.mrb[0].mxu0 %v2822
      %v3170 = vpop.f32.mrb[0].mxu0
      %v3171 = vadd.f32 0.0, %v3170
      %v3172 = vpop.f32.mrb[0].mxu0
      %v3173 = vpop.f32.mrb[0].mxu0
      %v3174 = vadd.f32 0.0, %v3173
      %v3175 = vpop.f32.mrb[0].mxu0
      %3176 = vmatprep.mubr.bf16.mxu0 0
      %3177 = vmatmul.mubr.bf16.gmra.mrb[0].mxu0 %v2825
      %v3178 = vpop.f32.mrb[0].mxu0
      %v3179 = vadd.f32 0.0, %v3178
      %v3180 = vpop.f32.mrb[0].mxu0
      %v3181 = vpop.f32.mrb[0].mxu0
      %v3182 = vadd.f32 0.0, %v3181
      %v3183 = vpop.f32.mrb[0].mxu0
      %3184 = vmatprep.mubr.bf16.mxu0 0
      %3185 = vmatmul.mubr.bf16.gmra.mrb[0].mxu0 %v2828
      %v3186 = vpop.f32.mrb[0].mxu0
      %v3187 = vadd.f32 0.0, %v3186
      %v3188 = vpop.f32.mrb[0].mxu0
      %v3189 = vpop.f32.mrb[0].mxu0
      %v3190 = vadd.f32 0.0, %v3189
      %v3191 = vpop.f32.mrb[0].mxu0
      %3192 = vmatprep.mubr.bf16.mxu0 0
      %3193 = vmatmul.mubr.bf16.gmra.mrb[0].mxu0 %v2831
      %v3194 = vpop.f32.mrb[0].mxu0
      %v3195 = vadd.f32 0.0, %v3194
      %v3196 = vpop.f32.mrb[0].mxu0
      %v3197 = vpop.f32.mrb[0].mxu0
      %v3198 = vadd.f32 0.0, %v3197
      %v3199 = vpop.f32.mrb[0].mxu0
      %3200 = vmatprep.mubr.bf16.mxu0 0
      %3201 = vmatmul.mubr.bf16.gmra.mrb[0].mxu0 %v2834
      %v3202 = vpop.f32.mrb[0].mxu0
      %v3203 = vadd.f32 0.0, %v3202
      %v3204 = vpop.f32.mrb[0].mxu0
      %v3205 = vpop.f32.mrb[0].mxu0
      %v3206 = vadd.f32 0.0, %v3205
      %v3207 = vpop.f32.mrb[0].mxu0
      %3208 = vmatprep.mubr.bf16.mxu0 0
      %3209 = vmatmul.mubr.bf16.gmra.mrb[0].mxu0 %v2837
      %v3210 = vpop.f32.mrb[0].mxu0
      %v3211 = vadd.f32 0.0, %v3210
      %v3212 = vpop.f32.mrb[0].mxu0
      %v3213 = vpop.f32.mrb[0].mxu0
      %v3214 = vadd.f32 0.0, %v3213
      %v3215 = vpop.f32.mrb[0].mxu0
      %3216 = vmatprep.mubr.bf16.mxu0 0
      %3217 = vmatmul.mubr.bf16.gmra.mrb[0].mxu0 %v2840
      %v3218 = vpop.f32.mrb[0].mxu0
      %v3219 = vadd.f32 0.0, %v3218
      %v3220 = vpop.f32.mrb[0].mxu0
      %v3221 = vpop.f32.mrb[0].mxu0
      %v3222 = vadd.f32 0.0, %v3221
      %v3223 = vpop.f32.mrb[0].mxu0
      %3224 = vmatprep.mubr.bf16.mxu0 0
      %3225 = vmatmul.mubr.bf16.gmra.mrb[0].mxu0 %v2843
      %v3226 = vpop.f32.mrb[0].mxu0
      %v3227 = vadd.f32 0.0, %v3226
      %v3228 = vpop.f32.mrb[0].mxu0
      %v3229 = vpop.f32.mrb[0].mxu0
      %v3230 = vadd.f32 0.0, %v3229
      %v3231 = vpop.f32.mrb[0].mxu0
      %3232 = vmatprep.mubr.bf16.mxu0 0
      %3233 = vmatmul.mubr.bf16.gmra.mrb[0].mxu0 %v2846
      %v3234 = vpop.f32.mrb[0].mxu0
      %v3235 = vadd.f32 0.0, %v3234
      %v3236 = vpop.f32.mrb[0].mxu0
      %v3237 = vpop.f32.mrb[0].mxu0
      %v3238 = vadd.f32 0.0, %v3237
      %v3239 = vpop.f32.mrb[0].mxu0
      %3240 = vmatprep.mubr.bf16.mxu0 0
      %3241 = vmatmul.mubr.bf16.gmra.mrb[0].mxu0 %v2849
      %v3242 = vpop.f32.mrb[0].mxu0
      %v3243 = vadd.f32 0.0, %v3242
      %v3244 = vpop.f32.mrb[0].mxu0
      %v3245 = vpop.f32.mrb[0].mxu0
      %v3246 = vadd.f32 0.0, %v3245
      %v3247 = vpop.f32.mrb[0].mxu0
      %3248 = vmatprep.mubr.bf16.mxu0 0
      %3249 = vmatmul.mubr.bf16.gmra.mrb[0].mxu0 %v2852
      %v3250 = vpop.f32.mrb[0].mxu0
      %v3251 = vadd.f32 0.0, %v3250
      %v3252 = vpop.f32.mrb[0].mxu0
      %v3253 = vpop.f32.mrb[0].mxu0
      %v3254 = vadd.f32 0.0, %v3253
      %v3255 = vpop.f32.mrb[0].mxu0
      %3256 = vmatprep.mubr.bf16.mxu0 0
      %3257 = vmatmul.mubr.bf16.gmra.mrb[0].mxu0 %v2855
      %v3258 = vpop.f32.mrb[0].mxu0
      %v3259 = vadd.f32 0.0, %v3258
      %v3260 = vpop.f32.mrb[0].mxu0
      %v3261 = vpop.f32.mrb[0].mxu0
      %v3262 = vadd.f32 0.0, %v3261
      %v3263 = vpop.f32.mrb[0].mxu0
      %3264 = vmatprep.mubr.bf16.mxu0 0
      %3265 = vmatmul.mubr.bf16.gmra.mrb[0].mxu0 %v2858
      %v3266 = vpop.f32.mrb[0].mxu0
      %v3267 = vadd.f32 0.0, %v3266
      %v3268 = vpop.f32.mrb[0].mxu0
      %v3269 = vpop.f32.mrb[0].mxu0
      %v3270 = vadd.f32 0.0, %v3269
      %v3271 = vpop.f32.mrb[0].mxu0
      %3272 = vmatprep.mubr.bf16.mxu0 0
      %3273 = vmatmul.mubr.bf16.gmra.mrb[0].mxu0 %v2861
      %v3274 = vpop.f32.mrb[0].mxu0
      %v3275 = vadd.f32 0.0, %v3274
      %v3276 = vpop.f32.mrb[0].mxu0
      %v3277 = vpop.f32.mrb[0].mxu0
      %v3278 = vadd.f32 0.0, %v3277
      %v3279 = vpop.f32.mrb[0].mxu0
      %3280 = vmatprep.mubr.bf16.mxu0 0
      %3281 = vmatmul.mubr.bf16.gmra.mrb[0].mxu0 %v2864
      %v3282 = vpop.f32.mrb[0].mxu0
      %v3283 = vadd.f32 0.0, %v3282
      %v3284 = vpop.f32.mrb[0].mxu0
      %v3285 = vpop.f32.mrb[0].mxu0
      %v3286 = vadd.f32 0.0, %v3285
      %v3287 = vpop.f32.mrb[0].mxu0
      %3288 = vmatprep.mubr.bf16.mxu0 0
      %3289 = vmatmul.mubr.bf16.gmra.mrb[0].mxu0 %v2867
      %v3290 = vpop.f32.mrb[0].mxu0
      %v3291 = vadd.f32 0.0, %v3290
      %v3292 = vpop.f32.mrb[0].mxu0
      %v3293 = vpop.f32.mrb[0].mxu0
      %v3294 = vadd.f32 0.0, %v3293
      %v3295 = vpop.f32.mrb[0].mxu0
      %3296 = vmatprep.mubr.bf16.mxu0 0
      %3297 = vmatmul.mubr.bf16.gmra.mrb[0].mxu0 %v2870
      %v3298 = vpop.f32.mrb[0].mxu0
      %v3299 = vadd.f32 0.0, %v3298
      %v3300 = vpop.f32.mrb[0].mxu0
      %v3301 = vpop.f32.mrb[0].mxu0
      %v3302 = vadd.f32 0.0, %v3301
      %v3303 = vpop.f32.mrb[0].mxu0
      %3304 = vmatprep.mubr.bf16.mxu0 0
      %3305 = vmatmul.mubr.bf16.gmra.mrb[0].mxu0 %v2873
      %v3306 = vpop.f32.mrb[0].mxu0
      %v3307 = vadd.f32 0.0, %v3306
      %v3308 = vpop.f32.mrb[0].mxu0
      %v3309 = vpop.f32.mrb[0].mxu0
      %v3310 = vadd.f32 0.0, %v3309
      %v3311 = vpop.f32.mrb[0].mxu0
      %3312 = vmatprep.mubr.bf16.mxu0 0
      %3313 = vmatmul.mubr.bf16.gmra.mrb[0].mxu0 %v2876
      %v3314 = vpop.f32.mrb[0].mxu0
      %v3315 = vadd.f32 0.0, %v3314
      %v3316 = vpop.f32.mrb[0].mxu0
      %v3317 = vpop.f32.mrb[0].mxu0
      %v3318 = vadd.f32 0.0, %v3317
      %v3319 = vpop.f32.mrb[0].mxu0
      %3320 = vmatprep.mubr.bf16.mxu0 0
      %3321 = vmatmul.mubr.bf16.gmra.mrb[0].mxu0 %v2879
      %v3322 = vpop.f32.mrb[0].mxu0
      %v3323 = vadd.f32 0.0, %v3322
      %v3324 = vpop.f32.mrb[0].mxu0
      %v3325 = vpop.f32.mrb[0].mxu0
      %v3326 = vadd.f32 0.0, %v3325
      %v3327 = vpop.f32.mrb[0].mxu0
      %3328 = vmatprep.mubr.bf16.mxu0 0
      %3329 = vmatmul.mubr.bf16.gmra.mrb[0].mxu0 %v2882
      %v3330 = vpop.f32.mrb[0].mxu0
      %v3331 = vadd.f32 0.0, %v3330
      %v3332 = vpop.f32.mrb[0].mxu0
      %v3333 = vpop.f32.mrb[0].mxu0
      %v3334 = vadd.f32 0.0, %v3333
      %v3335 = vpop.f32.mrb[0].mxu0
      %3336 = vmatprep.mubr.bf16.mxu0 0
      %3337 = vmatmul.mubr.bf16.gmra.mrb[0].mxu0 %v2885
      %v3338 = vpop.f32.mrb[0].mxu0
      %v3339 = vadd.f32 0.0, %v3338
      %v3340 = vpop.f32.mrb[0].mxu0
      %v3341 = vpop.f32.mrb[0].mxu0
      %v3342 = vadd.f32 0.0, %v3341
      %v3343 = vpop.f32.mrb[0].mxu0
      %3344 = vmatprep.mubr.bf16.mxu0 0
      %3345 = vmatmul.mubr.bf16.gmra.mrb[0].mxu0 %v2888
      %v3346 = vpop.f32.mrb[0].mxu0
      %v3347 = vadd.f32 0.0, %v3346
      %v3348 = vpop.f32.mrb[0].mxu0
      %v3349 = vpop.f32.mrb[0].mxu0
      %v3350 = vadd.f32 0.0, %v3349
      %v3351 = vpop.f32.mrb[0].mxu0
      %3352 = vmatprep.mubr.bf16.mxu0 0
      %3353 = vmatmul.mubr.bf16.gmra.mrb[0].mxu0 %v2891
      %v3354 = vpop.f32.mrb[0].mxu0
      %v3355 = vadd.f32 0.0, %v3354
      %v3356 = vpop.f32.mrb[0].mxu0
      %v3357 = vpop.f32.mrb[0].mxu0
      %v3358 = vadd.f32 0.0, %v3357
      %v3359 = vpop.f32.mrb[0].mxu0
      %3360 = vmatprep.mubr.bf16.mxu0 0
      %3361 = vmatmul.mubr.bf16.gmra.mrb[0].mxu0 %v2894
      %v3362 = vpop.f32.mrb[0].mxu0
      %v3363 = vadd.f32 0.0, %v3362
      %v3364 = vpop.f32.mrb[0].mxu0
      %v3365 = vpop.f32.mrb[0].mxu0
      %v3366 = vadd.f32 0.0, %v3365
      %v3367 = vpop.f32.mrb[0].mxu0
      %3368 = vmatprep.mubr.bf16.mxu0 0
      %3369 = vmatmul.mubr.bf16.gmra.mrb[0].mxu0 %v2897
      %v3370 = vpop.f32.mrb[0].mxu0
      %v3371 = vadd.f32 0.0, %v3370
      %v3372 = vpop.f32.mrb[0].mxu0
      %v3373 = vpop.f32.mrb[0].mxu0
      %v3374 = vadd.f32 0.0, %v3373
      %v3375 = vpop.f32.mrb[0].mxu0
      %3376 = vmatprep.mubr.bf16.mxu0 0
      %3377 = vmatmul.mubr.bf16.gmra.mrb[0].mxu0 %v2900
      %v3378 = vpop.f32.mrb[0].mxu0
      %v3379 = vadd.f32 0.0, %v3378
      %v3380 = vpop.f32.mrb[0].mxu0
      %v3381 = vpop.f32.mrb[0].mxu0
      %v3382 = vadd.f32 0.0, %v3381
      %v3383 = vpop.f32.mrb[0].mxu0
      %3384 = vmatprep.mubr.bf16.mxu0 0
      %3385 = vmatmul.mubr.bf16.gmra.mrb[0].mxu0 %v2903
      %v3386 = vpop.f32.mrb[0].mxu0
      %v3387 = vadd.f32 0.0, %v3386
      %v3388 = vpop.f32.mrb[0].mxu0
      %v3389 = vpop.f32.mrb[0].mxu0
      %v3390 = vadd.f32 0.0, %v3389
      %v3391 = vpop.f32.mrb[0].mxu0
      %3392 = vmatprep.mubr.bf16.mxu0 0
      %3393 = vmatmul.mubr.bf16.gmra.mrb[0].mxu0 %v2906
      %v3394 = vpop.f32.mrb[0].mxu0
      %v3395 = vadd.f32 0.0, %v3394
      %v3396 = vpop.f32.mrb[0].mxu0
      %v3397 = vpop.f32.mrb[0].mxu0
      %v3398 = vadd.f32 0.0, %v3397
      %v3399 = vpop.f32.mrb[0].mxu0
      %3400 = vmatprep.mubr.bf16.mxu0 0
      %3401 = vmatmul.mubr.bf16.gmra.mrb[0].mxu0 %v2909
      %v3402 = vpop.f32.mrb[0].mxu0
      %v3403 = vadd.f32 0.0, %v3402
      %v3404 = vpop.f32.mrb[0].mxu0
      %v3405 = vpop.f32.mrb[0].mxu0
      %v3406 = vadd.f32 0.0, %v3405
      %v3407 = vpop.f32.mrb[0].mxu0
      %3408 = vmatprep.mubr.bf16.mxu0 0
      %3409 = vmatmul.mubr.bf16.gmra.mrb[0].mxu0 %v2912
      %v3410 = vpop.f32.mrb[0].mxu0
      %v3411 = vadd.f32 0.0, %v3410
      %v3412 = vpop.f32.mrb[0].mxu0
      %v3413 = vpop.f32.mrb[0].mxu0
      %v3414 = vadd.f32 0.0, %v3413
      %v3415 = vpop.f32.mrb[0].mxu0
      %3416 = vmatprep.mubr.bf16.mxu0 0
      %3417 = vmatmul.mubr.bf16.gmra.mrb[0].mxu0 %v2915
      %v3418 = vpop.f32.mrb[0].mxu0
      %v3419 = vadd.f32 0.0, %v3418
      %v3420 = vpop.f32.mrb[0].mxu0
      %v3421 = vpop.f32.mrb[0].mxu0
      %v3422 = vadd.f32 0.0, %v3421
      %v3423 = vpop.f32.mrb[0].mxu0
      %3424 = vmatprep.mubr.bf16.mxu0 0
      %3425 = vmatmul.mubr.bf16.gmra.mrb[0].mxu0 %v2918
      %v3426 = vpop.f32.mrb[0].mxu0
      %v3427 = vadd.f32 0.0, %v3426
      %v3428 = vpop.f32.mrb[0].mxu0
      %v3429 = vpop.f32.mrb[0].mxu0
      %v3430 = vadd.f32 0.0, %v3429
      %v3431 = vpop.f32.mrb[0].mxu0
      %3432 = vmatprep.mubr.bf16.mxu0 0
      %3433 = vmatmul.mubr.bf16.gmra.mrb[0].mxu0 %v2921
      %v3434 = vpop.f32.mrb[0].mxu0
      %v3435 = vadd.f32 0.0, %v3434
      %v3436 = vpop.f32.mrb[0].mxu0
      %v3437 = vpop.f32.mrb[0].mxu0
      %v3438 = vadd.f32 0.0, %v3437
      %v3439 = vpop.f32.mrb[0].mxu0
      %3440 = vmatprep.mubr.bf16.mxu0 0
      %3441 = vmatmul.mubr.bf16.gmra.mrb[0].mxu0 %v2924
      %v3442 = vpop.f32.mrb[0].mxu0
      %v3443 = vadd.f32 0.0, %v3442
      %v3444 = vpop.f32.mrb[0].mxu0
      %v3445 = vpop.f32.mrb[0].mxu0
      %v3446 = vadd.f32 0.0, %v3445
      %v3447 = vpop.f32.mrb[0].mxu0
      %3448 = vmatprep.mubr.bf16.mxu0 0
      %3449 = vmatmul.mubr.bf16.gmra.mrb[0].mxu0 %v2927
      %v3450 = vpop.f32.mrb[0].mxu0
      %v3451 = vadd.f32 0.0, %v3450
      %v3452 = vpop.f32.mrb[0].mxu0
      %v3453 = vpop.f32.mrb[0].mxu0
      %v3454 = vadd.f32 0.0, %v3453
      %v3455 = vpop.f32.mrb[0].mxu0
      %3456 = vmatprep.mubr.bf16.mxu0 0
      %3457 = vmatmul.mubr.bf16.gmra.mrb[0].mxu0 %v2930
      %v3458 = vpop.f32.mrb[0].mxu0
      %v3459 = vadd.f32 0.0, %v3458
      %v3460 = vpop.f32.mrb[0].mxu0
      %v3461 = vpop.f32.mrb[0].mxu0
      %v3462 = vadd.f32 0.0, %v3461
      %v3463 = vpop.f32.mrb[0].mxu0
      %3464 = vmatprep.mubr.bf16.mxu0 0
      %3465 = vmatmul.mubr.bf16.gmra.mrb[0].mxu0 %v2933
      %v3466 = vpop.f32.mrb[0].mxu0
      %v3467 = vadd.f32 0.0, %v3466
      %v3468 = vpop.f32.mrb[0].mxu0
      %v3469 = vpop.f32.mrb[0].mxu0
      %v3470 = vadd.f32 0.0, %v3469
      %v3471 = vpop.f32.mrb[0].mxu0
      %3472 = vmatprep.mubr.bf16.mxu0 0
      %3473 = vmatmul.mubr.bf16.gmra.mrb[0].mxu0 %v2936
      %v3474 = vpop.f32.mrb[0].mxu0
      %v3475 = vadd.f32 0.0, %v3474
      %v3476 = vpop.f32.mrb[0].mxu0
      %v3477 = vpop.f32.mrb[0].mxu0
      %v3478 = vadd.f32 0.0, %v3477
      %v3479 = vpop.f32.mrb[0].mxu0
      %3480 = vmatprep.mubr.bf16.mxu0 0
      %3481 = vmatmul.mubr.bf16.gmra.mrb[0].mxu0 %v2939
      %v3482 = vpop.f32.mrb[0].mxu0
      %v3483 = vadd.f32 0.0, %v3482
      %v3484 = vpop.f32.mrb[0].mxu0
      %v3485 = vpop.f32.mrb[0].mxu0
      %v3486 = vadd.f32 0.0, %v3485
      %v3487 = vpop.f32.mrb[0].mxu0
      %3488 = vdwg.mxu0
      %v3491 = vunpack.c.l.b16 %v2737
      %v3492 = vunpack.c.l.b16 %v2738
      %v3493 = vpack.c.b16 %v3492, %v3491
      %v3495 = vsel %vm1742, %v3493, 0
      %3497 = vmatprep.subr.bf16.mxu0 0
      %3498 = vmatpush1.bf16.msra.mxu0 %v3495
      %3499 = vmatprep.subr.bf16.mxu0 0
      %3500 = vmatpush1.bf16.msra.mxu0 0
      %3501 = vmatprep.subr.bf16.mxu0 0
      %3502 = vmatpush1.bf16.msra.mxu0 0
      %3503 = vmatprep.subr.bf16.mxu0 0
      %3504 = vmatpush1.bf16.msra.mxu0 0
      %3505 = vmatprep.subr.bf16.mxu0 0
      %3506 = vmatpush1.bf16.msra.mxu0 0
      %3507 = vmatprep.subr.bf16.mxu0 0
      %3508 = vmatpush1.bf16.msra.mxu0 0
      %3509 = vmatprep.subr.bf16.mxu0 0
      %3510 = vmatpush1.bf16.msra.mxu0 0
      %3511 = vmatprep.subr.bf16.mxu0 0
      %3512 = vmatpush1.bf16.msra.mxu0 0
      %3513 = vmatprep.subr.bf16.mxu0 0
      %3514 = vmatpush1.bf16.msra.mxu0 0
      %3515 = vmatprep.subr.bf16.mxu0 0
      %3516 = vmatpush1.bf16.msra.mxu0 0
      %3517 = vmatprep.subr.bf16.mxu0 0
      %3518 = vmatpush1.bf16.msra.mxu0 0
      %3519 = vmatprep.subr.bf16.mxu0 0
      %3520 = vmatpush1.bf16.msra.mxu0 0
      %3521 = vmatprep.subr.bf16.mxu0 0
      %3522 = vmatpush1.bf16.msra.mxu0 0
      %3523 = vmatprep.subr.bf16.mxu0 0
      %3524 = vmatpush1.bf16.msra.mxu0 0
      %3525 = vmatprep.subr.bf16.mxu0 0
      %3526 = vmatpush1.bf16.msra.mxu0 0
      %3527 = vmatprep.subr.bf16.mxu0 0
      %3528 = vmatpush1.bf16.msra.mxu0 0
      %3529 = vmatprep.mubr.bf16.mxu0 0
      %3530 = vmatmul.mubr.bf16.gmra.mrb[0].mxu0 %v2756
      %v3531 = vpop.f32.mrb[0].mxu0
      %v3532 = vadd.f32 %v2979, %v3531
      %v3533 = vpop.f32.mrb[0].mxu0
      %v3534 = vpop.f32.mrb[0].mxu0
      %v3535 = vadd.f32 %v2982, %v3534
      %v3536 = vpop.f32.mrb[0].mxu0
      %3537 = vmatprep.mubr.bf16.mxu0 0
      %3538 = vmatmul.mubr.bf16.gmra.mrb[0].mxu0 %v2759
      %v3539 = vpop.f32.mrb[0].mxu0
      %v3540 = vadd.f32 %v2987, %v3539
      %v3541 = vpop.f32.mrb[0].mxu0
      %v3542 = vpop.f32.mrb[0].mxu0
      %v3543 = vadd.f32 %v2990, %v3542
      %v3544 = vpop.f32.mrb[0].mxu0
      %3545 = vmatprep.mubr.bf16.mxu0 0
      %3546 = vmatmul.mubr.bf16.gmra.mrb[0].mxu0 %v2750
      %v3547 = vpop.f32.mrb[0].mxu0
      %v3548 = vadd.f32 %v2995, %v3547
      %v3549 = vpop.f32.mrb[0].mxu0
      %v3550 = vpop.f32.mrb[0].mxu0
      %v3551 = vadd.f32 %v2998, %v3550
      %v3552 = vpop.f32.mrb[0].mxu0
      %3553 = vmatprep.mubr.bf16.mxu0 0
      %3554 = vmatmul.mubr.bf16.gmra.mrb[0].mxu0 %v2753
      %v3555 = vpop.f32.mrb[0].mxu0
      %v3556 = vadd.f32 %v3003, %v3555
      %v3557 = vpop.f32.mrb[0].mxu0
      %v3558 = vpop.f32.mrb[0].mxu0
      %v3559 = vadd.f32 %v3006, %v3558
      %v3560 = vpop.f32.mrb[0].mxu0
      %3561 = vmatprep.mubr.bf16.mxu0 0
      %3562 = vmatmul.mubr.bf16.gmra.mrb[0].mxu0 %v2756
      %v3563 = vpop.f32.mrb[0].mxu0
      %v3564 = vadd.f32 %v3011, %v3563
      %v3565 = vpop.f32.mrb[0].mxu0
      %v3566 = vpop.f32.mrb[0].mxu0
      %v3567 = vadd.f32 %v3014, %v3566
      %v3568 = vpop.f32.mrb[0].mxu0
      %3569 = vmatprep.mubr.bf16.mxu0 0
      %3570 = vmatmul.mubr.bf16.gmra.mrb[0].mxu0 %v2759
      %v3571 = vpop.f32.mrb[0].mxu0
      %v3572 = vadd.f32 %v3019, %v3571
      %v3573 = vpop.f32.mrb[0].mxu0
      %v3574 = vpop.f32.mrb[0].mxu0
      %v3575 = vadd.f32 %v3022, %v3574
      %v3576 = vpop.f32.mrb[0].mxu0
      %3577 = vmatprep.mubr.bf16.mxu0 0
      %3578 = vmatmul.mubr.bf16.gmra.mrb[0].mxu0 %v2762
      %v3579 = vpop.f32.mrb[0].mxu0
      %v3580 = vadd.f32 %v3027, %v3579
      %v3581 = vpop.f32.mrb[0].mxu0
      %v3582 = vpop.f32.mrb[0].mxu0
      %v3583 = vadd.f32 %v3030, %v3582
      %v3584 = vpop.f32.mrb[0].mxu0
      %3585 = vmatprep.mubr.bf16.mxu0 0
      %3586 = vmatmul.mubr.bf16.gmra.mrb[0].mxu0 %v2765
      %v3587 = vpop.f32.mrb[0].mxu0
      %v3588 = vadd.f32 %v3035, %v3587
      %v3589 = vpop.f32.mrb[0].mxu0
      %v3590 = vpop.f32.mrb[0].mxu0
      %v3591 = vadd.f32 %v3038, %v3590
      %v3592 = vpop.f32.mrb[0].mxu0
      %3593 = vmatprep.mubr.bf16.mxu0 0
      %3594 = vmatmul.mubr.bf16.gmra.mrb[0].mxu0 %v2768
      %v3595 = vpop.f32.mrb[0].mxu0
      %v3596 = vadd.f32 %v3043, %v3595
      %v3597 = vpop.f32.mrb[0].mxu0
      %v3598 = vpop.f32.mrb[0].mxu0
      %v3599 = vadd.f32 %v3046, %v3598
      %v3600 = vpop.f32.mrb[0].mxu0
      %3601 = vmatprep.mubr.bf16.mxu0 0
      %3602 = vmatmul.mubr.bf16.gmra.mrb[0].mxu0 %v2771
      %v3603 = vpop.f32.mrb[0].mxu0
      %v3604 = vadd.f32 %v3051, %v3603
      %v3605 = vpop.f32.mrb[0].mxu0
      %v3606 = vpop.f32.mrb[0].mxu0
      %v3607 = vadd.f32 %v3054, %v3606
      %v3608 = vpop.f32.mrb[0].mxu0
      %3609 = vmatprep.mubr.bf16.mxu0 0
      %3610 = vmatmul.mubr.bf16.gmra.mrb[0].mxu0 %v2774
      %v3611 = vpop.f32.mrb[0].mxu0
      %v3612 = vadd.f32 %v3059, %v3611
      %v3613 = vpop.f32.mrb[0].mxu0
      %v3614 = vpop.f32.mrb[0].mxu0
      %v3615 = vadd.f32 %v3062, %v3614
      %v3616 = vpop.f32.mrb[0].mxu0
      %3617 = vmatprep.mubr.bf16.mxu0 0
      %3618 = vmatmul.mubr.bf16.gmra.mrb[0].mxu0 %v2777
      %v3619 = vpop.f32.mrb[0].mxu0
      %v3620 = vadd.f32 %v3067, %v3619
      %v3621 = vpop.f32.mrb[0].mxu0
      %v3622 = vpop.f32.mrb[0].mxu0
      %v3623 = vadd.f32 %v3070, %v3622
      %v3624 = vpop.f32.mrb[0].mxu0
      %3625 = vmatprep.mubr.bf16.mxu0 0
      %3626 = vmatmul.mubr.bf16.gmra.mrb[0].mxu0 %v2780
      %v3627 = vpop.f32.mrb[0].mxu0
      %v3628 = vadd.f32 %v3075, %v3627
      %v3629 = vpop.f32.mrb[0].mxu0
      %v3630 = vpop.f32.mrb[0].mxu0
      %v3631 = vadd.f32 %v3078, %v3630
      %v3632 = vpop.f32.mrb[0].mxu0
      %3633 = vmatprep.mubr.bf16.mxu0 0
      %3634 = vmatmul.mubr.bf16.gmra.mrb[0].mxu0 %v2783
      %v3635 = vpop.f32.mrb[0].mxu0
      %v3636 = vadd.f32 %v3083, %v3635
      %v3637 = vpop.f32.mrb[0].mxu0
      %v3638 = vpop.f32.mrb[0].mxu0
      %v3639 = vadd.f32 %v3086, %v3638
      %v3640 = vpop.f32.mrb[0].mxu0
      %3641 = vmatprep.mubr.bf16.mxu0 0
      %3642 = vmatmul.mubr.bf16.gmra.mrb[0].mxu0 %v2786
      %v3643 = vpop.f32.mrb[0].mxu0
      %v3644 = vadd.f32 %v3091, %v3643
      %v3645 = vpop.f32.mrb[0].mxu0
      %v3646 = vpop.f32.mrb[0].mxu0
      %v3647 = vadd.f32 %v3094, %v3646
      %v3648 = vpop.f32.mrb[0].mxu0
      %3649 = vmatprep.mubr.bf16.mxu0 0
      %3650 = vmatmul.mubr.bf16.gmra.mrb[0].mxu0 %v2789
      %v3651 = vpop.f32.mrb[0].mxu0
      %v3652 = vadd.f32 %v3099, %v3651
      %v3653 = vpop.f32.mrb[0].mxu0
      %v3654 = vpop.f32.mrb[0].mxu0
      %v3655 = vadd.f32 %v3102, %v3654
      %v3656 = vpop.f32.mrb[0].mxu0
      %3657 = vmatprep.mubr.bf16.mxu0 0
      %3658 = vmatmul.mubr.bf16.gmra.mrb[0].mxu0 %v2792
      %v3659 = vpop.f32.mrb[0].mxu0
      %v3660 = vadd.f32 %v3107, %v3659
      %v3661 = vpop.f32.mrb[0].mxu0
      %v3662 = vpop.f32.mrb[0].mxu0
      %v3663 = vadd.f32 %v3110, %v3662
      %v3664 = vpop.f32.mrb[0].mxu0
      %3665 = vmatprep.mubr.bf16.mxu0 0
      %3666 = vmatmul.mubr.bf16.gmra.mrb[0].mxu0 %v2795
      %v3667 = vpop.f32.mrb[0].mxu0
      %v3668 = vadd.f32 %v3115, %v3667
      %v3669 = vpop.f32.mrb[0].mxu0
      %v3670 = vpop.f32.mrb[0].mxu0
      %v3671 = vadd.f32 %v3118, %v3670
      %v3672 = vpop.f32.mrb[0].mxu0
      %3673 = vmatprep.mubr.bf16.mxu0 0
      %3674 = vmatmul.mubr.bf16.gmra.mrb[0].mxu0 %v2798
      %v3675 = vpop.f32.mrb[0].mxu0
      %v3676 = vadd.f32 %v3123, %v3675
      %v3677 = vpop.f32.mrb[0].mxu0
      %v3678 = vpop.f32.mrb[0].mxu0
      %v3679 = vadd.f32 %v3126, %v3678
      %v3680 = vpop.f32.mrb[0].mxu0
      %3681 = vmatprep.mubr.bf16.mxu0 0
      %3682 = vmatmul.mubr.bf16.gmra.mrb[0].mxu0 %v2801
      %v3683 = vpop.f32.mrb[0].mxu0
      %v3684 = vadd.f32 %v3131, %v3683
      %v3685 = vpop.f32.mrb[0].mxu0
      %v3686 = vpop.f32.mrb[0].mxu0
      %v3687 = vadd.f32 %v3134, %v3686
      %v3688 = vpop.f32.mrb[0].mxu0
      %3689 = vmatprep.mubr.bf16.mxu0 0
      %3690 = vmatmul.mubr.bf16.gmra.mrb[0].mxu0 %v2804
      %v3691 = vpop.f32.mrb[0].mxu0
      %v3692 = vadd.f32 %v3139, %v3691
      %v3693 = vpop.f32.mrb[0].mxu0
      %v3694 = vpop.f32.mrb[0].mxu0
      %v3695 = vadd.f32 %v3142, %v3694
      %v3696 = vpop.f32.mrb[0].mxu0
      %3697 = vmatprep.mubr.bf16.mxu0 0
      %3698 = vmatmul.mubr.bf16.gmra.mrb[0].mxu0 %v2807
      %v3699 = vpop.f32.mrb[0].mxu0
      %v3700 = vadd.f32 %v3147, %v3699
      %v3701 = vpop.f32.mrb[0].mxu0
      %v3702 = vpop.f32.mrb[0].mxu0
      %v3703 = vadd.f32 %v3150, %v3702
      %v3704 = vpop.f32.mrb[0].mxu0
      %3705 = vmatprep.mubr.bf16.mxu0 0
      %3706 = vmatmul.mubr.bf16.gmra.mrb[0].mxu0 %v2810
      %v3707 = vpop.f32.mrb[0].mxu0
      %v3708 = vadd.f32 %v3155, %v3707
      %v3709 = vpop.f32.mrb[0].mxu0
      %v3710 = vpop.f32.mrb[0].mxu0
      %v3711 = vadd.f32 %v3158, %v3710
      %v3712 = vpop.f32.mrb[0].mxu0
      %3713 = vmatprep.mubr.bf16.mxu0 0
      %3714 = vmatmul.mubr.bf16.gmra.mrb[0].mxu0 %v2813
      %v3715 = vpop.f32.mrb[0].mxu0
      %v3716 = vadd.f32 %v3163, %v3715
      %v3717 = vpop.f32.mrb[0].mxu0
      %v3718 = vpop.f32.mrb[0].mxu0
      %v3719 = vadd.f32 %v3166, %v3718
      %v3720 = vpop.f32.mrb[0].mxu0
      %3721 = vmatprep.mubr.bf16.mxu0 0
      %3722 = vmatmul.mubr.bf16.gmra.mrb[0].mxu0 %v2816
      %v3723 = vpop.f32.mrb[0].mxu0
      %v3724 = vadd.f32 %v3171, %v3723
      %v3725 = vpop.f32.mrb[0].mxu0
      %v3726 = vpop.f32.mrb[0].mxu0
      %v3727 = vadd.f32 %v3174, %v3726
      %v3728 = vpop.f32.mrb[0].mxu0
      %3729 = vmatprep.mubr.bf16.mxu0 0
      %3730 = vmatmul.mubr.bf16.gmra.mrb[0].mxu0 %v2819
      %v3731 = vpop.f32.mrb[0].mxu0
      %v3732 = vadd.f32 %v3179, %v3731
      %v3733 = vpop.f32.mrb[0].mxu0
      %v3734 = vpop.f32.mrb[0].mxu0
      %v3735 = vadd.f32 %v3182, %v3734
      %v3736 = vpop.f32.mrb[0].mxu0
      %3737 = vmatprep.mubr.bf16.mxu0 0
      %3738 = vmatmul.mubr.bf16.gmra.mrb[0].mxu0 %v2822
      %v3739 = vpop.f32.mrb[0].mxu0
      %v3740 = vadd.f32 %v3187, %v3739
      %v3741 = vpop.f32.mrb[0].mxu0
      %v3742 = vpop.f32.mrb[0].mxu0
      %v3743 = vadd.f32 %v3190, %v3742
      %v3744 = vpop.f32.mrb[0].mxu0
      %3745 = vmatprep.mubr.bf16.mxu0 0
      %3746 = vmatmul.mubr.bf16.gmra.mrb[0].mxu0 %v2825
      %v3747 = vpop.f32.mrb[0].mxu0
      %v3748 = vadd.f32 %v3195, %v3747
      %v3749 = vpop.f32.mrb[0].mxu0
      %v3750 = vpop.f32.mrb[0].mxu0
      %v3751 = vadd.f32 %v3198, %v3750
      %v3752 = vpop.f32.mrb[0].mxu0
      %3753 = vmatprep.mubr.bf16.mxu0 0
      %3754 = vmatmul.mubr.bf16.gmra.mrb[0].mxu0 %v2828
      %v3755 = vpop.f32.mrb[0].mxu0
      %v3756 = vadd.f32 %v3203, %v3755
      %v3757 = vpop.f32.mrb[0].mxu0
      %v3758 = vpop.f32.mrb[0].mxu0
      %v3759 = vadd.f32 %v3206, %v3758
      %v3760 = vpop.f32.mrb[0].mxu0
      %3761 = vmatprep.mubr.bf16.mxu0 0
      %3762 = vmatmul.mubr.bf16.gmra.mrb[0].mxu0 %v2831
      %v3763 = vpop.f32.mrb[0].mxu0
      %v3764 = vadd.f32 %v3211, %v3763
      %v3765 = vpop.f32.mrb[0].mxu0
      %v3766 = vpop.f32.mrb[0].mxu0
      %v3767 = vadd.f32 %v3214, %v3766
      %v3768 = vpop.f32.mrb[0].mxu0
      %3769 = vmatprep.mubr.bf16.mxu0 0
      %3770 = vmatmul.mubr.bf16.gmra.mrb[0].mxu0 %v2834
      %v3771 = vpop.f32.mrb[0].mxu0
      %v3772 = vadd.f32 %v3219, %v3771
      %v3773 = vpop.f32.mrb[0].mxu0
      %v3774 = vpop.f32.mrb[0].mxu0
      %v3775 = vadd.f32 %v3222, %v3774
      %v3776 = vpop.f32.mrb[0].mxu0
      %3777 = vmatprep.mubr.bf16.mxu0 0
      %3778 = vmatmul.mubr.bf16.gmra.mrb[0].mxu0 %v2837
      %v3779 = vpop.f32.mrb[0].mxu0
      %v3780 = vadd.f32 %v3227, %v3779
      %v3781 = vpop.f32.mrb[0].mxu0
      %v3782 = vpop.f32.mrb[0].mxu0
      %v3783 = vadd.f32 %v3230, %v3782
      %v3784 = vpop.f32.mrb[0].mxu0
      %3785 = vmatprep.mubr.bf16.mxu0 0
      %3786 = vmatmul.mubr.bf16.gmra.mrb[0].mxu0 %v2840
      %v3787 = vpop.f32.mrb[0].mxu0
      %v3788 = vadd.f32 %v3235, %v3787
      %v3789 = vpop.f32.mrb[0].mxu0
      %v3790 = vpop.f32.mrb[0].mxu0
      %v3791 = vadd.f32 %v3238, %v3790
      %v3792 = vpop.f32.mrb[0].mxu0
      %3793 = vmatprep.mubr.bf16.mxu0 0
      %3794 = vmatmul.mubr.bf16.gmra.mrb[0].mxu0 %v2843
      %v3795 = vpop.f32.mrb[0].mxu0
      %v3796 = vadd.f32 %v3243, %v3795
      %v3797 = vpop.f32.mrb[0].mxu0
      %v3798 = vpop.f32.mrb[0].mxu0
      %v3799 = vadd.f32 %v3246, %v3798
      %v3800 = vpop.f32.mrb[0].mxu0
      %3801 = vmatprep.mubr.bf16.mxu0 0
      %3802 = vmatmul.mubr.bf16.gmra.mrb[0].mxu0 %v2846
      %v3803 = vpop.f32.mrb[0].mxu0
      %v3804 = vadd.f32 %v3251, %v3803
      %v3805 = vpop.f32.mrb[0].mxu0
      %v3806 = vpop.f32.mrb[0].mxu0
      %v3807 = vadd.f32 %v3254, %v3806
      %v3808 = vpop.f32.mrb[0].mxu0
      %3809 = vmatprep.mubr.bf16.mxu0 0
      %3810 = vmatmul.mubr.bf16.gmra.mrb[0].mxu0 %v2849
      %v3811 = vpop.f32.mrb[0].mxu0
      %v3812 = vadd.f32 %v3259, %v3811
      %v3813 = vpop.f32.mrb[0].mxu0
      %v3814 = vpop.f32.mrb[0].mxu0
      %v3815 = vadd.f32 %v3262, %v3814
      %v3816 = vpop.f32.mrb[0].mxu0
      %3817 = vmatprep.mubr.bf16.mxu0 0
      %3818 = vmatmul.mubr.bf16.gmra.mrb[0].mxu0 %v2852
      %v3819 = vpop.f32.mrb[0].mxu0
      %v3820 = vadd.f32 %v3267, %v3819
      %v3821 = vpop.f32.mrb[0].mxu0
      %v3822 = vpop.f32.mrb[0].mxu0
      %v3823 = vadd.f32 %v3270, %v3822
      %v3824 = vpop.f32.mrb[0].mxu0
      %3825 = vmatprep.mubr.bf16.mxu0 0
      %3826 = vmatmul.mubr.bf16.gmra.mrb[0].mxu0 %v2855
      %v3827 = vpop.f32.mrb[0].mxu0
      %v3828 = vadd.f32 %v3275, %v3827
      %v3829 = vpop.f32.mrb[0].mxu0
      %v3830 = vpop.f32.mrb[0].mxu0
      %v3831 = vadd.f32 %v3278, %v3830
      %v3832 = vpop.f32.mrb[0].mxu0
      %3833 = vmatprep.mubr.bf16.mxu0 0
      %3834 = vmatmul.mubr.bf16.gmra.mrb[0].mxu0 %v2858
      %v3835 = vpop.f32.mrb[0].mxu0
      %v3836 = vadd.f32 %v3283, %v3835
      %v3837 = vpop.f32.mrb[0].mxu0
      %v3838 = vpop.f32.mrb[0].mxu0
      %v3839 = vadd.f32 %v3286, %v3838
      %v3840 = vpop.f32.mrb[0].mxu0
      %3841 = vmatprep.mubr.bf16.mxu0 0
      %3842 = vmatmul.mubr.bf16.gmra.mrb[0].mxu0 %v2861
      %v3843 = vpop.f32.mrb[0].mxu0
      %v3844 = vadd.f32 %v3291, %v3843
      %v3845 = vpop.f32.mrb[0].mxu0
      %v3846 = vpop.f32.mrb[0].mxu0
      %v3847 = vadd.f32 %v3294, %v3846
      %v3848 = vpop.f32.mrb[0].mxu0
      %3849 = vmatprep.mubr.bf16.mxu0 0
      %3850 = vmatmul.mubr.bf16.gmra.mrb[0].mxu0 %v2864
      %v3851 = vpop.f32.mrb[0].mxu0
      %v3852 = vadd.f32 %v3299, %v3851
      %v3853 = vpop.f32.mrb[0].mxu0
      %v3854 = vpop.f32.mrb[0].mxu0
      %v3855 = vadd.f32 %v3302, %v3854
      %v3856 = vpop.f32.mrb[0].mxu0
      %3857 = vmatprep.mubr.bf16.mxu0 0
      %3858 = vmatmul.mubr.bf16.gmra.mrb[0].mxu0 %v2867
      %v3859 = vpop.f32.mrb[0].mxu0
      %v3860 = vadd.f32 %v3307, %v3859
      %v3861 = vpop.f32.mrb[0].mxu0
      %v3862 = vpop.f32.mrb[0].mxu0
      %v3863 = vadd.f32 %v3310, %v3862
      %v3864 = vpop.f32.mrb[0].mxu0
      %3865 = vmatprep.mubr.bf16.mxu0 0
      %3866 = vmatmul.mubr.bf16.gmra.mrb[0].mxu0 %v2870
      %v3867 = vpop.f32.mrb[0].mxu0
      %v3868 = vadd.f32 %v3315, %v3867
      %v3869 = vpop.f32.mrb[0].mxu0
      %v3870 = vpop.f32.mrb[0].mxu0
      %v3871 = vadd.f32 %v3318, %v3870
      %v3872 = vpop.f32.mrb[0].mxu0
      %3873 = vmatprep.mubr.bf16.mxu0 0
      %3874 = vmatmul.mubr.bf16.gmra.mrb[0].mxu0 %v2873
      %v3875 = vpop.f32.mrb[0].mxu0
      %v3876 = vadd.f32 %v3323, %v3875
      %v3877 = vpop.f32.mrb[0].mxu0
      %v3878 = vpop.f32.mrb[0].mxu0
      %v3879 = vadd.f32 %v3326, %v3878
      %v3880 = vpop.f32.mrb[0].mxu0
      %3881 = vmatprep.mubr.bf16.mxu0 0
      %3882 = vmatmul.mubr.bf16.gmra.mrb[0].mxu0 %v2876
      %v3883 = vpop.f32.mrb[0].mxu0
      %v3884 = vadd.f32 %v3331, %v3883
      %v3885 = vpop.f32.mrb[0].mxu0
      %v3886 = vpop.f32.mrb[0].mxu0
      %v3887 = vadd.f32 %v3334, %v3886
      %v3888 = vpop.f32.mrb[0].mxu0
      %3889 = vmatprep.mubr.bf16.mxu0 0
      %3890 = vmatmul.mubr.bf16.gmra.mrb[0].mxu0 %v2879
      %v3891 = vpop.f32.mrb[0].mxu0
      %v3892 = vadd.f32 %v3339, %v3891
      %v3893 = vpop.f32.mrb[0].mxu0
      %v3894 = vpop.f32.mrb[0].mxu0
      %v3895 = vadd.f32 %v3342, %v3894
      %v3896 = vpop.f32.mrb[0].mxu0
      %3897 = vmatprep.mubr.bf16.mxu0 0
      %3898 = vmatmul.mubr.bf16.gmra.mrb[0].mxu0 %v2882
      %v3899 = vpop.f32.mrb[0].mxu0
      %v3900 = vadd.f32 %v3347, %v3899
      %v3901 = vpop.f32.mrb[0].mxu0
      %v3902 = vpop.f32.mrb[0].mxu0
      %v3903 = vadd.f32 %v3350, %v3902
      %v3904 = vpop.f32.mrb[0].mxu0
      %3905 = vmatprep.mubr.bf16.mxu0 0
      %3906 = vmatmul.mubr.bf16.gmra.mrb[0].mxu0 %v2885
      %v3907 = vpop.f32.mrb[0].mxu0
      %v3908 = vadd.f32 %v3355, %v3907
      %v3909 = vpop.f32.mrb[0].mxu0
      %v3910 = vpop.f32.mrb[0].mxu0
      %v3911 = vadd.f32 %v3358, %v3910
      %v3912 = vpop.f32.mrb[0].mxu0
      %3913 = vmatprep.mubr.bf16.mxu0 0
      %3914 = vmatmul.mubr.bf16.gmra.mrb[0].mxu0 %v2888
      %v3915 = vpop.f32.mrb[0].mxu0
      %v3916 = vadd.f32 %v3363, %v3915
      %v3917 = vpop.f32.mrb[0].mxu0
      %v3918 = vpop.f32.mrb[0].mxu0
      %v3919 = vadd.f32 %v3366, %v3918
      %v3920 = vpop.f32.mrb[0].mxu0
      %3921 = vmatprep.mubr.bf16.mxu0 0
      %3922 = vmatmul.mubr.bf16.gmra.mrb[0].mxu0 %v2891
      %v3923 = vpop.f32.mrb[0].mxu0
      %v3924 = vadd.f32 %v3371, %v3923
      %v3925 = vpop.f32.mrb[0].mxu0
      %v3926 = vpop.f32.mrb[0].mxu0
      %v3927 = vadd.f32 %v3374, %v3926
      %v3928 = vpop.f32.mrb[0].mxu0
      %3929 = vmatprep.mubr.bf16.mxu0 0
      %3930 = vmatmul.mubr.bf16.gmra.mrb[0].mxu0 %v2894
      %v3931 = vpop.f32.mrb[0].mxu0
      %v3932 = vadd.f32 %v3379, %v3931
      %v3933 = vpop.f32.mrb[0].mxu0
      %v3934 = vpop.f32.mrb[0].mxu0
      %v3935 = vadd.f32 %v3382, %v3934
      %v3936 = vpop.f32.mrb[0].mxu0
      %3937 = vmatprep.mubr.bf16.mxu0 0
      %3938 = vmatmul.mubr.bf16.gmra.mrb[0].mxu0 %v2897
      %v3939 = vpop.f32.mrb[0].mxu0
      %v3940 = vadd.f32 %v3387, %v3939
      %v3941 = vpop.f32.mrb[0].mxu0
      %v3942 = vpop.f32.mrb[0].mxu0
      %v3943 = vadd.f32 %v3390, %v3942
      %v3944 = vpop.f32.mrb[0].mxu0
      %3945 = vmatprep.mubr.bf16.mxu0 0
      %3946 = vmatmul.mubr.bf16.gmra.mrb[0].mxu0 %v2900
      %v3947 = vpop.f32.mrb[0].mxu0
      %v3948 = vadd.f32 %v3395, %v3947
      %v3949 = vpop.f32.mrb[0].mxu0
      %v3950 = vpop.f32.mrb[0].mxu0
      %v3951 = vadd.f32 %v3398, %v3950
      %v3952 = vpop.f32.mrb[0].mxu0
      %3953 = vmatprep.mubr.bf16.mxu0 0
      %3954 = vmatmul.mubr.bf16.gmra.mrb[0].mxu0 %v2903
      %v3955 = vpop.f32.mrb[0].mxu0
      %v3956 = vadd.f32 %v3403, %v3955
      %v3957 = vpop.f32.mrb[0].mxu0
      %v3958 = vpop.f32.mrb[0].mxu0
      %v3959 = vadd.f32 %v3406, %v3958
      %v3960 = vpop.f32.mrb[0].mxu0
      %3961 = vmatprep.mubr.bf16.mxu0 0
      %3962 = vmatmul.mubr.bf16.gmra.mrb[0].mxu0 %v2906
      %v3963 = vpop.f32.mrb[0].mxu0
      %v3964 = vadd.f32 %v3411, %v3963
      %v3965 = vpop.f32.mrb[0].mxu0
      %v3966 = vpop.f32.mrb[0].mxu0
      %v3967 = vadd.f32 %v3414, %v3966
      %v3968 = vpop.f32.mrb[0].mxu0
      %3969 = vmatprep.mubr.bf16.mxu0 0
      %3970 = vmatmul.mubr.bf16.gmra.mrb[0].mxu0 %v2909
      %v3971 = vpop.f32.mrb[0].mxu0
      %v3972 = vadd.f32 %v3419, %v3971
      %v3973 = vpop.f32.mrb[0].mxu0
      %v3974 = vpop.f32.mrb[0].mxu0
      %v3975 = vadd.f32 %v3422, %v3974
      %v3976 = vpop.f32.mrb[0].mxu0
      %3977 = vmatprep.mubr.bf16.mxu0 0
      %3978 = vmatmul.mubr.bf16.gmra.mrb[0].mxu0 %v2912
      %v3979 = vpop.f32.mrb[0].mxu0
      %v3980 = vadd.f32 %v3427, %v3979
      %v3981 = vpop.f32.mrb[0].mxu0
      %v3982 = vpop.f32.mrb[0].mxu0
      %v3983 = vadd.f32 %v3430, %v3982
      %v3984 = vpop.f32.mrb[0].mxu0
      %3985 = vmatprep.mubr.bf16.mxu0 0
      %3986 = vmatmul.mubr.bf16.gmra.mrb[0].mxu0 %v2915
      %v3987 = vpop.f32.mrb[0].mxu0
      %v3988 = vadd.f32 %v3435, %v3987
      %v3989 = vpop.f32.mrb[0].mxu0
      %v3990 = vpop.f32.mrb[0].mxu0
      %v3991 = vadd.f32 %v3438, %v3990
      %v3992 = vpop.f32.mrb[0].mxu0
      %3993 = vmatprep.mubr.bf16.mxu0 0
      %3994 = vmatmul.mubr.bf16.gmra.mrb[0].mxu0 %v2918
      %v3995 = vpop.f32.mrb[0].mxu0
      %v3996 = vadd.f32 %v3443, %v3995
      %v3997 = vpop.f32.mrb[0].mxu0
      %v3998 = vpop.f32.mrb[0].mxu0
      %v3999 = vadd.f32 %v3446, %v3998
      %v4000 = vpop.f32.mrb[0].mxu0
      %4001 = vmatprep.mubr.bf16.mxu0 0
      %4002 = vmatmul.mubr.bf16.gmra.mrb[0].mxu0 %v2921
      %v4003 = vpop.f32.mrb[0].mxu0
      %v4004 = vadd.f32 %v3451, %v4003
      %v4005 = vpop.f32.mrb[0].mxu0
      %v4006 = vpop.f32.mrb[0].mxu0
      %v4007 = vadd.f32 %v3454, %v4006
      %v4008 = vpop.f32.mrb[0].mxu0
      %4009 = vmatprep.mubr.bf16.mxu0 0
      %4010 = vmatmul.mubr.bf16.gmra.mrb[0].mxu0 %v2924
      %v4011 = vpop.f32.mrb[0].mxu0
      %v4012 = vadd.f32 %v3459, %v4011
      %v4013 = vpop.f32.mrb[0].mxu0
      %v4014 = vpop.f32.mrb[0].mxu0
      %v4015 = vadd.f32 %v3462, %v4014
      %v4016 = vpop.f32.mrb[0].mxu0
      %4017 = vmatprep.mubr.bf16.mxu0 0
      %4018 = vmatmul.mubr.bf16.gmra.mrb[0].mxu0 %v2927
      %v4019 = vpop.f32.mrb[0].mxu0
      %v4020 = vadd.f32 %v3467, %v4019
      %v4021 = vpop.f32.mrb[0].mxu0
      %v4022 = vpop.f32.mrb[0].mxu0
      %v4023 = vadd.f32 %v3470, %v4022
      %v4024 = vpop.f32.mrb[0].mxu0
      %4025 = vmatprep.mubr.bf16.mxu0 0
      %4026 = vmatmul.mubr.bf16.gmra.mrb[0].mxu0 %v2930
      %v4027 = vpop.f32.mrb[0].mxu0
      %v4028 = vadd.f32 %v3475, %v4027
      %v4029 = vpop.f32.mrb[0].mxu0
      %v4030 = vpop.f32.mrb[0].mxu0
      %v4031 = vadd.f32 %v3478, %v4030
      %v4032 = vpop.f32.mrb[0].mxu0
      %4033 = vmatprep.mubr.bf16.mxu0 0
      %4034 = vmatmul.mubr.bf16.gmra.mrb[0].mxu0 %v2933
      %v4035 = vpop.f32.mrb[0].mxu0
      %v4036 = vadd.f32 %v3483, %v4035
      %v4037 = vpop.f32.mrb[0].mxu0
      %v4038 = vpop.f32.mrb[0].mxu0
      %v4039 = vadd.f32 %v3486, %v4038
      %v4040 = vpop.f32.mrb[0].mxu0
      %4041 = vdwg.mxu0
      %v4044 = vunpack.c.l.b16 %v2741
      %v4045 = vunpack.c.l.b16 %v2742
      %v4046 = vpack.c.b16 %v4045, %v4044
      %v4048 = vsel %vm1742, %v4046, 0
      %4050 = vmatprep.subr.bf16.mxu0 0
      %4051 = vmatpush1.bf16.msra.mxu0 %v4048
      %4052 = vmatprep.subr.bf16.mxu0 0
      %4053 = vmatpush1.bf16.msra.mxu0 0
      %4054 = vmatprep.subr.bf16.mxu0 0
      %4055 = vmatpush1.bf16.msra.mxu0 0
      %4056 = vmatprep.subr.bf16.mxu0 0
      %4057 = vmatpush1.bf16.msra.mxu0 0
      %4058 = vmatprep.subr.bf16.mxu0 0
      %4059 = vmatpush1.bf16.msra.mxu0 0
      %4060 = vmatprep.subr.bf16.mxu0 0
      %4061 = vmatpush1.bf16.msra.mxu0 0
      %4062 = vmatprep.subr.bf16.mxu0 0
      %4063 = vmatpush1.bf16.msra.mxu0 0
      %4064 = vmatprep.subr.bf16.mxu0 0
      %4065 = vmatpush1.bf16.msra.mxu0 0
      %4066 = vmatprep.subr.bf16.mxu0 0
      %4067 = vmatpush1.bf16.msra.mxu0 0
      %4068 = vmatprep.subr.bf16.mxu0 0
      %4069 = vmatpush1.bf16.msra.mxu0 0
      %4070 = vmatprep.subr.bf16.mxu0 0
      %4071 = vmatpush1.bf16.msra.mxu0 0
      %4072 = vmatprep.subr.bf16.mxu0 0
      %4073 = vmatpush1.bf16.msra.mxu0 0
      %4074 = vmatprep.subr.bf16.mxu0 0
      %4075 = vmatpush1.bf16.msra.mxu0 0
      %4076 = vmatprep.subr.bf16.mxu0 0
      %4077 = vmatpush1.bf16.msra.mxu0 0
      %4078 = vmatprep.subr.bf16.mxu0 0
      %4079 = vmatpush1.bf16.msra.mxu0 0
      %4080 = vmatprep.subr.bf16.mxu0 0
      %4081 = vmatpush1.bf16.msra.mxu0 0
      %4082 = vmatprep.mubr.bf16.mxu0 0
      %4083 = vmatmul.mubr.bf16.gmra.mrb[0].mxu0 %v2756
      %v4084 = vpop.f32.mrb[0].mxu0
      %v4085 = vadd.f32 0.0, %v4084
      %v4086 = vpop.f32.mrb[0].mxu0
      %v4087 = vpop.f32.mrb[0].mxu0
      %v4088 = vadd.f32 0.0, %v4087
      %v4089 = vpop.f32.mrb[0].mxu0
      %4090 = vmatprep.mubr.bf16.mxu0 0
      %4091 = vmatmul.mubr.bf16.gmra.mrb[0].mxu0 %v2759
      %v4092 = vpop.f32.mrb[0].mxu0
      %v4093 = vadd.f32 0.0, %v4092
      %v4094 = vpop.f32.mrb[0].mxu0
      %v4095 = vpop.f32.mrb[0].mxu0
      %v4096 = vadd.f32 0.0, %v4095
      %v4097 = vpop.f32.mrb[0].mxu0
      %4098 = vmatprep.mubr.bf16.mxu0 0
      %4099 = vmatmul.mubr.bf16.gmra.mrb[0].mxu0 %v2762
      %v4100 = vpop.f32.mrb[0].mxu0
      %v4101 = vadd.f32 0.0, %v4100
      %v4102 = vpop.f32.mrb[0].mxu0
      %v4103 = vpop.f32.mrb[0].mxu0
      %v4104 = vadd.f32 0.0, %v4103
      %v4105 = vpop.f32.mrb[0].mxu0
      %4106 = vmatprep.mubr.bf16.mxu0 0
      %4107 = vmatmul.mubr.bf16.gmra.mrb[0].mxu0 %v2765
      %v4108 = vpop.f32.mrb[0].mxu0
      %v4109 = vadd.f32 0.0, %v4108
      %v4110 = vpop.f32.mrb[0].mxu0
      %v4111 = vpop.f32.mrb[0].mxu0
      %v4112 = vadd.f32 0.0, %v4111
      %v4113 = vpop.f32.mrb[0].mxu0
      %4114 = vmatprep.mubr.bf16.mxu0 0
      %4115 = vmatmul.mubr.bf16.gmra.mrb[0].mxu0 %v2768
      %v4116 = vpop.f32.mrb[0].mxu0
      %v4117 = vadd.f32 0.0, %v4116
      %v4118 = vpop.f32.mrb[0].mxu0
      %v4119 = vpop.f32.mrb[0].mxu0
      %v4120 = vadd.f32 0.0, %v4119
      %v4121 = vpop.f32.mrb[0].mxu0
      %4122 = vmatprep.mubr.bf16.mxu0 0
      %4123 = vmatmul.mubr.bf16.gmra.mrb[0].mxu0 %v2771
      %v4124 = vpop.f32.mrb[0].mxu0
      %v4125 = vadd.f32 0.0, %v4124
      %v4126 = vpop.f32.mrb[0].mxu0
      %v4127 = vpop.f32.mrb[0].mxu0
      %v4128 = vadd.f32 0.0, %v4127
      %v4129 = vpop.f32.mrb[0].mxu0
      %4130 = vmatprep.mubr.bf16.mxu0 0
      %4131 = vmatmul.mubr.bf16.gmra.mrb[0].mxu0 %v2774
      %v4132 = vpop.f32.mrb[0].mxu0
      %v4133 = vadd.f32 0.0, %v4132
      %v4134 = vpop.f32.mrb[0].mxu0
      %v4135 = vpop.f32.mrb[0].mxu0
      %v4136 = vadd.f32 0.0, %v4135
      %v4137 = vpop.f32.mrb[0].mxu0
      %4138 = vmatprep.mubr.bf16.mxu0 0
      %4139 = vmatmul.mubr.bf16.gmra.mrb[0].mxu0 %v2777
      %v4140 = vpop.f32.mrb[0].mxu0
      %v4141 = vadd.f32 0.0, %v4140
      %v4142 = vpop.f32.mrb[0].mxu0
      %v4143 = vpop.f32.mrb[0].mxu0
      %v4144 = vadd.f32 0.0, %v4143
      %v4145 = vpop.f32.mrb[0].mxu0
      %4146 = vmatprep.mubr.bf16.mxu0 0
      %4147 = vmatmul.mubr.bf16.gmra.mrb[0].mxu0 %v2780
      %v4148 = vpop.f32.mrb[0].mxu0
      %v4149 = vadd.f32 0.0, %v4148
      %v4150 = vpop.f32.mrb[0].mxu0
      %v4151 = vpop.f32.mrb[0].mxu0
      %v4152 = vadd.f32 0.0, %v4151
      %v4153 = vpop.f32.mrb[0].mxu0
      %4154 = vmatprep.mubr.bf16.mxu0 0
      %4155 = vmatmul.mubr.bf16.gmra.mrb[0].mxu0 %v2783
      %v4156 = vpop.f32.mrb[0].mxu0
      %v4157 = vadd.f32 0.0, %v4156
      %v4158 = vpop.f32.mrb[0].mxu0
      %v4159 = vpop.f32.mrb[0].mxu0
      %v4160 = vadd.f32 0.0, %v4159
      %v4161 = vpop.f32.mrb[0].mxu0
      %4162 = vmatprep.mubr.bf16.mxu0 0
      %4163 = vmatmul.mubr.bf16.gmra.mrb[0].mxu0 %v2786
      %v4164 = vpop.f32.mrb[0].mxu0
      %v4165 = vadd.f32 0.0, %v4164
      %v4166 = vpop.f32.mrb[0].mxu0
      %v4167 = vpop.f32.mrb[0].mxu0
      %v4168 = vadd.f32 0.0, %v4167
      %v4169 = vpop.f32.mrb[0].mxu0
      %4170 = vmatprep.mubr.bf16.mxu0 0
      %4171 = vmatmul.mubr.bf16.gmra.mrb[0].mxu0 %v2789
      %v4172 = vpop.f32.mrb[0].mxu0
      %v4173 = vadd.f32 0.0, %v4172
      %v4174 = vpop.f32.mrb[0].mxu0
      %v4175 = vpop.f32.mrb[0].mxu0
      %v4176 = vadd.f32 0.0, %v4175
      %v4177 = vpop.f32.mrb[0].mxu0
      %4178 = vmatprep.mubr.bf16.mxu0 0
      %4179 = vmatmul.mubr.bf16.gmra.mrb[0].mxu0 %v2792
      %v4180 = vpop.f32.mrb[0].mxu0
      %v4181 = vadd.f32 0.0, %v4180
      %v4182 = vpop.f32.mrb[0].mxu0
      %v4183 = vpop.f32.mrb[0].mxu0
      %v4184 = vadd.f32 0.0, %v4183
      %v4185 = vpop.f32.mrb[0].mxu0
      %4186 = vmatprep.mubr.bf16.mxu0 0
      %4187 = vmatmul.mubr.bf16.gmra.mrb[0].mxu0 %v2795
      %v4188 = vpop.f32.mrb[0].mxu0
      %v4189 = vadd.f32 0.0, %v4188
      %v4190 = vpop.f32.mrb[0].mxu0
      %v4191 = vpop.f32.mrb[0].mxu0
      %v4192 = vadd.f32 0.0, %v4191
      %v4193 = vpop.f32.mrb[0].mxu0
      %4194 = vmatprep.mubr.bf16.mxu0 0
      %4195 = vmatmul.mubr.bf16.gmra.mrb[0].mxu0 %v2798
      %v4196 = vpop.f32.mrb[0].mxu0
      %v4197 = vadd.f32 0.0, %v4196
      %v4198 = vpop.f32.mrb[0].mxu0
      %v4199 = vpop.f32.mrb[0].mxu0
      %v4200 = vadd.f32 0.0, %v4199
      %v4201 = vpop.f32.mrb[0].mxu0
      %4202 = vmatprep.mubr.bf16.mxu0 0
      %4203 = vmatmul.mubr.bf16.gmra.mrb[0].mxu0 %v2801
      %v4204 = vpop.f32.mrb[0].mxu0
      %v4205 = vadd.f32 0.0, %v4204
      %v4206 = vpop.f32.mrb[0].mxu0
      %v4207 = vpop.f32.mrb[0].mxu0
      %v4208 = vadd.f32 0.0, %v4207
      %v4209 = vpop.f32.mrb[0].mxu0
      %4210 = vmatprep.mubr.bf16.mxu0 0
      %4211 = vmatmul.mubr.bf16.gmra.mrb[0].mxu0 %v2804
      %v4212 = vpop.f32.mrb[0].mxu0
      %v4213 = vadd.f32 0.0, %v4212
      %v4214 = vpop.f32.mrb[0].mxu0
      %v4215 = vpop.f32.mrb[0].mxu0
      %v4216 = vadd.f32 0.0, %v4215
      %v4217 = vpop.f32.mrb[0].mxu0
      %4218 = vmatprep.mubr.bf16.mxu0 0
      %4219 = vmatmul.mubr.bf16.gmra.mrb[0].mxu0 %v2807
      %v4220 = vpop.f32.mrb[0].mxu0
      %v4221 = vadd.f32 0.0, %v4220
      %v4222 = vpop.f32.mrb[0].mxu0
      %v4223 = vpop.f32.mrb[0].mxu0
      %v4224 = vadd.f32 0.0, %v4223
      %v4225 = vpop.f32.mrb[0].mxu0
      %4226 = vmatprep.mubr.bf16.mxu0 0
      %4227 = vmatmul.mubr.bf16.gmra.mrb[0].mxu0 %v2810
      %v4228 = vpop.f32.mrb[0].mxu0
      %v4229 = vadd.f32 0.0, %v4228
      %v4230 = vpop.f32.mrb[0].mxu0
      %v4231 = vpop.f32.mrb[0].mxu0
      %v4232 = vadd.f32 0.0, %v4231
      %v4233 = vpop.f32.mrb[0].mxu0
      %4234 = vmatprep.mubr.bf16.mxu0 0
      %4235 = vmatmul.mubr.bf16.gmra.mrb[0].mxu0 %v2813
      %v4236 = vpop.f32.mrb[0].mxu0
      %v4237 = vadd.f32 0.0, %v4236
      %v4238 = vpop.f32.mrb[0].mxu0
      %v4239 = vpop.f32.mrb[0].mxu0
      %v4240 = vadd.f32 0.0, %v4239
      %v4241 = vpop.f32.mrb[0].mxu0
      %4242 = vmatprep.mubr.bf16.mxu0 0
      %4243 = vmatmul.mubr.bf16.gmra.mrb[0].mxu0 %v2816
      %v4244 = vpop.f32.mrb[0].mxu0
      %v4245 = vadd.f32 0.0, %v4244
      %v4246 = vpop.f32.mrb[0].mxu0
      %v4247 = vpop.f32.mrb[0].mxu0
      %v4248 = vadd.f32 0.0, %v4247
      %v4249 = vpop.f32.mrb[0].mxu0
      %4250 = vmatprep.mubr.bf16.mxu0 0
      %4251 = vmatmul.mubr.bf16.gmra.mrb[0].mxu0 %v2819
      %v4252 = vpop.f32.mrb[0].mxu0
      %v4253 = vadd.f32 0.0, %v4252
      %v4254 = vpop.f32.mrb[0].mxu0
      %v4255 = vpop.f32.mrb[0].mxu0
      %v4256 = vadd.f32 0.0, %v4255
      %v4257 = vpop.f32.mrb[0].mxu0
      %4258 = vmatprep.mubr.bf16.mxu0 0
      %4259 = vmatmul.mubr.bf16.gmra.mrb[0].mxu0 %v2822
      %v4260 = vpop.f32.mrb[0].mxu0
      %v4261 = vadd.f32 0.0, %v4260
      %v4262 = vpop.f32.mrb[0].mxu0
      %v4263 = vpop.f32.mrb[0].mxu0
      %v4264 = vadd.f32 0.0, %v4263
      %v4265 = vpop.f32.mrb[0].mxu0
      %4266 = vmatprep.mubr.bf16.mxu0 0
      %4267 = vmatmul.mubr.bf16.gmra.mrb[0].mxu0 %v2825
      %v4268 = vpop.f32.mrb[0].mxu0
      %v4269 = vadd.f32 0.0, %v4268
      %v4270 = vpop.f32.mrb[0].mxu0
      %v4271 = vpop.f32.mrb[0].mxu0
      %v4272 = vadd.f32 0.0, %v4271
      %v4273 = vpop.f32.mrb[0].mxu0
      %4274 = vmatprep.mubr.bf16.mxu0 0
      %4275 = vmatmul.mubr.bf16.gmra.mrb[0].mxu0 %v2828
      %v4276 = vpop.f32.mrb[0].mxu0
      %v4277 = vadd.f32 0.0, %v4276
      %v4278 = vpop.f32.mrb[0].mxu0
      %v4279 = vpop.f32.mrb[0].mxu0
      %v4280 = vadd.f32 0.0, %v4279
      %v4281 = vpop.f32.mrb[0].mxu0
      %4282 = vmatprep.mubr.bf16.mxu0 0
      %4283 = vmatmul.mubr.bf16.gmra.mrb[0].mxu0 %v2831
      %v4284 = vpop.f32.mrb[0].mxu0
      %v4285 = vadd.f32 0.0, %v4284
      %v4286 = vpop.f32.mrb[0].mxu0
      %v4287 = vpop.f32.mrb[0].mxu0
      %v4288 = vadd.f32 0.0, %v4287
      %v4289 = vpop.f32.mrb[0].mxu0
      %4290 = vmatprep.mubr.bf16.mxu0 0
      %4291 = vmatmul.mubr.bf16.gmra.mrb[0].mxu0 %v2834
      %v4292 = vpop.f32.mrb[0].mxu0
      %v4293 = vadd.f32 0.0, %v4292
      %v4294 = vpop.f32.mrb[0].mxu0
      %v4295 = vpop.f32.mrb[0].mxu0
      %v4296 = vadd.f32 0.0, %v4295
      %v4297 = vpop.f32.mrb[0].mxu0
      %4298 = vmatprep.mubr.bf16.mxu0 0
      %4299 = vmatmul.mubr.bf16.gmra.mrb[0].mxu0 %v2837
      %v4300 = vpop.f32.mrb[0].mxu0
      %v4301 = vadd.f32 0.0, %v4300
      %v4302 = vpop.f32.mrb[0].mxu0
      %v4303 = vpop.f32.mrb[0].mxu0
      %v4304 = vadd.f32 0.0, %v4303
      %v4305 = vpop.f32.mrb[0].mxu0
      %4306 = vmatprep.mubr.bf16.mxu0 0
      %4307 = vmatmul.mubr.bf16.gmra.mrb[0].mxu0 %v2840
      %v4308 = vpop.f32.mrb[0].mxu0
      %v4309 = vadd.f32 0.0, %v4308
      %v4310 = vpop.f32.mrb[0].mxu0
      %v4311 = vpop.f32.mrb[0].mxu0
      %v4312 = vadd.f32 0.0, %v4311
      %v4313 = vpop.f32.mrb[0].mxu0
      %4314 = vmatprep.mubr.bf16.mxu0 0
      %4315 = vmatmul.mubr.bf16.gmra.mrb[0].mxu0 %v2843
      %v4316 = vpop.f32.mrb[0].mxu0
      %v4317 = vadd.f32 0.0, %v4316
      %v4318 = vpop.f32.mrb[0].mxu0
      %v4319 = vpop.f32.mrb[0].mxu0
      %v4320 = vadd.f32 0.0, %v4319
      %v4321 = vpop.f32.mrb[0].mxu0
      %4322 = vmatprep.mubr.bf16.mxu0 0
      %4323 = vmatmul.mubr.bf16.gmra.mrb[0].mxu0 %v2846
      %v4324 = vpop.f32.mrb[0].mxu0
      %v4325 = vadd.f32 0.0, %v4324
      %v4326 = vpop.f32.mrb[0].mxu0
      %v4327 = vpop.f32.mrb[0].mxu0
      %v4328 = vadd.f32 0.0, %v4327
      %v4329 = vpop.f32.mrb[0].mxu0
      %4330 = vmatprep.mubr.bf16.mxu0 0
      %4331 = vmatmul.mubr.bf16.gmra.mrb[0].mxu0 %v2849
      %v4332 = vpop.f32.mrb[0].mxu0
      %v4333 = vadd.f32 0.0, %v4332
      %v4334 = vpop.f32.mrb[0].mxu0
      %v4335 = vpop.f32.mrb[0].mxu0
      %v4336 = vadd.f32 0.0, %v4335
      %v4337 = vpop.f32.mrb[0].mxu0
      %4338 = vmatprep.mubr.bf16.mxu0 0
      %4339 = vmatmul.mubr.bf16.gmra.mrb[0].mxu0 %v2852
      %v4340 = vpop.f32.mrb[0].mxu0
      %v4341 = vadd.f32 0.0, %v4340
      %v4342 = vpop.f32.mrb[0].mxu0
      %v4343 = vpop.f32.mrb[0].mxu0
      %v4344 = vadd.f32 0.0, %v4343
      %v4345 = vpop.f32.mrb[0].mxu0
      %4346 = vmatprep.mubr.bf16.mxu0 0
      %4347 = vmatmul.mubr.bf16.gmra.mrb[0].mxu0 %v2855
      %v4348 = vpop.f32.mrb[0].mxu0
      %v4349 = vadd.f32 0.0, %v4348
      %v4350 = vpop.f32.mrb[0].mxu0
      %v4351 = vpop.f32.mrb[0].mxu0
      %v4352 = vadd.f32 0.0, %v4351
      %v4353 = vpop.f32.mrb[0].mxu0
      %4354 = vmatprep.mubr.bf16.mxu0 0
      %4355 = vmatmul.mubr.bf16.gmra.mrb[0].mxu0 %v2858
      %v4356 = vpop.f32.mrb[0].mxu0
      %v4357 = vadd.f32 0.0, %v4356
      %v4358 = vpop.f32.mrb[0].mxu0
      %v4359 = vpop.f32.mrb[0].mxu0
      %v4360 = vadd.f32 0.0, %v4359
      %v4361 = vpop.f32.mrb[0].mxu0
      %4362 = vmatprep.mubr.bf16.mxu0 0
      %4363 = vmatmul.mubr.bf16.gmra.mrb[0].mxu0 %v2861
      %v4364 = vpop.f32.mrb[0].mxu0
      %v4365 = vadd.f32 0.0, %v4364
      %v4366 = vpop.f32.mrb[0].mxu0
      %v4367 = vpop.f32.mrb[0].mxu0
      %v4368 = vadd.f32 0.0, %v4367
      %v4369 = vpop.f32.mrb[0].mxu0
      %4370 = vmatprep.mubr.bf16.mxu0 0
      %4371 = vmatmul.mubr.bf16.gmra.mrb[0].mxu0 %v2864
      %v4372 = vpop.f32.mrb[0].mxu0
      %v4373 = vadd.f32 0.0, %v4372
      %v4374 = vpop.f32.mrb[0].mxu0
      %v4375 = vpop.f32.mrb[0].mxu0
      %v4376 = vadd.f32 0.0, %v4375
      %v4377 = vpop.f32.mrb[0].mxu0
      %4378 = vmatprep.mubr.bf16.mxu0 0
      %4379 = vmatmul.mubr.bf16.gmra.mrb[0].mxu0 %v2867
      %v4380 = vpop.f32.mrb[0].mxu0
      %v4381 = vadd.f32 0.0, %v4380
      %v4382 = vpop.f32.mrb[0].mxu0
      %v4383 = vpop.f32.mrb[0].mxu0
      %v4384 = vadd.f32 0.0, %v4383
      %v4385 = vpop.f32.mrb[0].mxu0
      %4386 = vmatprep.mubr.bf16.mxu0 0
      %4387 = vmatmul.mubr.bf16.gmra.mrb[0].mxu0 %v2870
      %v4388 = vpop.f32.mrb[0].mxu0
      %v4389 = vadd.f32 0.0, %v4388
      %v4390 = vpop.f32.mrb[0].mxu0
      %v4391 = vpop.f32.mrb[0].mxu0
      %v4392 = vadd.f32 0.0, %v4391
      %v4393 = vpop.f32.mrb[0].mxu0
      %4394 = vmatprep.mubr.bf16.mxu0 0
      %4395 = vmatmul.mubr.bf16.gmra.mrb[0].mxu0 %v2873
      %v4396 = vpop.f32.mrb[0].mxu0
      %v4397 = vadd.f32 0.0, %v4396
      %v4398 = vpop.f32.mrb[0].mxu0
      %v4399 = vpop.f32.mrb[0].mxu0
      %v4400 = vadd.f32 0.0, %v4399
      %v4401 = vpop.f32.mrb[0].mxu0
      %4402 = vmatprep.mubr.bf16.mxu0 0
      %4403 = vmatmul.mubr.bf16.gmra.mrb[0].mxu0 %v2876
      %v4404 = vpop.f32.mrb[0].mxu0
      %v4405 = vadd.f32 0.0, %v4404
      %v4406 = vpop.f32.mrb[0].mxu0
      %v4407 = vpop.f32.mrb[0].mxu0
      %v4408 = vadd.f32 0.0, %v4407
      %v4409 = vpop.f32.mrb[0].mxu0
      %4410 = vmatprep.mubr.bf16.mxu0 0
      %4411 = vmatmul.mubr.bf16.gmra.mrb[0].mxu0 %v2879
      %v4412 = vpop.f32.mrb[0].mxu0
      %v4413 = vadd.f32 0.0, %v4412
      %v4414 = vpop.f32.mrb[0].mxu0
      %v4415 = vpop.f32.mrb[0].mxu0
      %v4416 = vadd.f32 0.0, %v4415
      %v4417 = vpop.f32.mrb[0].mxu0
      %4418 = vmatprep.mubr.bf16.mxu0 0
      %4419 = vmatmul.mubr.bf16.gmra.mrb[0].mxu0 %v2882
      %v4420 = vpop.f32.mrb[0].mxu0
      %v4421 = vadd.f32 0.0, %v4420
      %v4422 = vpop.f32.mrb[0].mxu0
      %v4423 = vpop.f32.mrb[0].mxu0
      %v4424 = vadd.f32 0.0, %v4423
      %v4425 = vpop.f32.mrb[0].mxu0
      %4426 = vmatprep.mubr.bf16.mxu0 0
      %4427 = vmatmul.mubr.bf16.gmra.mrb[0].mxu0 %v2885
      %v4428 = vpop.f32.mrb[0].mxu0
      %v4429 = vadd.f32 0.0, %v4428
      %v4430 = vpop.f32.mrb[0].mxu0
      %v4431 = vpop.f32.mrb[0].mxu0
      %v4432 = vadd.f32 0.0, %v4431
      %v4433 = vpop.f32.mrb[0].mxu0
      %4434 = vmatprep.mubr.bf16.mxu0 0
      %4435 = vmatmul.mubr.bf16.gmra.mrb[0].mxu0 %v2888
      %v4436 = vpop.f32.mrb[0].mxu0
      %v4437 = vadd.f32 0.0, %v4436
      %v4438 = vpop.f32.mrb[0].mxu0
      %v4439 = vpop.f32.mrb[0].mxu0
      %v4440 = vadd.f32 0.0, %v4439
      %v4441 = vpop.f32.mrb[0].mxu0
      %4442 = vmatprep.mubr.bf16.mxu0 0
      %4443 = vmatmul.mubr.bf16.gmra.mrb[0].mxu0 %v2891
      %v4444 = vpop.f32.mrb[0].mxu0
      %v4445 = vadd.f32 0.0, %v4444
      %v4446 = vpop.f32.mrb[0].mxu0
      %v4447 = vpop.f32.mrb[0].mxu0
      %v4448 = vadd.f32 0.0, %v4447
      %v4449 = vpop.f32.mrb[0].mxu0
      %4450 = vmatprep.mubr.bf16.mxu0 0
      %4451 = vmatmul.mubr.bf16.gmra.mrb[0].mxu0 %v2894
      %v4452 = vpop.f32.mrb[0].mxu0
      %v4453 = vadd.f32 0.0, %v4452
      %v4454 = vpop.f32.mrb[0].mxu0
      %v4455 = vpop.f32.mrb[0].mxu0
      %v4456 = vadd.f32 0.0, %v4455
      %v4457 = vpop.f32.mrb[0].mxu0
      %4458 = vmatprep.mubr.bf16.mxu0 0
      %4459 = vmatmul.mubr.bf16.gmra.mrb[0].mxu0 %v2897
      %v4460 = vpop.f32.mrb[0].mxu0
      %v4461 = vadd.f32 0.0, %v4460
      %v4462 = vpop.f32.mrb[0].mxu0
      %v4463 = vpop.f32.mrb[0].mxu0
      %v4464 = vadd.f32 0.0, %v4463
      %v4465 = vpop.f32.mrb[0].mxu0
      %4466 = vmatprep.mubr.bf16.mxu0 0
      %4467 = vmatmul.mubr.bf16.gmra.mrb[0].mxu0 %v2900
      %v4468 = vpop.f32.mrb[0].mxu0
      %v4469 = vadd.f32 0.0, %v4468
      %v4470 = vpop.f32.mrb[0].mxu0
      %v4471 = vpop.f32.mrb[0].mxu0
      %v4472 = vadd.f32 0.0, %v4471
      %v4473 = vpop.f32.mrb[0].mxu0
      %4474 = vmatprep.mubr.bf16.mxu0 0
      %4475 = vmatmul.mubr.bf16.gmra.mrb[0].mxu0 %v2903
      %v4476 = vpop.f32.mrb[0].mxu0
      %v4477 = vadd.f32 0.0, %v4476
      %v4478 = vpop.f32.mrb[0].mxu0
      %v4479 = vpop.f32.mrb[0].mxu0
      %v4480 = vadd.f32 0.0, %v4479
      %v4481 = vpop.f32.mrb[0].mxu0
      %4482 = vmatprep.mubr.bf16.mxu0 0
      %4483 = vmatmul.mubr.bf16.gmra.mrb[0].mxu0 %v2906
      %v4484 = vpop.f32.mrb[0].mxu0
      %v4485 = vadd.f32 0.0, %v4484
      %v4486 = vpop.f32.mrb[0].mxu0
      %v4487 = vpop.f32.mrb[0].mxu0
      %v4488 = vadd.f32 0.0, %v4487
      %v4489 = vpop.f32.mrb[0].mxu0
      %4490 = vmatprep.mubr.bf16.mxu0 0
      %4491 = vmatmul.mubr.bf16.gmra.mrb[0].mxu0 %v2909
      %v4492 = vpop.f32.mrb[0].mxu0
      %v4493 = vadd.f32 0.0, %v4492
      %v4494 = vpop.f32.mrb[0].mxu0
      %v4495 = vpop.f32.mrb[0].mxu0
      %v4496 = vadd.f32 0.0, %v4495
      %v4497 = vpop.f32.mrb[0].mxu0
      %4498 = vmatprep.mubr.bf16.mxu0 0
      %4499 = vmatmul.mubr.bf16.gmra.mrb[0].mxu0 %v2912
      %v4500 = vpop.f32.mrb[0].mxu0
      %v4501 = vadd.f32 0.0, %v4500
      %v4502 = vpop.f32.mrb[0].mxu0
      %v4503 = vpop.f32.mrb[0].mxu0
      %v4504 = vadd.f32 0.0, %v4503
      %v4505 = vpop.f32.mrb[0].mxu0
      %4506 = vmatprep.mubr.bf16.mxu0 0
      %4507 = vmatmul.mubr.bf16.gmra.mrb[0].mxu0 %v2915
      %v4508 = vpop.f32.mrb[0].mxu0
      %v4509 = vadd.f32 0.0, %v4508
      %v4510 = vpop.f32.mrb[0].mxu0
      %v4511 = vpop.f32.mrb[0].mxu0
      %v4512 = vadd.f32 0.0, %v4511
      %v4513 = vpop.f32.mrb[0].mxu0
      %4514 = vmatprep.mubr.bf16.mxu0 0
      %4515 = vmatmul.mubr.bf16.gmra.mrb[0].mxu0 %v2918
      %v4516 = vpop.f32.mrb[0].mxu0
      %v4517 = vadd.f32 0.0, %v4516
      %v4518 = vpop.f32.mrb[0].mxu0
      %v4519 = vpop.f32.mrb[0].mxu0
      %v4520 = vadd.f32 0.0, %v4519
      %v4521 = vpop.f32.mrb[0].mxu0
      %4522 = vmatprep.mubr.bf16.mxu0 0
      %4523 = vmatmul.mubr.bf16.gmra.mrb[0].mxu0 %v2921
      %v4524 = vpop.f32.mrb[0].mxu0
      %v4525 = vadd.f32 0.0, %v4524
      %v4526 = vpop.f32.mrb[0].mxu0
      %v4527 = vpop.f32.mrb[0].mxu0
      %v4528 = vadd.f32 0.0, %v4527
      %v4529 = vpop.f32.mrb[0].mxu0
      %4530 = vmatprep.mubr.bf16.mxu0 0
      %4531 = vmatmul.mubr.bf16.gmra.mrb[0].mxu0 %v2924
      %v4532 = vpop.f32.mrb[0].mxu0
      %v4533 = vadd.f32 0.0, %v4532
      %v4534 = vpop.f32.mrb[0].mxu0
      %v4535 = vpop.f32.mrb[0].mxu0
      %v4536 = vadd.f32 0.0, %v4535
      %v4537 = vpop.f32.mrb[0].mxu0
      %4538 = vmatprep.mubr.bf16.mxu0 0
      %4539 = vmatmul.mubr.bf16.gmra.mrb[0].mxu0 %v2927
      %v4540 = vpop.f32.mrb[0].mxu0
      %v4541 = vadd.f32 0.0, %v4540
      %v4542 = vpop.f32.mrb[0].mxu0
      %v4543 = vpop.f32.mrb[0].mxu0
      %v4544 = vadd.f32 0.0, %v4543
      %v4545 = vpop.f32.mrb[0].mxu0
      %4546 = vmatprep.mubr.bf16.mxu0 0
      %4547 = vmatmul.mubr.bf16.gmra.mrb[0].mxu0 %v2930
      %v4548 = vpop.f32.mrb[0].mxu0
      %v4549 = vadd.f32 0.0, %v4548
      %v4550 = vpop.f32.mrb[0].mxu0
      %v4551 = vpop.f32.mrb[0].mxu0
      %v4552 = vadd.f32 0.0, %v4551
      %v4553 = vpop.f32.mrb[0].mxu0
      %4554 = vmatprep.mubr.bf16.mxu0 0
      %4555 = vmatmul.mubr.bf16.gmra.mrb[0].mxu0 %v2933
      %v4556 = vpop.f32.mrb[0].mxu0
      %v4557 = vadd.f32 0.0, %v4556
      %v4558 = vpop.f32.mrb[0].mxu0
      %v4559 = vpop.f32.mrb[0].mxu0
      %v4560 = vadd.f32 0.0, %v4559
      %v4561 = vpop.f32.mrb[0].mxu0
      %4562 = vmatprep.mubr.bf16.mxu0 0
      %4563 = vmatmul.mubr.bf16.gmra.mrb[0].mxu0 %v2936
      %v4564 = vpop.f32.mrb[0].mxu0
      %v4565 = vadd.f32 0.0, %v4564
      %v4566 = vpop.f32.mrb[0].mxu0
      %v4567 = vpop.f32.mrb[0].mxu0
      %v4568 = vadd.f32 0.0, %v4567
      %v4569 = vpop.f32.mrb[0].mxu0
      %4570 = vmatprep.mubr.bf16.mxu0 0
      %4571 = vmatmul.mubr.bf16.gmra.mrb[0].mxu0 %v2939
      %v4572 = vpop.f32.mrb[0].mxu0
      %v4573 = vadd.f32 0.0, %v4572
      %v4574 = vpop.f32.mrb[0].mxu0
      %v4575 = vpop.f32.mrb[0].mxu0
      %v4576 = vadd.f32 0.0, %v4575
      %v4577 = vpop.f32.mrb[0].mxu0
      %4578 = vmatprep.mubr.bf16.mxu0 0
      %4579 = vmatmul.mubr.bf16.gmra.mrb[0].mxu0 %v2930
      %v4580 = vpop.f32.mrb[0].mxu0
      %v4581 = vadd.f32 0.0, %v4580
      %v4582 = vpop.f32.mrb[0].mxu0
      %v4583 = vpop.f32.mrb[0].mxu0
      %v4584 = vadd.f32 0.0, %v4583
      %v4585 = vpop.f32.mrb[0].mxu0
      %4586 = vmatprep.mubr.bf16.mxu0 0
      %4587 = vmatmul.mubr.bf16.gmra.mrb[0].mxu0 %v2933
      %v4588 = vpop.f32.mrb[0].mxu0
      %v4589 = vadd.f32 0.0, %v4588
      %v4590 = vpop.f32.mrb[0].mxu0
      %v4591 = vpop.f32.mrb[0].mxu0
      %v4592 = vadd.f32 0.0, %v4591
      %v4593 = vpop.f32.mrb[0].mxu0
      %4594 = vdwg.mxu0
      %v4595 = vadd.f32 %v3532, %v4085
      %v4596 = vadd.f32 %v3535, %v4088
      %v4597 = vadd.f32 %v3540, %v4093
      %v4598 = vadd.f32 %v3543, %v4096
      %v4599 = vadd.f32 %v3548, %v4101
      %v4600 = vadd.f32 %v3551, %v4104
      %v4601 = vadd.f32 %v3556, %v4109
      %v4602 = vadd.f32 %v3559, %v4112
      %v4603 = vadd.f32 %v3564, %v4117
      %v4604 = vadd.f32 %v3567, %v4120
      %v4605 = vadd.f32 %v3572, %v4125
      %v4606 = vadd.f32 %v3575, %v4128
      %v4607 = vadd.f32 %v3580, %v4133
      %v4608 = vadd.f32 %v3583, %v4136
      %v4609 = vadd.f32 %v3588, %v4141
      %v4610 = vadd.f32 %v3591, %v4144
      %v4611 = vadd.f32 %v3596, %v4149
      %v4612 = vadd.f32 %v3599, %v4152
      %v4613 = vadd.f32 %v3604, %v4157
      %v4614 = vadd.f32 %v3607, %v4160
      %v4615 = vadd.f32 %v3612, %v4165
      %v4616 = vadd.f32 %v3615, %v4168
      %v4617 = vadd.f32 %v3620, %v4173
      %v4618 = vadd.f32 %v3623, %v4176
      %v4619 = vadd.f32 %v3628, %v4181
      %v4620 = vadd.f32 %v3631, %v4184
      %v4621 = vadd.f32 %v3636, %v4189
      %v4622 = vadd.f32 %v3639, %v4192
      %v4623 = vadd.f32 %v3644, %v4197
      %v4624 = vadd.f32 %v3647, %v4200
      %v4625 = vadd.f32 %v3652, %v4205
      %v4626 = vadd.f32 %v3655, %v4208
      %v4627 = vadd.f32 %v3660, %v4213
      %v4628 = vadd.f32 %v3663, %v4216
      %v4629 = vadd.f32 %v3668, %v4221
      %v4630 = vadd.f32 %v3671, %v4224
      %v4631 = vadd.f32 %v3676, %v4229
      %v4632 = vadd.f32 %v3679, %v4232
      %v4633 = vadd.f32 %v3684, %v4237
      %v4634 = vadd.f32 %v3687, %v4240
      %v4635 = vadd.f32 %v3692, %v4245
      %v4636 = vadd.f32 %v3695, %v4248
      %v4637 = vadd.f32 %v3700, %v4253
      %v4638 = vadd.f32 %v3703, %v4256
      %v4639 = vadd.f32 %v3708, %v4261
      %v4640 = vadd.f32 %v3711, %v4264
      %v4641 = vadd.f32 %v3716, %v4269
      %v4642 = vadd.f32 %v3719, %v4272
      %v4643 = vadd.f32 %v3724, %v4277
      %v4644 = vadd.f32 %v3727, %v4280
      %v4645 = vadd.f32 %v3732, %v4285
      %v4646 = vadd.f32 %v3735, %v4288
      %v4647 = vadd.f32 %v3740, %v4293
      %v4648 = vadd.f32 %v3743, %v4296
      %v4649 = vadd.f32 %v3748, %v4301
      %v4650 = vadd.f32 %v3751, %v4304
      %v4651 = vadd.f32 %v3756, %v4309
      %v4652 = vadd.f32 %v3759, %v4312
      %v4653 = vadd.f32 %v3764, %v4317
      %v4654 = vadd.f32 %v3767, %v4320
      %v4655 = vadd.f32 %v3772, %v4325
      %v4656 = vadd.f32 %v3775, %v4328
      %v4657 = vadd.f32 %v3780, %v4333
      %v4658 = vadd.f32 %v3783, %v4336
      %v4659 = vadd.f32 %v3788, %v4341
      %v4660 = vadd.f32 %v3791, %v4344
      %v4661 = vadd.f32 %v3796, %v4349
      %v4662 = vadd.f32 %v3799, %v4352
      %v4663 = vadd.f32 %v3804, %v4357
      %v4664 = vadd.f32 %v3807, %v4360
      %v4665 = vadd.f32 %v3812, %v4365
      %v4666 = vadd.f32 %v3815, %v4368
      %v4667 = vadd.f32 %v3820, %v4373
      %v4668 = vadd.f32 %v3823, %v4376
      %v4669 = vadd.f32 %v3828, %v4381
      %v4670 = vadd.f32 %v3831, %v4384
      %v4671 = vadd.f32 %v3836, %v4389
      %v4672 = vadd.f32 %v3839, %v4392
      %v4673 = vadd.f32 %v3844, %v4397
      %v4674 = vadd.f32 %v3847, %v4400
      %v4675 = vadd.f32 %v3852, %v4405
      %v4676 = vadd.f32 %v3855, %v4408
      %v4677 = vadd.f32 %v3860, %v4413
      %v4678 = vadd.f32 %v3863, %v4416
      %v4679 = vadd.f32 %v3868, %v4421
      %v4680 = vadd.f32 %v3871, %v4424
      %v4681 = vadd.f32 %v3876, %v4429
      %v4682 = vadd.f32 %v3879, %v4432
      %v4683 = vadd.f32 %v3884, %v4437
      %v4684 = vadd.f32 %v3887, %v4440
      %v4685 = vadd.f32 %v3892, %v4445
      %v4686 = vadd.f32 %v3895, %v4448
      %v4687 = vadd.f32 %v3900, %v4453
      %v4688 = vadd.f32 %v3903, %v4456
      %v4689 = vadd.f32 %v3908, %v4461
      %v4690 = vadd.f32 %v3911, %v4464
      %v4691 = vadd.f32 %v3916, %v4469
      %v4692 = vadd.f32 %v3919, %v4472
      %v4693 = vadd.f32 %v3924, %v4477
      %v4694 = vadd.f32 %v3927, %v4480
      %v4695 = vadd.f32 %v3932, %v4485
      %v4696 = vadd.f32 %v3935, %v4488
      %v4697 = vadd.f32 %v3940, %v4493
      %v4698 = vadd.f32 %v3943, %v4496
      %v4699 = vadd.f32 %v3948, %v4501
      %v4700 = vadd.f32 %v3951, %v4504
      %v4701 = vadd.f32 %v3956, %v4509
      %v4702 = vadd.f32 %v3959, %v4512
      %v4703 = vadd.f32 %v3964, %v4517
      %v4704 = vadd.f32 %v3967, %v4520
      %v4705 = vadd.f32 %v3972, %v4525
      %v4706 = vadd.f32 %v3975, %v4528
      %v4707 = vadd.f32 %v3980, %v4533
      %v4708 = vadd.f32 %v3983, %v4536
      %v4709 = vadd.f32 %v3988, %v4541
      %v4710 = vadd.f32 %v3991, %v4544
      %v4711 = vadd.f32 %v3996, %v4549
      %v4712 = vadd.f32 %v3999, %v4552
      %v4713 = vadd.f32 %v4004, %v4557
      %v4714 = vadd.f32 %v4007, %v4560
      %v4715 = vadd.f32 %v4012, %v4565
      %v4716 = vadd.f32 %v4015, %v4568
      %v4717 = vadd.f32 %v4020, %v4573
      %v4718 = vadd.f32 %v4023, %v4576
      %v4719 = vadd.f32 %v4028, %v4581
      %v4720 = vadd.f32 %v4031, %v4584
      %v4721 = vadd.f32 %v4036, %v4589
      %v4722 = vadd.f32 %v4039, %v4592
      %v4723 = vld [vmem:[%s2] sm:$0x1]
      %v4725 = vlaneseq
      %v4726 = vshrl.u32 %v4725, 7
      %v4727 = vsub.s32 0, %v4726
      %v4728 = vrot.slane %v4723, %v4727
      %v4730 = vadd.f32 %v4595, %v4728
      %v4731 = vadd.f32 %v4596, %v4728
      %v4732 = vadd.f32 %v4597, %v4728
      %v4733 = vadd.f32 %v4598, %v4728
      %v4734 = vadd.f32 %v4599, %v4728
      %v4735 = vadd.f32 %v4600, %v4728
      %v4736 = vadd.f32 %v4601, %v4728
      %v4737 = vadd.f32 %v4602, %v4728
      %v4738 = vadd.f32 %v4603, %v4728
      %v4739 = vadd.f32 %v4604, %v4728
      %v4740 = vadd.f32 %v4605, %v4728
      %v4741 = vadd.f32 %v4606, %v4728
      %v4742 = vadd.f32 %v4607, %v4728
      %v4743 = vadd.f32 %v4608, %v4728
      %v4744 = vadd.f32 %v4609, %v4728
      %v4745 = vadd.f32 %v4610, %v4728
      %v4746 = vadd.f32 %v4611, %v4728
      %v4747 = vadd.f32 %v4612, %v4728
      %v4748 = vadd.f32 %v4613, %v4728
      %v4749 = vadd.f32 %v4614, %v4728
      %v4750 = vadd.f32 %v4615, %v4728
      %v4751 = vadd.f32 %v4616, %v4728
      %v4752 = vadd.f32 %v4617, %v4728
      %v4753 = vadd.f32 %v4618, %v4728
      %v4754 = vadd.f32 %v4619, %v4728
      %v4755 = vadd.f32 %v4620, %v4728
      %v4756 = vadd.f32 %v4621, %v4728
      %v4757 = vadd.f32 %v4622, %v4728
      %v4758 = vadd.f32 %v4623, %v4728
      %v4759 = vadd.f32 %v4624, %v4728
      %v4760 = vadd.f32 %v4625, %v4728
      %v4761 = vadd.f32 %v4626, %v4728
      %v4762 = vadd.f32 %v4627, %v4728
      %v4763 = vadd.f32 %v4628, %v4728
      %v4764 = vadd.f32 %v4629, %v4728
      %v4765 = vadd.f32 %v4630, %v4728
      %v4766 = vadd.f32 %v4631, %v4728
      %v4767 = vadd.f32 %v4632, %v4728
      %v4768 = vadd.f32 %v4633, %v4728
      %v4769 = vadd.f32 %v4634, %v4728
      %v4770 = vadd.f32 %v4635, %v4728
      %v4771 = vadd.f32 %v4636, %v4728
      %v4772 = vadd.f32 %v4637, %v4728
      %v4773 = vadd.f32 %v4638, %v4728
      %v4774 = vadd.f32 %v4639, %v4728
      %v4775 = vadd.f32 %v4640, %v4728
      %v4776 = vadd.f32 %v4641, %v4728
      %v4777 = vadd.f32 %v4642, %v4728
      %v4778 = vadd.f32 %v4643, %v4728
      %v4779 = vadd.f32 %v4644, %v4728
      %v4780 = vadd.f32 %v4645, %v4728
      %v4781 = vadd.f32 %v4646, %v4728
      %v4782 = vadd.f32 %v4647, %v4728
      %v4783 = vadd.f32 %v4648, %v4728
      %v4784 = vadd.f32 %v4649, %v4728
      %v4785 = vadd.f32 %v4650, %v4728
      %v4786 = vadd.f32 %v4651, %v4728
      %v4787 = vadd.f32 %v4652, %v4728
      %v4788 = vadd.f32 %v4653, %v4728
      %v4789 = vadd.f32 %v4654, %v4728
      %v4790 = vadd.f32 %v4655, %v4728
      %v4791 = vadd.f32 %v4656, %v4728
      %v4792 = vadd.f32 %v4657, %v4728
      %v4793 = vadd.f32 %v4658, %v4728
      %v4794 = vadd.f32 %v4659, %v4728
      %v4795 = vadd.f32 %v4660, %v4728
      %v4796 = vadd.f32 %v4661, %v4728
      %v4797 = vadd.f32 %v4662, %v4728
      %v4798 = vadd.f32 %v4663, %v4728
      %v4799 = vadd.f32 %v4664, %v4728
      %v4800 = vadd.f32 %v4665, %v4728
      %v4801 = vadd.f32 %v4666, %v4728
      %v4802 = vadd.f32 %v4667, %v4728
      %v4803 = vadd.f32 %v4668, %v4728
      %v4804 = vadd.f32 %v4669, %v4728
      %v4805 = vadd.f32 %v4670, %v4728
      %v4806 = vadd.f32 %v4671, %v4728
      %v4807 = vadd.f32 %v4672, %v4728
      %v4808 = vadd.f32 %v4673, %v4728
      %v4809 = vadd.f32 %v4674, %v4728
      %v4810 = vadd.f32 %v4675, %v4728
      %v4811 = vadd.f32 %v4676, %v4728
      %v4812 = vadd.f32 %v4677, %v4728
      %v4813 = vadd.f32 %v4678, %v4728
      %v4814 = vadd.f32 %v4679, %v4728
      %v4815 = vadd.f32 %v4680, %v4728
      %v4816 = vadd.f32 %v4681, %v4728
      %v4817 = vadd.f32 %v4682, %v4728
      %v4818 = vadd.f32 %v4683, %v4728
      %v4819 = vadd.f32 %v4684, %v4728
      %v4820 = vadd.f32 %v4685, %v4728
      %v4821 = vadd.f32 %v4686, %v4728
      %v4822 = vadd.f32 %v4687, %v4728
      %v4823 = vadd.f32 %v4688, %v4728
      %v4824 = vadd.f32 %v4689, %v4728
      %v4825 = vadd.f32 %v4690, %v4728
      %v4826 = vadd.f32 %v4691, %v4728
      %v4827 = vadd.f32 %v4692, %v4728
      %v4828 = vadd.f32 %v4693, %v4728
      %v4829 = vadd.f32 %v4694, %v4728
      %v4830 = vadd.f32 %v4695, %v4728
      %v4831 = vadd.f32 %v4696, %v4728
      %v4832 = vadd.f32 %v4697, %v4728
      %v4833 = vadd.f32 %v4698, %v4728
      %v4834 = vadd.f32 %v4699, %v4728
      %v4835 = vadd.f32 %v4700, %v4728
      %v4836 = vadd.f32 %v4701, %v4728
      %v4837 = vadd.f32 %v4702, %v4728
      %v4838 = vadd.f32 %v4703, %v4728
      %v4839 = vadd.f32 %v4704, %v4728
      %v4840 = vadd.f32 %v4705, %v4728
      %v4841 = vadd.f32 %v4706, %v4728
      %v4842 = vadd.f32 %v4707, %v4728
      %v4843 = vadd.f32 %v4708, %v4728
      %v4844 = vadd.f32 %v4709, %v4728
      %v4845 = vadd.f32 %v4710, %v4728
      %v4846 = vadd.f32 %v4711, %v4728
      %v4847 = vadd.f32 %v4712, %v4728
      %v4848 = vadd.f32 %v4713, %v4728
      %v4849 = vadd.f32 %v4714, %v4728
      %v4850 = vadd.f32 %v4715, %v4728
      %v4851 = vadd.f32 %v4716, %v4728
      %v4852 = vadd.f32 %v4717, %v4728
      %v4853 = vadd.f32 %v4718, %v4728
      %v4854 = vadd.f32 %v4719, %v4728
      %v4855 = vadd.f32 %v4720, %v4728
      %v4856 = vadd.f32 %v4721, %v4728
      %v4857 = vadd.f32 %v4722, %v4728
      %4858 = vst.msk [vmem:[%s170] sm:$0xff] %vm2544, %v4730
      %4859 = vst.msk [vmem:[%s170 + $0x8] sm:$0xff] %vm2544, %v4731
      %4860 = vst.msk [vmem:[%s170 + $0x10] sm:$0xff] %vm2544, %v4732
      %4861 = vst.msk [vmem:[%s170 + $0x18] sm:$0xff] %vm2544, %v4733
      %4862 = vst.msk [vmem:[%s170 + $0x20] sm:$0xff] %vm2544, %v4734
      %4863 = vst.msk [vmem:[%s170 + $0x28] sm:$0xff] %vm2544, %v4735
      %4864 = vst.msk [vmem:[%s170 + $0x30] sm:$0xff] %vm2544, %v4736
      %4865 = vst.msk [vmem:[%s170 + $0x38] sm:$0xff] %vm2544, %v4737
      %4866 = vst.msk [vmem:[%s170 + $0x40] sm:$0xff] %vm2544, %v4738
      %4867 = vst.msk [vmem:[%s170 + $0x48] sm:$0xff] %vm2544, %v4739
      %4868 = vst.msk [vmem:[%s170 + $0x50] sm:$0xff] %vm2544, %v4740
      %4869 = vst.msk [vmem:[%s170 + $0x58] sm:$0xff] %vm2544, %v4741
      %4870 = vst.msk [vmem:[%s170 + $0x60] sm:$0xff] %vm2544, %v4742
      %4871 = vst.msk [vmem:[%s170 + $0x68] sm:$0xff] %vm2544, %v4743
      %4872 = vst.msk [vmem:[%s170 + $0x70] sm:$0xff] %vm2544, %v4744
      %4873 = vst.msk [vmem:[%s170 + $0x78] sm:$0xff] %vm2544, %v4745
      %4874 = vst.msk [vmem:[%s170 + $0x80] sm:$0xff] %vm2544, %v4746
      %4875 = vst.msk [vmem:[%s170 + $0x88] sm:$0xff] %vm2544, %v4747
      %4876 = vst.msk [vmem:[%s170 + $0x90] sm:$0xff] %vm2544, %v4748
      %4877 = vst.msk [vmem:[%s170 + $0x98] sm:$0xff] %vm2544, %v4749
      %4878 = vst.msk [vmem:[%s170 + $0xa0] sm:$0xff] %vm2544, %v4750
      %4879 = vst.msk [vmem:[%s170 + $0xa8] sm:$0xff] %vm2544, %v4751
      %4880 = vst.msk [vmem:[%s170 + $0xb0] sm:$0xff] %vm2544, %v4752
      %4881 = vst.msk [vmem:[%s170 + $0xb8] sm:$0xff] %vm2544, %v4753
      %4882 = vst.msk [vmem:[%s170 + $0xc0] sm:$0xff] %vm2544, %v4754
      %4883 = vst.msk [vmem:[%s170 + $0xc8] sm:$0xff] %vm2544, %v4755
      %4884 = vst.msk [vmem:[%s170 + $0xd0] sm:$0xff] %vm2544, %v4756
      %4885 = vst.msk [vmem:[%s170 + $0xd8] sm:$0xff] %vm2544, %v4757
      %4886 = vst.msk [vmem:[%s170 + $0xe0] sm:$0xff] %vm2544, %v4758
      %4887 = vst.msk [vmem:[%s170 + $0xe8] sm:$0xff] %vm2544, %v4759
      %4888 = vst.msk [vmem:[%s170 + $0xf0] sm:$0xff] %vm2544, %v4760
      %4889 = vst.msk [vmem:[%s170 + $0xf8] sm:$0xff] %vm2544, %v4761
      %4890 = vst.msk [vmem:[%s170 + $0x100] sm:$0xff] %vm2544, %v4762
      %4891 = vst.msk [vmem:[%s170 + $0x108] sm:$0xff] %vm2544, %v4763
      %4892 = vst.msk [vmem:[%s170 + $0x110] sm:$0xff] %vm2544, %v4764
      %4893 = vst.msk [vmem:[%s170 + $0x118] sm:$0xff] %vm2544, %v4765
      %4894 = vst.msk [vmem:[%s170 + $0x120] sm:$0xff] %vm2544, %v4766
      %4895 = vst.msk [vmem:[%s170 + $0x128] sm:$0xff] %vm2544, %v4767
      %4896 = vst.msk [vmem:[%s170 + $0x130] sm:$0xff] %vm2544, %v4768
      %4897 = vst.msk [vmem:[%s170 + $0x138] sm:$0xff] %vm2544, %v4769
      %4898 = vst.msk [vmem:[%s170 + $0x140] sm:$0xff] %vm2544, %v4770
      %4899 = vst.msk [vmem:[%s170 + $0x148] sm:$0xff] %vm2544, %v4771
      %4900 = vst.msk [vmem:[%s170 + $0x150] sm:$0xff] %vm2544, %v4772
      %4901 = vst.msk [vmem:[%s170 + $0x158] sm:$0xff] %vm2544, %v4773
      %4902 = vst.msk [vmem:[%s170 + $0x160] sm:$0xff] %vm2544, %v4774
      %4903 = vst.msk [vmem:[%s170 + $0x168] sm:$0xff] %vm2544, %v4775
      %4904 = vst.msk [vmem:[%s170 + $0x170] sm:$0xff] %vm2544, %v4776
      %4905 = vst.msk [vmem:[%s170 + $0x178] sm:$0xff] %vm2544, %v4777
      %4906 = vst.msk [vmem:[%s170 + $0x180] sm:$0xff] %vm2544, %v4778
      %4907 = vst.msk [vmem:[%s170 + $0x188] sm:$0xff] %vm2544, %v4779
      %4908 = vst.msk [vmem:[%s170 + $0x190] sm:$0xff] %vm2544, %v4780
      %4909 = vst.msk [vmem:[%s170 + $0x198] sm:$0xff] %vm2544, %v4781
      %4910 = vst.msk [vmem:[%s170 + $0x1a0] sm:$0xff] %vm2544, %v4782
      %4911 = vst.msk [vmem:[%s170 + $0x1a8] sm:$0xff] %vm2544, %v4783
      %4912 = vst.msk [vmem:[%s170 + $0x1b0] sm:$0xff] %vm2544, %v4784
      %4913 = vst.msk [vmem:[%s170 + $0x1b8] sm:$0xff] %vm2544, %v4785
      %4914 = vst.msk [vmem:[%s170 + $0x1c0] sm:$0xff] %vm2544, %v4786
      %4915 = vst.msk [vmem:[%s170 + $0x1c8] sm:$0xff] %vm2544, %v4787
      %4916 = vst.msk [vmem:[%s170 + $0x1d0] sm:$0xff] %vm2544, %v4788
      %4917 = vst.msk [vmem:[%s170 + $0x1d8] sm:$0xff] %vm2544, %v4789
      %4918 = vst.msk [vmem:[%s170 + $0x1e0] sm:$0xff] %vm2544, %v4790
      %4919 = vst.msk [vmem:[%s170 + $0x1e8] sm:$0xff] %vm2544, %v4791
      %4920 = vst.msk [vmem:[%s170 + $0x1f0] sm:$0xff] %vm2544, %v4792
      %4921 = vst.msk [vmem:[%s170 + $0x1f8] sm:$0xff] %vm2544, %v4793
      %4922 = vst.msk [vmem:[%s170 + $0x200] sm:$0xff] %vm2544, %v4794
      %4923 = vst.msk [vmem:[%s170 + $0x208] sm:$0xff] %vm2544, %v4795
      %4924 = vst.msk [vmem:[%s170 + $0x210] sm:$0xff] %vm2544, %v4796
      %4925 = vst.msk [vmem:[%s170 + $0x218] sm:$0xff] %vm2544, %v4797
      %4926 = vst.msk [vmem:[%s170 + $0x220] sm:$0xff] %vm2544, %v4798
      %4927 = vst.msk [vmem:[%s170 + $0x228] sm:$0xff] %vm2544, %v4799
      %4928 = vst.msk [vmem:[%s170 + $0x230] sm:$0xff] %vm2544, %v4800
      %4929 = vst.msk [vmem:[%s170 + $0x238] sm:$0xff] %vm2544, %v4801
      %4930 = vst.msk [vmem:[%s170 + $0x240] sm:$0xff] %vm2544, %v4802
      %4931 = vst.msk [vmem:[%s170 + $0x248] sm:$0xff] %vm2544, %v4803
      %4932 = vst.msk [vmem:[%s170 + $0x250] sm:$0xff] %vm2544, %v4804
      %4933 = vst.msk [vmem:[%s170 + $0x258] sm:$0xff] %vm2544, %v4805
      %4934 = vst.msk [vmem:[%s170 + $0x260] sm:$0xff] %vm2544, %v4806
      %4935 = vst.msk [vmem:[%s170 + $0x268] sm:$0xff] %vm2544, %v4807
      %4936 = vst.msk [vmem:[%s170 + $0x270] sm:$0xff] %vm2544, %v4808
      %4937 = vst.msk [vmem:[%s170 + $0x278] sm:$0xff] %vm2544, %v4809
      %4938 = vst.msk [vmem:[%s170 + $0x280] sm:$0xff] %vm2544, %v4810
      %4939 = vst.msk [vmem:[%s170 + $0x288] sm:$0xff] %vm2544, %v4811
      %4940 = vst.msk [vmem:[%s170 + $0x290] sm:$0xff] %vm2544, %v4812
      %4941 = vst.msk [vmem:[%s170 + $0x298] sm:$0xff] %vm2544, %v4813
      %4942 = vst.msk [vmem:[%s170 + $0x2a0] sm:$0xff] %vm2544, %v4814
      %4943 = vst.msk [vmem:[%s170 + $0x2a8] sm:$0xff] %vm2544, %v4815
      %4944 = vst.msk [vmem:[%s170 + $0x2b0] sm:$0xff] %vm2544, %v4816
      %4945 = vst.msk [vmem:[%s170 + $0x2b8] sm:$0xff] %vm2544, %v4817
      %4946 = vst.msk [vmem:[%s170 + $0x2c0] sm:$0xff] %vm2544, %v4818
      %4947 = vst.msk [vmem:[%s170 + $0x2c8] sm:$0xff] %vm2544, %v4819
      %4948 = vst.msk [vmem:[%s170 + $0x2d0] sm:$0xff] %vm2544, %v4820
      %4949 = vst.msk [vmem:[%s170 + $0x2d8] sm:$0xff] %vm2544, %v4821
      %4950 = vst.msk [vmem:[%s170 + $0x2e0] sm:$0xff] %vm2544, %v4822
      %4951 = vst.msk [vmem:[%s170 + $0x2e8] sm:$0xff] %vm2544, %v4823
      %4952 = vst.msk [vmem:[%s170 + $0x2f0] sm:$0xff] %vm2544, %v4824
      %4953 = vst.msk [vmem:[%s170 + $0x2f8] sm:$0xff] %vm2544, %v4825
      %4954 = vst.msk [vmem:[%s170 + $0x300] sm:$0xff] %vm2544, %v4826
      %4955 = vst.msk [vmem:[%s170 + $0x308] sm:$0xff] %vm2544, %v4827
      %4956 = vst.msk [vmem:[%s170 + $0x310] sm:$0xff] %vm2544, %v4828
      %4957 = vst.msk [vmem:[%s170 + $0x318] sm:$0xff] %vm2544, %v4829
      %4958 = vst.msk [vmem:[%s170 + $0x320] sm:$0xff] %vm2544, %v4830
      %4959 = vst.msk [vmem:[%s170 + $0x328] sm:$0xff] %vm2544, %v4831
      %4960 = vst.msk [vmem:[%s170 + $0x330] sm:$0xff] %vm2544, %v4832
      %4961 = vst.msk [vmem:[%s170 + $0x338] sm:$0xff] %vm2544, %v4833
      %4962 = vst.msk [vmem:[%s170 + $0x340] sm:$0xff] %vm2544, %v4834
      %4963 = vst.msk [vmem:[%s170 + $0x348] sm:$0xff] %vm2544, %v4835
      %4964 = vst.msk [vmem:[%s170 + $0x350] sm:$0xff] %vm2544, %v4836
      %4965 = vst.msk [vmem:[%s170 + $0x358] sm:$0xff] %vm2544, %v4837
      %4966 = vst.msk [vmem:[%s170 + $0x360] sm:$0xff] %vm2544, %v4838
      %4967 = vst.msk [vmem:[%s170 + $0x368] sm:$0xff] %vm2544, %v4839
      %4968 = vst.msk [vmem:[%s170 + $0x370] sm:$0xff] %vm2544, %v4840
      %4969 = vst.msk [vmem:[%s170 + $0x378] sm:$0xff] %vm2544, %v4841
      %4970 = vst.msk [vmem:[%s170 + $0x380] sm:$0xff] %vm2544, %v4842
      %4971 = vst.msk [vmem:[%s170 + $0x388] sm:$0xff] %vm2544, %v4843
      %4972 = vst.msk [vmem:[%s170 + $0x390] sm:$0xff] %vm2544, %v4844
      %4973 = vst.msk [vmem:[%s170 + $0x398] sm:$0xff] %vm2544, %v4845
      %4974 = vst.msk [vmem:[%s170 + $0x3a0] sm:$0xff] %vm2544, %v4846
      %4975 = vst.msk [vmem:[%s170 + $0x3a8] sm:$0xff] %vm2544, %v4847
      %4976 = vst.msk [vmem:[%s170 + $0x3b0] sm:$0xff] %vm2544, %v4848
      %4977 = vst.msk [vmem:[%s170 + $0x3b8] sm:$0xff] %vm2544, %v4849
      %4978 = vst.msk [vmem:[%s170 + $0x3c0] sm:$0xff] %vm2544, %v4850
      %4979 = vst.msk [vmem:[%s170 + $0x3c8] sm:$0xff] %vm2544, %v4851
      %4980 = vst.msk [vmem:[%s170 + $0x3d0] sm:$0xff] %vm2544, %v4852
      %4981 = vst.msk [vmem:[%s170 + $0x3d8] sm:$0xff] %vm2544, %v4853
      %4982 = vst.msk [vmem:[%s170 + $0x3e0] sm:$0xff] %vm2544, %v4854
      %4983 = vst.msk [vmem:[%s170 + $0x3e8] sm:$0xff] %vm2544, %v4855
      %4984 = vst.msk [vmem:[%s170 + $0x3f0] sm:$0xff] %vm2544, %v4856
      %4985 = vst.msk [vmem:[%s170 + $0x3f8] sm:$0xff] %vm2544, %v4857
      %p4986 = scmp.lt.s32.totalorder %s14, 1
      %s4987 = scalar_select %p4986, %s14, 1
      %s4988 = smul.addr %s4987, 128
      %s4989 = smul.addr %s4988, 8
      %s4990 = scalar_lea.vmem %s3, %s4989
      // Predicated region
      $region33: #{tpu_custom_call.1} parent=31 // pred_check
        %p4991 = pneg %p100
      $region34: #{tpu_custom_call.1} parent=31 // pred_check_branch
        %4993 = sbr.rel (%p4991) target = $region36
      $region35: #{tpu_custom_call.1} parent=31 // pred_region
        _
      $region36: #{tpu_custom_call.1} parent=31 // pred_fallthru
        _
    $region32: #{tpu_custom_call.1} parent=5 // pred_fallthru
      _
    %p4994 = scmp.le.s32.totalorder 2, %s9
    // Predicated region
    $region37: #{tpu_custom_call.1} parent=5 // pred_check
      %p4995 = pneg %p4994
    $region38: #{tpu_custom_call.1} parent=5 // pred_check_branch
      %4997 = sbr.rel (%p4995) target = $region40
    $region39: #{tpu_custom_call.1} parent=5 // pred_region
      %s4998 = ssub.s32 %s9, 2
      // Predicated region
      $region41: #{tpu_custom_call.1} parent=39 // pred_check
        %p4999 = pneg %p106
      $region42: #{tpu_custom_call.1} parent=39 // pred_check_branch
        %5001 = sbr.rel (%p4999) target = $region44
      $region43: #{tpu_custom_call.1} parent=39 // pred_region
        %p5002 = scmp.lt.s32.totalorder %s15, 1
        %s5003 = scalar_select %p5002, %s15, 1
        %s5004 = smul.addr %s5003, 128
        %s5005 = smul.addr %s5004, 8
        %s5006 = scalar_lea.vmem %s3, %s5005
      $region44: #{tpu_custom_call.1} parent=39 // pred_fallthru
        _
    $region40: #{tpu_custom_call.1} parent=5 // pred_fallthru
      _
  $region6: #{tpu_custom_call.1} parent=0 // loop_footer
    %s13 = sadd.s32 1, %s9
  $region7: #{tpu_custom_call.1} parent=0 // loop_footer_branch
    %8 = sbr.rel target = $region3
  $region8: #{tpu_custom_call.1} parent=0 // loop_exit
    _

</llo_original>
